<compile_context>
chip_gen: v7x
topology: tpu7x:2x2x1
jax: 0.10.0
libtpu: 0.0.40
codegen_flags: <defaults>
</compile_context>

<pallas_src>
import functools

import jax
import jax.numpy as jnp
from jax.experimental import pallas as pl
from jax.experimental.pallas import tpu as pltpu


def _round_up(x, m):
    return (x + m - 1) // m * m


def _pick_tn(coutp):
    for cand in (512, 256, 128):
        if coutp % cand == 0:
            return cand
    return coutp  # unreachable: coutp is always a multiple of 128


def _vmem_limit(est_bytes):
    # Right-size the scoped VMEM request; cap at 64 MiB (v7x physical VMEM/TC).
    return int(min(64 * 1024 * 1024, max(32 * 1024 * 1024, 2 * est_bytes)))


# --------------------------------------------------------------------------------
# Implicit-im2col ("shift GEMM") kernel: stride == 1.
# --------------------------------------------------------------------------------
def _make_implicit_kernel(KH, KW, dil, wp_p, mt, tn, has_residual):
    taps = [(kh, kw) for kh in range(KH) for kw in range(KW)]

    def kernel(x_ref, w_ref, b_ref, *rest):
        # x_ref : (slab_h * wp_p, Cin)   bf16 flattened input slab (rows x padded width)
        # w_ref : (KH*KW, Cin, tn)       bf16 folded weight (BN scale folded in), resident
        # b_ref : (1, tn)                f32 folded BN bias
        # sc_ref: (mt, tn)               f32 residual (optional)
        # o_ref : (mt, tn)               f32 output block
        if has_residual:
            sc_ref, o_ref = rest
        else:
            (o_ref,) = rest

        acc = jnp.zeros((mt, tn), jnp.float32)
        for t, (kh, kw) in enumerate(taps):
            start = kh * dil * wp_p + kw * dil              # static offset per tap
            lhs = x_ref[start:start + mt, :]                 # (mt, Cin) bf16
            acc = acc + jnp.dot(lhs, w_ref[t],
                                preferred_element_type=jnp.float32)

        y = jnp.maximum(acc + b_ref[...], 0.0)               # folded BN bias + ReLU
        if has_residual:
            y = y + sc_ref[...]                              # f32 residual add
        o_ref[...] = y.astype(o_ref.dtype)

    return kernel


def _conv_bn_act_implicit(x_nhwc, weight, scale, bias, *, dil, KH, KW, has_residual):
    """stride == 1: implicit-im2col shift-GEMM.  Returns f32 NHWC output."""
    N, H, W, Cin = x_nhwc.shape
    Cout = weight.shape[0]
    pad = dil  # module: nn.Conv2d(..., padding=dilation, dilation=dilation)
    Ho = H + 2 * pad - dil * (KH - 1)
    Wo = W + 2 * pad - dil * (KW - 1)

    # ---- tiling -----------------------------------------------------------------
    # Outputs are computed over the full padded width so every tap is a contiguous
    # 2D slice of the flattened slab; the extra columns are cropped afterwards.
    wp_p = _round_up(Wo + dil * (KW - 1), 8)                 # padded input width
    coutp = _round_up(Cout, 128)
    tn = _pick_tn(coutp)
    cb = coutp // tn

    th = max(1, min(Ho, max(1, 1024 // wp_p)))               # output rows per block
    if N * cb == 1 and th >= Ho and Ho > 1:                  # keep >=2 parallel blocks
        th = (Ho + 1) // 2
    ho_p = _round_up(Ho, th)
    hb = ho_p // th
    mt = th * wp_p                                           # GEMM rows per block (%8==0)

    slab_h = th + dil * (KH - 1) + 1                         # +1 row for tap column spill
    hp_p = ho_p + dil * (KH - 1) + 1

    # ---- stage inputs -------------------------------------------------------------
    xb = x_nhwc.astype(jnp.bfloat16)
    xp = jnp.pad(xb, ((0, 0),
                      (pad, hp_p - pad - H),
                      (pad, wp_p - pad - W),
                      (0, 0)))                               # (N, hp_p, wp_p, Cin)
    slabs = jnp.stack([xp[:, b * th:b * th + slab_h] for b in range(hb)], axis=1)
    x_slab = slabs.reshape(N, hb, slab_h * wp_p, Cin)        # flatten (rows, width)

    # folded weight: (Cout, Cin, KH, KW) -> (KH*KW, Cin, coutp) bf16, BN scale folded.
    w_kkc = jnp.transpose(weight, (2, 3, 1, 0)).reshape(KH * KW, Cin, Cout)
    w_kkc = w_kkc.astype(jnp.float32) * scale[None, None, :]
    w_p = jnp.pad(w_kkc.astype(jnp.bfloat16), ((0, 0), (0, 0), (0, coutp - Cout)))
    b_p = jnp.pad(bias.astype(jnp.float32).reshape(1, Cout), ((0, 0), (0, coutp - Cout)))

    m_pad = N * ho_p * wp_p
    grid = (N, hb, cb)

    in_specs = [
        pl.BlockSpec((None, None, slab_h * wp_p, Cin), lambda n, h, c: (n, h, 0, 0)),
        pl.BlockSpec((KH * KW, Cin, tn), lambda n, h, c: (0, 0, c)),  # resident weight
        pl.BlockSpec((1, tn), lambda n, h, c: (0, c)),
    ]
    args = [x_slab, w_p, b_p]
    if has_residual:
        # residual streamed in f32 (bit-closer to the PyTorch f32 add)
        sc = jnp.pad(x_nhwc.astype(jnp.float32),
                     ((0, 0), (0, ho_p - H), (0, wp_p - W), (0, coutp - Cin)))
        args.append(sc.reshape(m_pad, coutp))
        in_specs.append(pl.BlockSpec((mt, tn), lambda n, h, c: (n * hb + h, c)))

    out_spec = pl.BlockSpec((mt, tn), lambda n, h, c: (n * hb + h, c))
    kernel = _make_implicit_kernel(KH, KW, dil, wp_p, mt, tn, has_residual)

    est = (2 * (slab_h * wp_p * Cin * 2 + KH * KW * Cin * tn * 2 + tn * 4
                + mt * tn * 4 + (mt * tn * 4 if has_residual else 0))
           + mt * tn * 4)
    flops = 2 * m_pad * KH * KW * Cin * coutp
    bytes_acc = (x_slab.size * 2 + w_p.size * 2 + b_p.size * 4 + m_pad * coutp * 4
                 + (m_pad * coutp * 4 if has_residual else 0))

    out_p = pl.pallas_call(
        kernel,
        out_shape=jax.ShapeDtypeStruct((m_pad, coutp), jnp.float32),
        grid=grid,
        in_specs=in_specs,
        out_specs=out_spec,
        compiler_params=pltpu.CompilerParams(
            dimension_semantics=("parallel", "parallel", "parallel"),
            vmem_limit_bytes=_vmem_limit(est)),
        cost_estimate=pl.CostEstimate(flops=flops, transcendentals=0,
                                      bytes_accessed=bytes_acc),
    )(*args)

    return out_p.reshape(N, ho_p, wp_p, coutp)[:, :Ho, :Wo, :Cout]


# --------------------------------------------------------------------------------
# Fallback: materialized-im2col GEMM (stride > 1; the residual case never lands here).
# --------------------------------------------------------------------------------
def _gemm_kernel_acc(cols_ref, w_ref, bias_ref, o_ref, acc_ref):
    k = pl.program_id(2)

    @pl.when(k == 0)
    def _():
        acc_ref[...] = jnp.zeros_like(acc_ref)

    acc_ref[...] += jnp.dot(cols_ref[...], w_ref[...],
                            preferred_element_type=jnp.float32)

    @pl.when(k == pl.num_programs(2) - 1)
    def _():
        o_ref[...] = jnp.maximum(acc_ref[...] + bias_ref[...], 0.0).astype(o_ref.dtype)


def _gemm_kernel_single(cols_ref, w_ref, bias_ref, o_ref):
    acc = jnp.dot(cols_ref[...], w_ref[...], preferred_element_type=jnp.float32)
    o_ref[...] = jnp.maximum(acc + bias_ref[...], 0.0).astype(o_ref.dtype)


def _tile_and_pad(dim, target, align=128):
    padded = _round_up(dim, align)
    tile = min(target, padded)
    padded = _round_up(padded, tile)
    return tile, padded


def _conv_bn_act_gemm(x_nhwc, weight, scale, bias, *, stride, dil, KH, KW):
    """stride > 1 fallback.  Returns f32 NHWC output."""
    # TODO(synk): extend the implicit-im2col path to strided convs and drop this.
    N, H, W, Cin = x_nhwc.shape
    Cout = weight.shape[0]
    pad = dil
    Ho = (H + 2 * pad - dil * (KH - 1) - 1) // stride + 1
    Wo = (W + 2 * pad - dil * (KW - 1) - 1) // stride + 1

    xb = x_nhwc.astype(jnp.bfloat16)
    xp = jnp.pad(xb, ((0, 0), (pad, pad), (pad, pad), (0, 0)))
    patches = []
    for kh in range(KH):
        for kw in range(KW):
            h0, w0 = kh * dil, kw * dil
            patches.append(xp[:, h0:h0 + stride * (Ho - 1) + 1:stride,
                               w0:w0 + stride * (Wo - 1) + 1:stride, :])
    cols = jnp.stack(patches, axis=3).reshape(N * Ho * Wo, KH * KW * Cin)

    M, K = N * Ho * Wo, KH * KW * Cin
    tm, Mp = _tile_and_pad(M, 1024)
    tk, Kp = _tile_and_pad(K, 512)
    tn, Cp = _tile_and_pad(Cout, 512)

    cols_p = jnp.pad(cols, ((0, Mp - M), (0, Kp - K)))
    w_mat = jnp.transpose(weight, (2, 3, 1, 0)).reshape(K, Cout).astype(jnp.float32)
    w_p = jnp.pad((w_mat * scale[None, :]).astype(jnp.bfloat16),
                  ((0, Kp - K), (0, Cp - Cout)))
    b_p = jnp.pad(bias.astype(jnp.float32).reshape(1, Cout), ((0, 0), (0, Cp - Cout)))

    est = 2 * (tm * tk * 2 + tk * tn * 2 + tn * 4 + tm * tn * 4) + tm * tn * 4
    cost = pl.CostEstimate(
        flops=2 * Mp * Kp * Cp, transcendentals=0,
        bytes_accessed=cols_p.size * 2 + w_p.size * 2 + b_p.size * 4 + Mp * Cp * 4)
    params = pltpu.CompilerParams(
        dimension_semantics=("parallel", "parallel") + (() if Kp == tk else ("arbitrary",)),
        vmem_limit_bytes=_vmem_limit(est))

    if Kp == tk:   # single reduction step: no scratch accumulator, no pl.when
        out_p = pl.pallas_call(
            _gemm_kernel_single,
            out_shape=jax.ShapeDtypeStruct((Mp, Cp), jnp.float32),
            grid=(Mp // tm, Cp // tn),
            in_specs=[pl.BlockSpec((tm, tk), lambda i, j: (i, 0)),
                      pl.BlockSpec((tk, tn), lambda i, j: (0, j)),
                      pl.BlockSpec((1, tn), lambda i, j: (0, j))],
            out_specs=pl.BlockSpec((tm, tn), lambda i, j: (i, j)),
            compiler_params=params,
            cost_estimate=cost,
        )(cols_p, w_p, b_p)
    else:
        out_p = pl.pallas_call(
            _gemm_kernel_acc,
            out_shape=jax.ShapeDtypeStruct((Mp, Cp), jnp.float32),
            grid=(Mp // tm, Cp // tn, Kp // tk),
            in_specs=[pl.BlockSpec((tm, tk), lambda i, j, k: (i, k)),
                      pl.BlockSpec((tk, tn), lambda i, j, k: (k, j)),
                      pl.BlockSpec((1, tn), lambda i, j, k: (0, j))],
            out_specs=pl.BlockSpec((tm, tn), lambda i, j, k: (i, j)),
            scratch_shapes=[pltpu.VMEM((tm, tn), jnp.float32)],
            compiler_params=params,
            cost_estimate=cost,
        )(cols_p, w_p, b_p)

    return out_p[:M, :Cout].reshape(N, Ho, Wo, Cout)


# --------------------------------------------------------------------------------
# Public forward pass.
# --------------------------------------------------------------------------------
@functools.partial(jax.jit, static_argnames=("stride", "dilation", "skip", "eps"))
def conv_bn_act(x_nchw, weight, gamma, beta, running_mean, running_var,
                *, stride=1, dilation=1, skip=True, eps=1e-5):
    """ConvBnAct forward: Conv2d(no bias) -> BatchNorm2d(eval) -> ReLU -> (+x)."""
    N, Cin, H, W = x_nchw.shape
    Cout, _, KH, KW = weight.shape
    has_residual = skip and stride == 1 and Cin == Cout

    # Fold BN (inference / running stats) into a per-channel scale (into the weight)
    # and a per-channel bias (epilogue).
    inv_std = 1.0 / jnp.sqrt(running_var.astype(jnp.float32) + eps)
    scale = gamma.astype(jnp.float32) * inv_std
    bias = beta.astype(jnp.float32) - running_mean.astype(jnp.float32) * scale

    # NCHW -> NHWC (channels on the lane axis).
    x_nhwc = jnp.transpose(x_nchw, (0, 2, 3, 1))

    if stride == 1:
        out = _conv_bn_act_implicit(x_nhwc, weight, scale, bias,
                                    dil=dilation, KH=KH, KW=KW,
                                    has_residual=has_residual)
    else:
        out = _conv_bn_act_gemm(x_nhwc, weight, scale, bias,
                                stride=stride, dil=dilation, KH=KH, KW=KW)
    return jnp.transpose(out, (0, 3, 1, 2))                  # back to NCHW


# --------------------------------------------------------------------------------
# Pure-JAX reference + self-test.
# --------------------------------------------------------------------------------
def _reference(x_nchw, weight, gamma, beta, running_mean, running_var,
               *, stride=1, dilation=1, skip=True, eps=1e-5):
    pad = dilation
    conv = jax.lax.conv_general_dilated(
        x_nchw, weight,
        window_strides=(stride, stride),
        padding=((pad, pad), (pad, pad)),
        rhs_dilation=(dilation, dilation),
        dimension_numbers=("NCHW", "OIHW", "NCHW"),
    )
    scale = (gamma / jnp.sqrt(running_var + eps)).reshape(1, -1, 1, 1)
    bias = (beta - running_mean * gamma / jnp.sqrt(running_var + eps)).reshape(1, -1, 1, 1)
    y = jnp.maximum(conv * scale + bias, 0.0)
    if skip and stride == 1 and x_nchw.shape[1] == weight.shape[0]:
        y = y + x_nchw
    return y


if __name__ == "__main__":
    # ConvBnAct(in_chs=4, out_chs=4, kernel_size=3, stride=1, dilation=1, skip=True,
    # drop_path_rate=0.0), input (2, 4, 16, 16).
    N, Cin, H, W = 2, 4, 16, 16
    Cout, KH, KW = 4, 3, 3

    key = jax.random.PRNGKey(0)
    kx, kw, kg, kb, km, kv, kw2 = jax.random.split(key, 7)

    x = jax.random.normal(kx, (N, Cin, H, W), jnp.float32)
    weight = jax.random.normal(kw, (Cout, Cin, KH, KW), jnp.float32) * 0.1
    gamma = 1.0 + 0.1 * jax.random.normal(kg, (Cout,), jnp.float32)
    beta = 0.1 * jax.random.normal(kb, (Cout,), jnp.float32)
    running_mean = 0.1 * jax.random.normal(km, (Cout,), jnp.float32)
    running_var = jnp.abs(1.0 + 0.1 * jax.random.normal(kv, (Cout,), jnp.float32))

    # residual path (skip=True, stride=1, Cin==Cout) -> implicit-im2col kernel
    out = conv_bn_act(x, weight, gamma, beta, running_mean, running_var,
                      stride=1, dilation=1, skip=True)
    out = jax.block_until_ready(out)
    ref = _reference(x, weight, gamma, beta, running_mean, running_var,
                     stride=1, dilation=1, skip=True)
    assert out.shape == (N, Cout, H, W)
    assert jnp.allclose(out, ref, atol=5e-2, rtol=5e-2), "residual path mismatch"

    # non-residual strided path (skip=False, stride=2, different out_chs) -> fallback GEMM
    Cout2 = 8
    weight2 = jax.random.normal(kw2, (Cout2, Cin, KH, KW), jnp.float32) * 0.1
    gamma2 = jnp.ones((Cout2,), jnp.float32)
    beta2 = jnp.zeros((Cout2,), jnp.float32)
    mean2 = jnp.zeros((Cout2,), jnp.float32)
    var2 = jnp.ones((Cout2,), jnp.float32)
    out2 = conv_bn_act(x, weight2, gamma2, beta2, mean2, var2,
                       stride=2, dilation=1, skip=False)
    out2 = jax.block_until_ready(out2)
    ref2 = _reference(x, weight2, gamma2, beta2, mean2, var2,
                      stride=2, dilation=1, skip=False)
    assert out2.shape == ref2.shape
    assert jnp.allclose(out2, ref2, atol=5e-2, rtol=5e-2), "no-residual path mismatch"

    print("KERNEL_OK")
</pallas_src>

<mosaic_0001>
module attributes {stable_mosaic.version = 11 : i64} {
  func.func @kernel(%arg0: i32, %arg1: i32, %arg2: i32, %arg3: memref<1x1x456x4xbf16, #tpu.memory_space<vmem>>, %arg4: memref<9x4x128xbf16, #tpu.memory_space<vmem>>, %arg5: memref<1x128xf32, #tpu.memory_space<vmem>>, %arg6: memref<384x128xf32, #tpu.memory_space<vmem>>, %arg7: memref<384x128xf32, #tpu.memory_space<vmem>>) attributes {dimension_semantics = [#tpu.dimension_semantics<parallel>, #tpu.dimension_semantics<parallel>, #tpu.dimension_semantics<parallel>], iteration_bounds = array<i64: 2, 1, 1>, scalar_prefetch = 0 : i64, scratch_operands = 0 : i64, tpu.core_type = #tpu.core_type<tc>, window_params = [{transform_indices = @transform_0, window_bounds = array<i64: 1, 1, 456, 4>}, {transform_indices = @transform_1, window_bounds = array<i64: 9, 4, 128>}, {transform_indices = @transform_2, window_bounds = array<i64: 1, 128>}, {transform_indices = @transform_3, window_bounds = array<i64: 384, 128>}, {transform_indices = @transform_4, window_bounds = array<i64: 384, 128>}]} {
    %cst = arith.constant 0.000000e+00 : f32
    %0 = vector.broadcast %cst : f32 to vector<384x128xf32>
    %c0 = arith.constant 0 : index
    %c0_0 = arith.constant 0 : index
    %c0_1 = arith.constant 0 : index
    %c0_2 = arith.constant 0 : index
    %1 = vector.load %arg3[%c0, %c0_0, %c0_1, %c0_2] : memref<1x1x456x4xbf16, #tpu.memory_space<vmem>>, vector<1x1x384x4xbf16>
    %2 = vector.shape_cast %1 : vector<1x1x384x4xbf16> to vector<384x4xbf16>
    %c0_3 = arith.constant 0 : index
    %c0_4 = arith.constant 0 : index
    %c0_5 = arith.constant 0 : index
    %3 = vector.load %arg4[%c0_3, %c0_4, %c0_5] : memref<9x4x128xbf16, #tpu.memory_space<vmem>>, vector<1x4x128xbf16>
    %4 = vector.shape_cast %3 : vector<1x4x128xbf16> to vector<4x128xbf16>
    %cst_6 = arith.constant dense<0.000000e+00> : vector<384x128xf32>
    %5 = tpu.matmul %2, %4, %cst_6 {dimension_numbers = #tpu.dot_dimension_numbers<[1], [0], [0], [1], [0, 0, 1, 1], [], []>} : vector<384x4xbf16>, vector<4x128xbf16>, vector<384x128xf32> -> vector<384x128xf32>
    %6 = arith.addf %0, %5 : vector<384x128xf32>
    %c0_7 = arith.constant 0 : index
    %c0_8 = arith.constant 0 : index
    %c1 = arith.constant 1 : index
    %c0_9 = arith.constant 0 : index
    %7 = vector.load %arg3[%c0_7, %c0_8, %c1, %c0_9] : memref<1x1x456x4xbf16, #tpu.memory_space<vmem>>, vector<1x1x384x4xbf16>
    %8 = vector.shape_cast %7 : vector<1x1x384x4xbf16> to vector<384x4xbf16>
    %c1_10 = arith.constant 1 : index
    %c0_11 = arith.constant 0 : index
    %c0_12 = arith.constant 0 : index
    %9 = vector.load %arg4[%c1_10, %c0_11, %c0_12] : memref<9x4x128xbf16, #tpu.memory_space<vmem>>, vector<1x4x128xbf16>
    %10 = vector.shape_cast %9 : vector<1x4x128xbf16> to vector<4x128xbf16>
    %cst_13 = arith.constant dense<0.000000e+00> : vector<384x128xf32>
    %11 = tpu.matmul %8, %10, %cst_13 {dimension_numbers = #tpu.dot_dimension_numbers<[1], [0], [0], [1], [0, 0, 1, 1], [], []>} : vector<384x4xbf16>, vector<4x128xbf16>, vector<384x128xf32> -> vector<384x128xf32>
    %12 = arith.addf %6, %11 : vector<384x128xf32>
    %c0_14 = arith.constant 0 : index
    %c0_15 = arith.constant 0 : index
    %c2 = arith.constant 2 : index
    %c0_16 = arith.constant 0 : index
    %13 = vector.load %arg3[%c0_14, %c0_15, %c2, %c0_16] : memref<1x1x456x4xbf16, #tpu.memory_space<vmem>>, vector<1x1x384x4xbf16>
    %14 = vector.shape_cast %13 : vector<1x1x384x4xbf16> to vector<384x4xbf16>
    %c2_17 = arith.constant 2 : index
    %c0_18 = arith.constant 0 : index
    %c0_19 = arith.constant 0 : index
    %15 = vector.load %arg4[%c2_17, %c0_18, %c0_19] : memref<9x4x128xbf16, #tpu.memory_space<vmem>>, vector<1x4x128xbf16>
    %16 = vector.shape_cast %15 : vector<1x4x128xbf16> to vector<4x128xbf16>
    %cst_20 = arith.constant dense<0.000000e+00> : vector<384x128xf32>
    %17 = tpu.matmul %14, %16, %cst_20 {dimension_numbers = #tpu.dot_dimension_numbers<[1], [0], [0], [1], [0, 0, 1, 1], [], []>} : vector<384x4xbf16>, vector<4x128xbf16>, vector<384x128xf32> -> vector<384x128xf32>
    %18 = arith.addf %12, %17 : vector<384x128xf32>
    %c0_21 = arith.constant 0 : index
    %c0_22 = arith.constant 0 : index
    %c24 = arith.constant 24 : index
    %c0_23 = arith.constant 0 : index
    %19 = vector.load %arg3[%c0_21, %c0_22, %c24, %c0_23] : memref<1x1x456x4xbf16, #tpu.memory_space<vmem>>, vector<1x1x384x4xbf16>
    %20 = vector.shape_cast %19 : vector<1x1x384x4xbf16> to vector<384x4xbf16>
    %c3 = arith.constant 3 : index
    %c0_24 = arith.constant 0 : index
    %c0_25 = arith.constant 0 : index
    %21 = vector.load %arg4[%c3, %c0_24, %c0_25] : memref<9x4x128xbf16, #tpu.memory_space<vmem>>, vector<1x4x128xbf16>
    %22 = vector.shape_cast %21 : vector<1x4x128xbf16> to vector<4x128xbf16>
    %cst_26 = arith.constant dense<0.000000e+00> : vector<384x128xf32>
    %23 = tpu.matmul %20, %22, %cst_26 {dimension_numbers = #tpu.dot_dimension_numbers<[1], [0], [0], [1], [0, 0, 1, 1], [], []>} : vector<384x4xbf16>, vector<4x128xbf16>, vector<384x128xf32> -> vector<384x128xf32>
    %24 = arith.addf %18, %23 : vector<384x128xf32>
    %c0_27 = arith.constant 0 : index
    %c0_28 = arith.constant 0 : index
    %c25 = arith.constant 25 : index
    %c0_29 = arith.constant 0 : index
    %25 = vector.load %arg3[%c0_27, %c0_28, %c25, %c0_29] : memref<1x1x456x4xbf16, #tpu.memory_space<vmem>>, vector<1x1x384x4xbf16>
    %26 = vector.shape_cast %25 : vector<1x1x384x4xbf16> to vector<384x4xbf16>
    %c4 = arith.constant 4 : index
    %c0_30 = arith.constant 0 : index
    %c0_31 = arith.constant 0 : index
    %27 = vector.load %arg4[%c4, %c0_30, %c0_31] : memref<9x4x128xbf16, #tpu.memory_space<vmem>>, vector<1x4x128xbf16>
    %28 = vector.shape_cast %27 : vector<1x4x128xbf16> to vector<4x128xbf16>
    %cst_32 = arith.constant dense<0.000000e+00> : vector<384x128xf32>
    %29 = tpu.matmul %26, %28, %cst_32 {dimension_numbers = #tpu.dot_dimension_numbers<[1], [0], [0], [1], [0, 0, 1, 1], [], []>} : vector<384x4xbf16>, vector<4x128xbf16>, vector<384x128xf32> -> vector<384x128xf32>
    %30 = arith.addf %24, %29 : vector<384x128xf32>
    %c0_33 = arith.constant 0 : index
    %c0_34 = arith.constant 0 : index
    %c26 = arith.constant 26 : index
    %c0_35 = arith.constant 0 : index
    %31 = vector.load %arg3[%c0_33, %c0_34, %c26, %c0_35] : memref<1x1x456x4xbf16, #tpu.memory_space<vmem>>, vector<1x1x384x4xbf16>
    %32 = vector.shape_cast %31 : vector<1x1x384x4xbf16> to vector<384x4xbf16>
    %c5 = arith.constant 5 : index
    %c0_36 = arith.constant 0 : index
    %c0_37 = arith.constant 0 : index
    %33 = vector.load %arg4[%c5, %c0_36, %c0_37] : memref<9x4x128xbf16, #tpu.memory_space<vmem>>, vector<1x4x128xbf16>
    %34 = vector.shape_cast %33 : vector<1x4x128xbf16> to vector<4x128xbf16>
    %cst_38 = arith.constant dense<0.000000e+00> : vector<384x128xf32>
    %35 = tpu.matmul %32, %34, %cst_38 {dimension_numbers = #tpu.dot_dimension_numbers<[1], [0], [0], [1], [0, 0, 1, 1], [], []>} : vector<384x4xbf16>, vector<4x128xbf16>, vector<384x128xf32> -> vector<384x128xf32>
    %36 = arith.addf %30, %35 : vector<384x128xf32>
    %c0_39 = arith.constant 0 : index
    %c0_40 = arith.constant 0 : index
    %c48 = arith.constant 48 : index
    %c0_41 = arith.constant 0 : index
    %37 = vector.load %arg3[%c0_39, %c0_40, %c48, %c0_41] : memref<1x1x456x4xbf16, #tpu.memory_space<vmem>>, vector<1x1x384x4xbf16>
    %38 = vector.shape_cast %37 : vector<1x1x384x4xbf16> to vector<384x4xbf16>
    %c6 = arith.constant 6 : index
    %c0_42 = arith.constant 0 : index
    %c0_43 = arith.constant 0 : index
    %39 = vector.load %arg4[%c6, %c0_42, %c0_43] : memref<9x4x128xbf16, #tpu.memory_space<vmem>>, vector<1x4x128xbf16>
    %40 = vector.shape_cast %39 : vector<1x4x128xbf16> to vector<4x128xbf16>
    %cst_44 = arith.constant dense<0.000000e+00> : vector<384x128xf32>
    %41 = tpu.matmul %38, %40, %cst_44 {dimension_numbers = #tpu.dot_dimension_numbers<[1], [0], [0], [1], [0, 0, 1, 1], [], []>} : vector<384x4xbf16>, vector<4x128xbf16>, vector<384x128xf32> -> vector<384x128xf32>
    %42 = arith.addf %36, %41 : vector<384x128xf32>
    %c0_45 = arith.constant 0 : index
    %c0_46 = arith.constant 0 : index
    %c49 = arith.constant 49 : index
    %c0_47 = arith.constant 0 : index
    %43 = vector.load %arg3[%c0_45, %c0_46, %c49, %c0_47] : memref<1x1x456x4xbf16, #tpu.memory_space<vmem>>, vector<1x1x384x4xbf16>
    %44 = vector.shape_cast %43 : vector<1x1x384x4xbf16> to vector<384x4xbf16>
    %c7 = arith.constant 7 : index
    %c0_48 = arith.constant 0 : index
    %c0_49 = arith.constant 0 : index
    %45 = vector.load %arg4[%c7, %c0_48, %c0_49] : memref<9x4x128xbf16, #tpu.memory_space<vmem>>, vector<1x4x128xbf16>
    %46 = vector.shape_cast %45 : vector<1x4x128xbf16> to vector<4x128xbf16>
    %cst_50 = arith.constant dense<0.000000e+00> : vector<384x128xf32>
    %47 = tpu.matmul %44, %46, %cst_50 {dimension_numbers = #tpu.dot_dimension_numbers<[1], [0], [0], [1], [0, 0, 1, 1], [], []>} : vector<384x4xbf16>, vector<4x128xbf16>, vector<384x128xf32> -> vector<384x128xf32>
    %48 = arith.addf %42, %47 : vector<384x128xf32>
    %c0_51 = arith.constant 0 : index
    %c0_52 = arith.constant 0 : index
    %c50 = arith.constant 50 : index
    %c0_53 = arith.constant 0 : index
    %49 = vector.load %arg3[%c0_51, %c0_52, %c50, %c0_53] : memref<1x1x456x4xbf16, #tpu.memory_space<vmem>>, vector<1x1x384x4xbf16>
    %50 = vector.shape_cast %49 : vector<1x1x384x4xbf16> to vector<384x4xbf16>
    %c8 = arith.constant 8 : index
    %c0_54 = arith.constant 0 : index
    %c0_55 = arith.constant 0 : index
    %51 = vector.load %arg4[%c8, %c0_54, %c0_55] : memref<9x4x128xbf16, #tpu.memory_space<vmem>>, vector<1x4x128xbf16>
    %52 = vector.shape_cast %51 : vector<1x4x128xbf16> to vector<4x128xbf16>
    %cst_56 = arith.constant dense<0.000000e+00> : vector<384x128xf32>
    %53 = tpu.matmul %50, %52, %cst_56 {dimension_numbers = #tpu.dot_dimension_numbers<[1], [0], [0], [1], [0, 0, 1, 1], [], []>} : vector<384x4xbf16>, vector<4x128xbf16>, vector<384x128xf32> -> vector<384x128xf32>
    %54 = arith.addf %48, %53 : vector<384x128xf32>
    %c0_57 = arith.constant 0 : index
    %c0_58 = arith.constant 0 : index
    %55 = vector.load %arg5[%c0_57, %c0_58] : memref<1x128xf32, #tpu.memory_space<vmem>>, vector<1x128xf32>
    %56 = vector.broadcast %55 : vector<1x128xf32> to vector<384x128xf32>
    %57 = arith.addf %54, %56 : vector<384x128xf32>
    %cst_59 = arith.constant 0.000000e+00 : f32
    %58 = vector.broadcast %cst_59 : f32 to vector<384x128xf32>
    %59 = arith.maximumf %57, %58 : vector<384x128xf32>
    %c0_60 = arith.constant 0 : index
    %c0_61 = arith.constant 0 : index
    %60 = vector.load %arg6[%c0_60, %c0_61] : memref<384x128xf32, #tpu.memory_space<vmem>>, vector<384x128xf32>
    %61 = arith.addf %59, %60 : vector<384x128xf32>
    %c0_62 = arith.constant 0 : index
    %c0_63 = arith.constant 0 : index
    %62 = vector.load %arg7[%c0_62, %c0_63] : memref<384x128xf32, #tpu.memory_space<vmem>>, vector<384x128xf32>
    tpu.vector_store %arg7[%c0_62, %c0_63], %61 {strides = array<i32>} : memref<384x128xf32, #tpu.memory_space<vmem>>, vector<384x128xf32>,
    return
  }
  func.func @transform_0(%arg0: i32, %arg1: i32, %arg2: i32) -> (i32, i32, i32, i32) {
    %c0_i32 = arith.constant 0 : i32
    %c0_i32_0 = arith.constant 0 : i32
    %c0_i32_1 = arith.constant 0 : i32
    return %arg0, %arg1, %c0_i32, %c0_i32_0 : i32, i32, i32, i32
  }
  func.func @transform_1(%arg0: i32, %arg1: i32, %arg2: i32) -> (i32, i32, i32) {
    %c0_i32 = arith.constant 0 : i32
    %c0_i32_0 = arith.constant 0 : i32
    %c0_i32_1 = arith.constant 0 : i32
    return %c0_i32, %c0_i32_0, %arg2 : i32, i32, i32
  }
  func.func @transform_2(%arg0: i32, %arg1: i32, %arg2: i32) -> (i32, i32) {
    %c0_i32 = arith.constant 0 : i32
    %c0_i32_0 = arith.constant 0 : i32
    return %c0_i32, %arg2 : i32, i32
  }
  func.func @transform_3(%arg0: i32, %arg1: i32, %arg2: i32) -> (i32, i32) {
    %c1_i32 = arith.constant 1 : i32
    %0 = arith.muli %arg0, %c1_i32 : i32
    %1 = arith.addi %0, %arg1 : i32
    %c0_i32 = arith.constant 0 : i32
    return %1, %arg2 : i32, i32
  }
  func.func @transform_4(%arg0: i32, %arg1: i32, %arg2: i32) -> (i32, i32) {
    %c1_i32 = arith.constant 1 : i32
    %0 = arith.muli %arg0, %c1_i32 : i32
    %1 = arith.addi %0, %arg1 : i32
    %c0_i32 = arith.constant 0 : i32
    return %1, %arg2 : i32, i32
  }
}

</mosaic_0001>

<llo_original>
// kernel: conv_bn_act.1
$region0: #{conv_bn_act.1}
  #allocation0 [shape = 'u32[]', space=smem, size = 0x4, offset = 0x4, fixed_abs, tag = 'smem constant byte address 0x4 - core index']
  #allocation1 [shape = 'u32[144,128]{1,0:T(1,128)}', space=vmem, size = 0x12000, scoped, tag = 'internal scratch']
  %s0 = inlined_call_operand.vmem [shape: bf16[2,1,456,4], index: 0, kind: input, shape index: {}]
  %s1 = inlined_call_operand.vmem [shape: bf16[9,4,128], index: 1, kind: input, shape index: {}]
  %s2 = inlined_call_operand.vmem [shape: f32[1,128], index: 2, kind: input, shape index: {}]
  %s3 = inlined_call_operand.vmem [shape: f32[768,128], index: 3, kind: input, shape index: {}]
  %s4 = inlined_call_operand.vmem [shape: f32[768,128], index: 4, kind: output, shape index: {}]
  %s5 = sld [smem:[#allocation0]]
  $region49: #{conv_bn_act.1} parent=0
    _
  %s7 = ssub.s32 1, %s5
  %s8 = scalar_select 0, %s7, %s5
  loop: start=0, step=1, limit=4
  $region2: #{conv_bn_act.1} parent=0 // loop_pre_header
    _
  $region3: #{conv_bn_act.1} parent=0 // loop_header
    %s10 = sphi 0, %s14
    %p11 = scmp.ge.s32.totalorder %s10, 4
    %s17 = sphi 0, %s36
    %s18 = sphi 0, %s32
    %s19 = sphi 0, %s28
    %s20 = sphi 0, %s17
    %s21 = sphi 0, %s18
    %s22 = sphi 0, %s19
    %s23 = sphi 0, %s20
    %s24 = sphi 0, %s21
    %s25 = sphi 0, %s22
    %s41 = sphi 0, %s43
    %s44 = sphi 0, %s41
    %s45 = sphi 0, %s44
    %s61 = sphi 0, %s45
    %s67 = sphi 0, %s69
    %s70 = sphi 0, %s67
    %s71 = sphi 0, %s70
    %s87 = sphi 0, %s71
    %s93 = sphi 0, %s95
    %s96 = sphi 0, %s93
    %s97 = sphi 0, %s96
    %s113 = sphi 0, %s97
    %s123 = sphi 0, %s125
    %s126 = sphi 0, %s123
    %s127 = sphi 0, %s126
    %s143 = sphi 0, %s127
    %s153 = sphi 0, %s155
    %s156 = sphi 0, %s153
    %s157 = sphi 0, %s156
    %s173 = sphi 0, %s157
  $region4: #{conv_bn_act.1} parent=0 // loop_header_branch
    %13 = sbr.rel (%p11) target = $region8
  $region5: #{conv_bn_act.1} parent=0 // loop_body
    %s15 = ssub.s32 %s10, 1
    %s16 = ssub.s32 %s10, 2
    %s26 = sadd.s32 1, %s19
    %p27 = scmp.ge.s32.totalorder %s26, 1
    %s28 = scalar_select %p27, 0, %s26
    %s29 = sadd.s32 1, %s18
    %s30 = scalar_select %p27, %s29, %s18
    %p31 = scmp.ge.s32.totalorder %s30, 1
    %s32 = scalar_select %p31, 0, %s30
    %s33 = sadd.s32 1, %s17
    %s34 = scalar_select %p31, %s33, %s17
    %p35 = scmp.ge.s32.totalorder %s34, 2
    %s36 = scalar_select %p35, 0, %s34
    %s37 = ssub.s32 %s17, %s36
    %s38 = ssub.s32 %s18, %s32
    %s39 = sor.u32 %s37, %s38
    %p40 = scmp.eq.s32.totalorder %s39, 0
    %s42 = sadd.s32 %s41, 1
    %s43 = scalar_select %p40, %s41, %s42
    %p46 = pneg %p40
    %p47 = scmp.eq.s32.totalorder %s10, 1
    %p48 = por %p46, %p47
    %p49 = scmp.ne.s32.totalorder %s41, %s44
    %p50 = scmp.eq.s32.totalorder %s10, 0
    %p51 = por %p49, %p50
    %p52 = scmp.ne.s32.totalorder %s41, %s44
    %p53 = scmp.eq.s32.totalorder %s15, 1
    %p54 = por %p52, %p53
    %p55 = scmp.ne.s32.totalorder %s44, %s45
    %p56 = scmp.eq.s32.totalorder %s15, 0
    %p57 = por %p55, %p56
    %p58 = scmp.ne.s32.totalorder %s44, %s45
    %p59 = scmp.eq.s32.totalorder %s16, 1
    %p60 = por %p58, %p59
    %p62 = scmp.ne.s32.totalorder %s45, %s61
    %p63 = scmp.eq.s32.totalorder %s16, 0
    %p64 = por %p62, %p63
    %s65 = ssub.s32 %s19, %s28
    %p66 = scmp.eq.s32.totalorder %s65, 0
    %s68 = sadd.s32 %s67, 1
    %s69 = scalar_select %p66, %s67, %s68
    %p72 = pneg %p66
    %p73 = scmp.eq.s32.totalorder %s10, 1
    %p74 = por %p72, %p73
    %p75 = scmp.ne.s32.totalorder %s67, %s70
    %p76 = scmp.eq.s32.totalorder %s10, 0
    %p77 = por %p75, %p76
    %p78 = scmp.ne.s32.totalorder %s67, %s70
    %p79 = scmp.eq.s32.totalorder %s15, 1
    %p80 = por %p78, %p79
    %p81 = scmp.ne.s32.totalorder %s70, %s71
    %p82 = scmp.eq.s32.totalorder %s15, 0
    %p83 = por %p81, %p82
    %p84 = scmp.ne.s32.totalorder %s70, %s71
    %p85 = scmp.eq.s32.totalorder %s16, 1
    %p86 = por %p84, %p85
    %p88 = scmp.ne.s32.totalorder %s71, %s87
    %p89 = scmp.eq.s32.totalorder %s16, 0
    %p90 = por %p88, %p89
    %s91 = ssub.s32 %s19, %s28
    %p92 = scmp.eq.s32.totalorder %s91, 0
    %s94 = sadd.s32 %s93, 1
    %s95 = scalar_select %p92, %s93, %s94
    %p98 = pneg %p92
    %p99 = scmp.eq.s32.totalorder %s10, 1
    %p100 = por %p98, %p99
    %p101 = scmp.ne.s32.totalorder %s93, %s96
    %p102 = scmp.eq.s32.totalorder %s10, 0
    %p103 = por %p101, %p102
    %p104 = scmp.ne.s32.totalorder %s93, %s96
    %p105 = scmp.eq.s32.totalorder %s15, 1
    %p106 = por %p104, %p105
    %p107 = scmp.ne.s32.totalorder %s96, %s97
    %p108 = scmp.eq.s32.totalorder %s15, 0
    %p109 = por %p107, %p108
    %p110 = scmp.ne.s32.totalorder %s96, %s97
    %p111 = scmp.eq.s32.totalorder %s16, 1
    %p112 = por %p110, %p111
    %p114 = scmp.ne.s32.totalorder %s97, %s113
    %p115 = scmp.eq.s32.totalorder %s16, 0
    %p116 = por %p114, %p115
    %s117 = sadd.s32 %s17, %s18
    %s118 = sadd.s32 %s36, %s32
    %s119 = ssub.s32 %s117, %s118
    %s120 = ssub.s32 %s19, %s28
    %s121 = sor.u32 %s119, %s120
    %p122 = scmp.eq.s32.totalorder %s121, 0
    %s124 = sadd.s32 %s123, 1
    %s125 = scalar_select %p122, %s123, %s124
    %p128 = pneg %p122
    %p129 = scmp.eq.s32.totalorder %s10, 1
    %p130 = por %p128, %p129
    %p131 = scmp.ne.s32.totalorder %s123, %s126
    %p132 = scmp.eq.s32.totalorder %s10, 0
    %p133 = por %p131, %p132
    %p134 = scmp.ne.s32.totalorder %s123, %s126
    %p135 = scmp.eq.s32.totalorder %s15, 1
    %p136 = por %p134, %p135
    %p137 = scmp.ne.s32.totalorder %s126, %s127
    %p138 = scmp.eq.s32.totalorder %s15, 0
    %p139 = por %p137, %p138
    %p140 = scmp.ne.s32.totalorder %s126, %s127
    %p141 = scmp.eq.s32.totalorder %s16, 1
    %p142 = por %p140, %p141
    %p144 = scmp.ne.s32.totalorder %s127, %s143
    %p145 = scmp.eq.s32.totalorder %s16, 0
    %p146 = por %p144, %p145
    %s147 = sadd.s32 %s17, %s18
    %s148 = sadd.s32 %s36, %s32
    %s149 = ssub.s32 %s147, %s148
    %s150 = ssub.s32 %s19, %s28
    %s151 = sor.u32 %s149, %s150
    %p152 = scmp.eq.s32.totalorder %s151, 0
    %s154 = sadd.s32 %s153, 1
    %s155 = scalar_select %p152, %s153, %s154
    %p158 = pneg %p152
    %p159 = scmp.eq.s32.totalorder %s10, 1
    %p160 = por %p158, %p159
    %p161 = scmp.ne.s32.totalorder %s153, %s156
    %p162 = scmp.eq.s32.totalorder %s10, 0
    %p163 = por %p161, %p162
    %p164 = scmp.ne.s32.totalorder %s153, %s156
    %p165 = scmp.eq.s32.totalorder %s15, 1
    %p166 = por %p164, %p165
    %p167 = scmp.ne.s32.totalorder %s156, %s157
    %p168 = scmp.eq.s32.totalorder %s15, 0
    %p169 = por %p167, %p168
    %p170 = scmp.ne.s32.totalorder %s156, %s157
    %p171 = scmp.eq.s32.totalorder %s16, 1
    %p172 = por %p170, %p171
    %p174 = scmp.ne.s32.totalorder %s157, %s173
    %p175 = scmp.eq.s32.totalorder %s16, 0
    %p176 = por %p174, %p175
    %p177 = scmp.le.s32.totalorder 1, %s10
    %p178 = scmp.lt.s32.totalorder %s10, 3
    %p179 = pnand %p177, %p178
    %p180 = pneg %p179
    // Predicated region
    $region9: #{conv_bn_act.1} parent=5 // pred_check
      _
    $region10: #{conv_bn_act.1} parent=5 // pred_check_branch
      %182 = sbr.rel (%p179) target = $region12
    $region11: #{conv_bn_act.1} parent=5 // pred_region
      %s183 = ssub.s32 %s10, 1
      // Predicated region
      $region13: #{conv_bn_act.1} parent=11 // pred_check
        %p184 = pneg %p83
      $region14: #{conv_bn_act.1} parent=11 // pred_check_branch
        %186 = sbr.rel (%p184) target = $region16
      $region15: #{conv_bn_act.1} parent=11 // pred_region
        %p187 = scmp.lt.s32.totalorder %s22, 0
        %s188 = scalar_select %p187, %s22, 0
        %s189 = smul.addr %s188, 2
        %s190 = scalar_lea.vmem %s1, %s189
      $region16: #{conv_bn_act.1} parent=11 // pred_fallthru
        _
      // Predicated region
      $region17: #{conv_bn_act.1} parent=11 // pred_check
        %p191 = pneg %p109
      $region18: #{conv_bn_act.1} parent=11 // pred_check_branch
        %193 = sbr.rel (%p191) target = $region20
      $region19: #{conv_bn_act.1} parent=11 // pred_region
        %p194 = scmp.lt.s32.totalorder %s22, 0
        %s195 = scalar_select %p194, %s22, 0
        %s196 = scalar_lea.vmem %s2, %s195
      $region20: #{conv_bn_act.1} parent=11 // pred_fallthru
        _
    $region12: #{conv_bn_act.1} parent=5 // pred_fallthru
      _
    %p197 = scmp.lt.s32.totalorder %s10, 2
    // Predicated region
    $region21: #{conv_bn_act.1} parent=5 // pred_check
      %p198 = pneg %p197
    $region22: #{conv_bn_act.1} parent=5 // pred_check_branch
      %200 = sbr.rel (%p198) target = $region24
    $region23: #{conv_bn_act.1} parent=5 // pred_region
      // Predicated region
      $region25: #{conv_bn_act.1} parent=23 // pred_check
        %p201 = pneg %p51
      $region26: #{conv_bn_act.1} parent=23 // pred_check_branch
        %203 = sbr.rel (%p201) target = $region28
      $region27: #{conv_bn_act.1} parent=23 // pred_region
        %p204 = scmp.lt.s32.totalorder %s17, 1
        %s205 = scalar_select %p204, %s17, 1
        %p206 = scmp.lt.s32.totalorder %s18, 0
        %s207 = scalar_select %p206, %s18, 0
        %s208 = smul.addr %s207, 57
        %s209 = smul.addr %s205, 57
        %s210 = sadd.s32 %s208, %s209
        %s211 = smul.addr %s210, 4
        %s212 = scalar_lea.vmem %s0, %s211
      $region28: #{conv_bn_act.1} parent=23 // pred_fallthru
        _
      // Predicated region
      $region29: #{conv_bn_act.1} parent=23 // pred_check
        %p213 = pneg %p133
      $region30: #{conv_bn_act.1} parent=23 // pred_check_branch
        %215 = sbr.rel (%p213) target = $region32
      $region31: #{conv_bn_act.1} parent=23 // pred_region
        %s216 = sadd.s32 %s17, %s18
        %s217 = smul.u32 48, %s216
        %p218 = scmp.lt.s32.totalorder %s217, 95
        %s219 = scalar_select %p218, %s217, 95
        %p220 = scmp.lt.s32.totalorder %s19, 0
        %s221 = scalar_select %p220, %s19, 0
        %s222 = sadd.s32 %s221, %s219
        %s223 = smul.addr %s222, 8
        %s224 = scalar_lea.vmem %s3, %s223
        %s225 = sadd.s32 %s17, %s18
        %s226 = smul.u32 48, %s225
      $region32: #{conv_bn_act.1} parent=23 // pred_fallthru
        _
    $region24: #{conv_bn_act.1} parent=5 // pred_fallthru
      _
    %p227 = scmp.le.s32.totalorder 1, %s10
    %p228 = scmp.lt.s32.totalorder %s10, 3
    %p229 = pnand %p227, %p228
    %p230 = pneg %p229
    // Predicated region
    $region33: #{conv_bn_act.1} parent=5 // pred_check
      _
    $region34: #{conv_bn_act.1} parent=5 // pred_check_branch
      %232 = sbr.rel (%p229) target = $region36
    $region35: #{conv_bn_act.1} parent=5 // pred_region
      %s233 = ssub.s32 %s10, 1
      %p234 = scmp.lt.s32.totalorder %s20, 1
      %s235 = scalar_select %p234, %s20, 1
      %p236 = scmp.lt.s32.totalorder %s21, 0
      %s237 = scalar_select %p236, %s21, 0
      %s238 = smul.addr %s237, 57
      %s239 = smul.addr %s235, 57
      %s240 = sadd.s32 %s238, %s239
      %s241 = smul.addr %s240, 4
      %s242 = scalar_lea.vmem %s0, %s241
      %p243 = pneg %p57
      %p244 = pneg %p54
      %p245 = scmp.lt.s32.totalorder %s22, 0
      %s246 = scalar_select %p245, %s22, 0
      %s247 = smul.addr %s246, 2
      %s248 = scalar_lea.vmem %s1, %s247
      %p249 = pneg %p83
      %p250 = pneg %p80
      %p251 = scmp.lt.s32.totalorder %s22, 0
      %s252 = scalar_select %p251, %s22, 0
      %s253 = scalar_lea.vmem %s2, %s252
      %p254 = pneg %p109
      %p255 = pneg %p106
      %s256 = sadd.s32 %s20, %s21
      %s257 = smul.u32 48, %s256
      %p258 = scmp.lt.s32.totalorder %s257, 95
      %s259 = scalar_select %p258, %s257, 95
      %p260 = scmp.lt.s32.totalorder %s22, 0
      %s261 = scalar_select %p260, %s22, 0
      %s262 = sadd.s32 %s261, %s259
      %s263 = smul.addr %s262, 8
      %s264 = scalar_lea.vmem %s3, %s263
      %p265 = pneg %p139
      %p266 = pneg %p136
      %p267 = pneg %p169
      %p268 = pneg %p166
      %s269 = sadd.s32 %s20, %s21
      %s270 = smul.u32 48, %s269
      %p271 = scmp.lt.s32.totalorder %s270, 95
      %s272 = scalar_select %p271, %s270, 95
      %p273 = scmp.lt.s32.totalorder %s22, 0
      %s274 = scalar_select %p273, %s22, 0
      %s275 = sadd.s32 %s274, %s272
      %s276 = smul.addr %s275, 8
      %s277 = scalar_lea.vmem %s4, %s276
      %p278 = scmp.lt.s32.totalorder %s20, 1
      %s279 = scalar_select %p278, %s20, 1
      %p280 = scmp.lt.s32.totalorder %s21, 0
      %s281 = scalar_select %p280, %s21, 0
      %s282 = smul.addr %s281, 57
      %s283 = smul.addr %s279, 57
      %s284 = sadd.s32 %s282, %s283
      %s285 = smul.addr %s284, 4
      %s286 = scalar_lea.vmem %s0, %s285
      %p287 = scmp.lt.s32.totalorder %s22, 0
      %s288 = scalar_select %p287, %s22, 0
      %s289 = smul.addr %s288, 2
      %s290 = scalar_lea.vmem %s1, %s289
      %p291 = scmp.lt.s32.totalorder %s22, 0
      %s292 = scalar_select %p291, %s22, 0
      %s293 = scalar_lea.vmem %s2, %s292
      %s294 = sadd.s32 %s20, %s21
      %s295 = smul.u32 48, %s294
      %p296 = scmp.lt.s32.totalorder %s295, 95
      %s297 = scalar_select %p296, %s295, 95
      %p298 = scmp.lt.s32.totalorder %s22, 0
      %s299 = scalar_select %p298, %s22, 0
      %s300 = sadd.s32 %s299, %s297
      %s301 = smul.addr %s300, 8
      %s302 = scalar_lea.vmem %s3, %s301
      %s303 = sadd.s32 %s20, %s21
      %s304 = smul.u32 48, %s303
      %s305 = sadd.s32 %s20, %s21
      %s306 = smul.u32 48, %s305
      %p307 = scmp.lt.s32.totalorder %s306, 95
      %s308 = scalar_select %p307, %s306, 95
      %p309 = scmp.lt.s32.totalorder %s22, 0
      %s310 = scalar_select %p309, %s22, 0
      %s311 = sadd.s32 %s310, %s308
      %s312 = smul.addr %s311, 8
      %s313 = scalar_lea.vmem %s4, %s312
      %s314 = sadd.s32 %s20, %s21
      %s315 = smul.u32 48, %s314
      %v317 = vld [vmem:[%s286] sm:$0xf]
      %v318 = vld [vmem:[%s286 + $0x4] sm:$0xf]
      %v319 = vld [vmem:[%s286 + $0x8] sm:$0xf]
      %v320 = vld [vmem:[%s286 + $0xc] sm:$0xf]
      %v321 = vld [vmem:[%s286 + $0x10] sm:$0xf]
      %v322 = vld [vmem:[%s286 + $0x14] sm:$0xf]
      %v323 = vld [vmem:[%s286 + $0x18] sm:$0xf]
      %v324 = vld [vmem:[%s286 + $0x1c] sm:$0xf]
      %v325 = vld [vmem:[%s286 + $0x20] sm:$0xf]
      %v326 = vld [vmem:[%s286 + $0x24] sm:$0xf]
      %v327 = vld [vmem:[%s286 + $0x28] sm:$0xf]
      %v328 = vld [vmem:[%s286 + $0x2c] sm:$0xf]
      %v329 = vld [vmem:[%s286 + $0x30] sm:$0xf]
      %v330 = vld [vmem:[%s286 + $0x34] sm:$0xf]
      %v331 = vld [vmem:[%s286 + $0x38] sm:$0xf]
      %v332 = vld [vmem:[%s286 + $0x3c] sm:$0xf]
      %v333 = vld [vmem:[%s286 + $0x40] sm:$0xf]
      %v334 = vld [vmem:[%s286 + $0x44] sm:$0xf]
      %v335 = vld [vmem:[%s286 + $0x48] sm:$0xf]
      %v336 = vld [vmem:[%s286 + $0x4c] sm:$0xf]
      %v337 = vld [vmem:[%s286 + $0x50] sm:$0xf]
      %v338 = vld [vmem:[%s286 + $0x54] sm:$0xf]
      %v339 = vld [vmem:[%s286 + $0x58] sm:$0xf]
      %v340 = vld [vmem:[%s286 + $0x5c] sm:$0xf]
      %v341 = vld [vmem:[%s286 + $0x60] sm:$0xf]
      %v342 = vld [vmem:[%s286 + $0x64] sm:$0xf]
      %v343 = vld [vmem:[%s286 + $0x68] sm:$0xf]
      %v344 = vld [vmem:[%s286 + $0x6c] sm:$0xf]
      %v345 = vld [vmem:[%s286 + $0x70] sm:$0xf]
      %v346 = vld [vmem:[%s286 + $0x74] sm:$0xf]
      %v347 = vld [vmem:[%s286 + $0x78] sm:$0xf]
      %v348 = vld [vmem:[%s286 + $0x7c] sm:$0xf]
      %v349 = vld [vmem:[%s286 + $0x80] sm:$0xf]
      %v350 = vld [vmem:[%s286 + $0x84] sm:$0xf]
      %v351 = vld [vmem:[%s286 + $0x88] sm:$0xf]
      %v352 = vld [vmem:[%s286 + $0x8c] sm:$0xf]
      %v353 = vld [vmem:[%s286 + $0x90] sm:$0xf]
      %v354 = vld [vmem:[%s286 + $0x94] sm:$0xf]
      %v355 = vld [vmem:[%s286 + $0x98] sm:$0xf]
      %v356 = vld [vmem:[%s286 + $0x9c] sm:$0xf]
      %v357 = vld [vmem:[%s286 + $0xa0] sm:$0xf]
      %v358 = vld [vmem:[%s286 + $0xa4] sm:$0xf]
      %v359 = vld [vmem:[%s286 + $0xa8] sm:$0xf]
      %v360 = vld [vmem:[%s286 + $0xac] sm:$0xf]
      %v361 = vld [vmem:[%s286 + $0xb0] sm:$0xf]
      %v362 = vld [vmem:[%s286 + $0xb4] sm:$0xf]
      %v363 = vld [vmem:[%s286 + $0xb8] sm:$0xf]
      %v364 = vld [vmem:[%s286 + $0xbc] sm:$0xf]
      %v365 = vld [vmem:[%s290] sm:$0x3]
      %v366 = vld [vmem:[%s286 + $0xc0] sm:$0x1]
      %s367 = scalar_lea.vmem %s290, 2
      %v368 = vld [vmem:[%s367] sm:$0x3]
      %v418 = vunpack.c.l.b16 %v317
      %v419 = vunpack.c.l.b16 %v318
      %v420 = vunpack.c.l.b16 %v319
      %v421 = vunpack.c.l.b16 %v320
      %v422 = vunpack.c.l.b16 %v321
      %v423 = vunpack.c.l.b16 %v322
      %v424 = vunpack.c.l.b16 %v323
      %v425 = vunpack.c.l.b16 %v324
      %v426 = vunpack.c.l.b16 %v325
      %v427 = vunpack.c.l.b16 %v326
      %v428 = vunpack.c.l.b16 %v327
      %v429 = vunpack.c.l.b16 %v328
      %v430 = vunpack.c.l.b16 %v329
      %v431 = vunpack.c.l.b16 %v330
      %v432 = vunpack.c.l.b16 %v331
      %v433 = vunpack.c.l.b16 %v332
      %v434 = vunpack.c.l.b16 %v333
      %v435 = vunpack.c.l.b16 %v334
      %v436 = vunpack.c.l.b16 %v335
      %v437 = vunpack.c.l.b16 %v336
      %v438 = vunpack.c.l.b16 %v337
      %v439 = vunpack.c.l.b16 %v338
      %v440 = vunpack.c.l.b16 %v339
      %v441 = vunpack.c.l.b16 %v340
      %v442 = vunpack.c.l.b16 %v341
      %v443 = vunpack.c.l.b16 %v342
      %v444 = vunpack.c.l.b16 %v343
      %v445 = vunpack.c.l.b16 %v344
      %v446 = vunpack.c.l.b16 %v345
      %v447 = vunpack.c.l.b16 %v346
      %v448 = vunpack.c.l.b16 %v347
      %v449 = vunpack.c.l.b16 %v348
      %v450 = vunpack.c.l.b16 %v349
      %v451 = vunpack.c.l.b16 %v350
      %v452 = vunpack.c.l.b16 %v351
      %v453 = vunpack.c.l.b16 %v352
      %v454 = vunpack.c.l.b16 %v353
      %v455 = vunpack.c.l.b16 %v354
      %v456 = vunpack.c.l.b16 %v355
      %v457 = vunpack.c.l.b16 %v356
      %v458 = vunpack.c.l.b16 %v357
      %v459 = vunpack.c.l.b16 %v358
      %v460 = vunpack.c.l.b16 %v359
      %v461 = vunpack.c.l.b16 %v360
      %v462 = vunpack.c.l.b16 %v361
      %v463 = vunpack.c.l.b16 %v362
      %v464 = vunpack.c.l.b16 %v363
      %v465 = vunpack.c.l.b16 %v364
      %v466 = vunpack.c.l.b16 %v366
      %v467 = vpack.c.b16 %v419, %v418
      %v468 = vpack.c.b16 %v421, %v420
      %v469 = vpack.c.b16 %v423, %v422
      %v470 = vpack.c.b16 %v425, %v424
      %v471 = vpack.c.b16 %v427, %v426
      %v472 = vpack.c.b16 %v429, %v428
      %v473 = vpack.c.b16 %v431, %v430
      %v474 = vpack.c.b16 %v433, %v432
      %v475 = vpack.c.b16 %v435, %v434
      %v476 = vpack.c.b16 %v437, %v436
      %v477 = vpack.c.b16 %v439, %v438
      %v478 = vpack.c.b16 %v441, %v440
      %v479 = vpack.c.b16 %v443, %v442
      %v480 = vpack.c.b16 %v445, %v444
      %v481 = vpack.c.b16 %v447, %v446
      %v482 = vpack.c.b16 %v449, %v448
      %v483 = vpack.c.b16 %v451, %v450
      %v484 = vpack.c.b16 %v453, %v452
      %v485 = vpack.c.b16 %v455, %v454
      %v486 = vpack.c.b16 %v457, %v456
      %v487 = vpack.c.b16 %v459, %v458
      %v488 = vpack.c.b16 %v461, %v460
      %v489 = vpack.c.b16 %v463, %v462
      %v490 = vpack.c.b16 %v465, %v464
      %v491 = vpack.c.b16 %v466, %v466
      %vm492 = vsmask.f32 7424
      %v494 = vshrl.u32 %v467, 16
      %v496 = vshll.u32 %v467, 16
      %v498 = vrot.slane %v496, 1
      %v499 = vor.u32 %v494, %v498
      %v501 = vshll.u32 %v468, 16
      %v503 = vrot.slane %v501, 1
      %v504 = vsel %vm492, %v499, %v503
      %v505 = vshrl.u32 %v468, 16
      %v507 = vor.u32 %v505, %v503
      %v509 = vshll.u32 %v469, 16
      %v511 = vrot.slane %v509, 1
      %v512 = vsel %vm492, %v507, %v511
      %v513 = vshrl.u32 %v469, 16
      %v515 = vor.u32 %v513, %v511
      %v517 = vshll.u32 %v470, 16
      %v519 = vrot.slane %v517, 1
      %v520 = vsel %vm492, %v515, %v519
      %v521 = vshrl.u32 %v470, 16
      %v523 = vor.u32 %v521, %v519
      %v525 = vshll.u32 %v471, 16
      %v527 = vrot.slane %v525, 1
      %v528 = vsel %vm492, %v523, %v527
      %v529 = vshrl.u32 %v471, 16
      %v531 = vor.u32 %v529, %v527
      %v533 = vshll.u32 %v472, 16
      %v535 = vrot.slane %v533, 1
      %v536 = vsel %vm492, %v531, %v535
      %v537 = vshrl.u32 %v472, 16
      %v539 = vor.u32 %v537, %v535
      %v541 = vshll.u32 %v473, 16
      %v543 = vrot.slane %v541, 1
      %v544 = vsel %vm492, %v539, %v543
      %v545 = vshrl.u32 %v473, 16
      %v547 = vor.u32 %v545, %v543
      %v549 = vshll.u32 %v474, 16
      %v551 = vrot.slane %v549, 1
      %v552 = vsel %vm492, %v547, %v551
      %v553 = vshrl.u32 %v474, 16
      %v555 = vor.u32 %v553, %v551
      %v557 = vshll.u32 %v475, 16
      %v559 = vrot.slane %v557, 1
      %v560 = vsel %vm492, %v555, %v559
      %v561 = vshrl.u32 %v475, 16
      %v563 = vor.u32 %v561, %v559
      %v565 = vshll.u32 %v476, 16
      %v567 = vrot.slane %v565, 1
      %v568 = vsel %vm492, %v563, %v567
      %v569 = vshrl.u32 %v476, 16
      %v571 = vor.u32 %v569, %v567
      %v573 = vshll.u32 %v477, 16
      %v575 = vrot.slane %v573, 1
      %v576 = vsel %vm492, %v571, %v575
      %v577 = vshrl.u32 %v477, 16
      %v579 = vor.u32 %v577, %v575
      %v581 = vshll.u32 %v478, 16
      %v583 = vrot.slane %v581, 1
      %v584 = vsel %vm492, %v579, %v583
      %v585 = vshrl.u32 %v478, 16
      %v587 = vor.u32 %v585, %v583
      %v589 = vshll.u32 %v479, 16
      %v591 = vrot.slane %v589, 1
      %v592 = vsel %vm492, %v587, %v591
      %v593 = vshrl.u32 %v479, 16
      %v595 = vor.u32 %v593, %v591
      %v597 = vshll.u32 %v480, 16
      %v599 = vrot.slane %v597, 1
      %v600 = vsel %vm492, %v595, %v599
      %v601 = vshrl.u32 %v480, 16
      %v603 = vor.u32 %v601, %v599
      %v605 = vshll.u32 %v481, 16
      %v607 = vrot.slane %v605, 1
      %v608 = vsel %vm492, %v603, %v607
      %v609 = vshrl.u32 %v481, 16
      %v611 = vor.u32 %v609, %v607
      %v613 = vshll.u32 %v482, 16
      %v615 = vrot.slane %v613, 1
      %v616 = vsel %vm492, %v611, %v615
      %v617 = vshrl.u32 %v482, 16
      %v619 = vor.u32 %v617, %v615
      %v621 = vshll.u32 %v483, 16
      %v623 = vrot.slane %v621, 1
      %v624 = vsel %vm492, %v619, %v623
      %v625 = vshrl.u32 %v483, 16
      %v627 = vor.u32 %v625, %v623
      %v629 = vshll.u32 %v484, 16
      %v631 = vrot.slane %v629, 1
      %v632 = vsel %vm492, %v627, %v631
      %v633 = vshrl.u32 %v484, 16
      %v635 = vor.u32 %v633, %v631
      %v637 = vshll.u32 %v485, 16
      %v639 = vrot.slane %v637, 1
      %v640 = vsel %vm492, %v635, %v639
      %v641 = vshrl.u32 %v485, 16
      %v643 = vor.u32 %v641, %v639
      %v645 = vshll.u32 %v486, 16
      %v647 = vrot.slane %v645, 1
      %v648 = vsel %vm492, %v643, %v647
      %v649 = vshrl.u32 %v486, 16
      %v651 = vor.u32 %v649, %v647
      %v653 = vshll.u32 %v487, 16
      %v655 = vrot.slane %v653, 1
      %v656 = vsel %vm492, %v651, %v655
      %v657 = vshrl.u32 %v487, 16
      %v659 = vor.u32 %v657, %v655
      %v661 = vshll.u32 %v488, 16
      %v663 = vrot.slane %v661, 1
      %v664 = vsel %vm492, %v659, %v663
      %v665 = vshrl.u32 %v488, 16
      %v667 = vor.u32 %v665, %v663
      %v669 = vshll.u32 %v489, 16
      %v671 = vrot.slane %v669, 1
      %v672 = vsel %vm492, %v667, %v671
      %v673 = vshrl.u32 %v489, 16
      %v675 = vor.u32 %v673, %v671
      %v677 = vshll.u32 %v490, 16
      %v679 = vrot.slane %v677, 1
      %v680 = vsel %vm492, %v675, %v679
      %v681 = vshrl.u32 %v490, 16
      %v683 = vor.u32 %v681, %v679
      %v685 = vshll.u32 %v491, 16
      %v687 = vrot.slane %v685, 1
      %v688 = vsel %vm492, %v683, %v687
      %vm689 = vcmask 31744
      %v691 = vsel %vm689, %v504, 0
      %v694 = vsel %vm689, %v512, 0
      %v697 = vsel %vm689, %v520, 0
      %v700 = vsel %vm689, %v528, 0
      %v703 = vsel %vm689, %v536, 0
      %v706 = vsel %vm689, %v544, 0
      %v709 = vsel %vm689, %v552, 0
      %v712 = vsel %vm689, %v560, 0
      %v715 = vsel %vm689, %v568, 0
      %v718 = vsel %vm689, %v576, 0
      %v721 = vsel %vm689, %v584, 0
      %v724 = vsel %vm689, %v592, 0
      %v727 = vsel %vm689, %v600, 0
      %v730 = vsel %vm689, %v608, 0
      %v733 = vsel %vm689, %v616, 0
      %v736 = vsel %vm689, %v624, 0
      %v739 = vsel %vm689, %v632, 0
      %v742 = vsel %vm689, %v640, 0
      %v745 = vsel %vm689, %v648, 0
      %v748 = vsel %vm689, %v656, 0
      %v751 = vsel %vm689, %v664, 0
      %v754 = vsel %vm689, %v672, 0
      %v757 = vsel %vm689, %v680, 0
      %v760 = vsel %vm689, %v688, 0
      %vm762 = vcmask 1041408
      %v764 = vsel %vm762, %v368, 0
      %766 = vmatprep.subr.bf16.mxu0 0
      %767 = vmatpush1.bf16.msra.mxu0 %v764
      %768 = vmatprep.subr.bf16.mxu0 0
      %769 = vmatpush1.bf16.msra.mxu0 0
      %770 = vmatprep.subr.bf16.mxu0 0
      %771 = vmatpush1.bf16.msra.mxu0 0
      %772 = vmatprep.subr.bf16.mxu0 0
      %773 = vmatpush1.bf16.msra.mxu0 0
      %774 = vmatprep.subr.bf16.mxu0 0
      %775 = vmatpush1.bf16.msra.mxu0 0
      %776 = vmatprep.subr.bf16.mxu0 0
      %777 = vmatpush1.bf16.msra.mxu0 0
      %778 = vmatprep.subr.bf16.mxu0 0
      %779 = vmatpush1.bf16.msra.mxu0 0
      %780 = vmatprep.subr.bf16.mxu0 0
      %781 = vmatpush1.bf16.msra.mxu0 0
      %782 = vmatprep.subr.bf16.mxu0 0
      %783 = vmatpush1.bf16.msra.mxu0 0
      %784 = vmatprep.subr.bf16.mxu0 0
      %785 = vmatpush1.bf16.msra.mxu0 0
      %786 = vmatprep.subr.bf16.mxu0 0
      %787 = vmatpush1.bf16.msra.mxu0 0
      %788 = vmatprep.subr.bf16.mxu0 0
      %789 = vmatpush1.bf16.msra.mxu0 0
      %790 = vmatprep.subr.bf16.mxu0 0
      %791 = vmatpush1.bf16.msra.mxu0 0
      %792 = vmatprep.subr.bf16.mxu0 0
      %793 = vmatpush1.bf16.msra.mxu0 0
      %794 = vmatprep.subr.bf16.mxu0 0
      %795 = vmatpush1.bf16.msra.mxu0 0
      %796 = vmatprep.subr.bf16.mxu0 0
      %797 = vmatpush1.bf16.msra.mxu0 0
      %798 = vmatprep.mubr.bf16.mxu0 0
      %799 = vmatmul.mubr.bf16.gmra.mrb[0].mxu0 %v691
      %v800 = vpop.f32.mrb[0].mxu0
      %v801 = vadd.f32 0.0, %v800
      %v802 = vpop.f32.mrb[0].mxu0
      %v803 = vpop.f32.mrb[0].mxu0
      %v804 = vadd.f32 0.0, %v803
      %v805 = vpop.f32.mrb[0].mxu0
      %806 = vmatprep.mubr.bf16.mxu0 0
      %807 = vmatmul.mubr.bf16.gmra.mrb[0].mxu0 %v694
      %v808 = vpop.f32.mrb[0].mxu0
      %v809 = vadd.f32 0.0, %v808
      %v810 = vpop.f32.mrb[0].mxu0
      %v811 = vpop.f32.mrb[0].mxu0
      %v812 = vadd.f32 0.0, %v811
      %v813 = vpop.f32.mrb[0].mxu0
      %814 = vmatprep.mubr.bf16.mxu0 0
      %815 = vmatmul.mubr.bf16.gmra.mrb[0].mxu0 %v697
      %v816 = vpop.f32.mrb[0].mxu0
      %v817 = vadd.f32 0.0, %v816
      %v818 = vpop.f32.mrb[0].mxu0
      %v819 = vpop.f32.mrb[0].mxu0
      %v820 = vadd.f32 0.0, %v819
      %v821 = vpop.f32.mrb[0].mxu0
      %822 = vmatprep.mubr.bf16.mxu0 0
      %823 = vmatmul.mubr.bf16.gmra.mrb[0].mxu0 %v700
      %v824 = vpop.f32.mrb[0].mxu0
      %v825 = vadd.f32 0.0, %v824
      %v826 = vpop.f32.mrb[0].mxu0
      %v827 = vpop.f32.mrb[0].mxu0
      %v828 = vadd.f32 0.0, %v827
      %v829 = vpop.f32.mrb[0].mxu0
      %830 = vmatprep.mubr.bf16.mxu0 0
      %831 = vmatmul.mubr.bf16.gmra.mrb[0].mxu0 %v703
      %v832 = vpop.f32.mrb[0].mxu0
      %v833 = vadd.f32 0.0, %v832
      %v834 = vpop.f32.mrb[0].mxu0
      %v835 = vpop.f32.mrb[0].mxu0
      %v836 = vadd.f32 0.0, %v835
      %v837 = vpop.f32.mrb[0].mxu0
      %838 = vmatprep.mubr.bf16.mxu0 0
      %839 = vmatmul.mubr.bf16.gmra.mrb[0].mxu0 %v706
      %v840 = vpop.f32.mrb[0].mxu0
      %v841 = vadd.f32 0.0, %v840
      %v842 = vpop.f32.mrb[0].mxu0
      %v843 = vpop.f32.mrb[0].mxu0
      %v844 = vadd.f32 0.0, %v843
      %v845 = vpop.f32.mrb[0].mxu0
      %846 = vmatprep.mubr.bf16.mxu0 0
      %847 = vmatmul.mubr.bf16.gmra.mrb[0].mxu0 %v709
      %v848 = vpop.f32.mrb[0].mxu0
      %v849 = vadd.f32 0.0, %v848
      %v850 = vpop.f32.mrb[0].mxu0
      %v851 = vpop.f32.mrb[0].mxu0
      %v852 = vadd.f32 0.0, %v851
      %v853 = vpop.f32.mrb[0].mxu0
      %854 = vmatprep.mubr.bf16.mxu0 0
      %855 = vmatmul.mubr.bf16.gmra.mrb[0].mxu0 %v712
      %v856 = vpop.f32.mrb[0].mxu0
      %v857 = vadd.f32 0.0, %v856
      %v858 = vpop.f32.mrb[0].mxu0
      %v859 = vpop.f32.mrb[0].mxu0
      %v860 = vadd.f32 0.0, %v859
      %v861 = vpop.f32.mrb[0].mxu0
      %862 = vmatprep.mubr.bf16.mxu0 0
      %863 = vmatmul.mubr.bf16.gmra.mrb[0].mxu0 %v715
      %v864 = vpop.f32.mrb[0].mxu0
      %v865 = vadd.f32 0.0, %v864
      %v866 = vpop.f32.mrb[0].mxu0
      %v867 = vpop.f32.mrb[0].mxu0
      %v868 = vadd.f32 0.0, %v867
      %v869 = vpop.f32.mrb[0].mxu0
      %870 = vmatprep.mubr.bf16.mxu0 0
      %871 = vmatmul.mubr.bf16.gmra.mrb[0].mxu0 %v718
      %v872 = vpop.f32.mrb[0].mxu0
      %v873 = vadd.f32 0.0, %v872
      %v874 = vpop.f32.mrb[0].mxu0
      %v875 = vpop.f32.mrb[0].mxu0
      %v876 = vadd.f32 0.0, %v875
      %v877 = vpop.f32.mrb[0].mxu0
      %878 = vmatprep.mubr.bf16.mxu0 0
      %879 = vmatmul.mubr.bf16.gmra.mrb[0].mxu0 %v721
      %v880 = vpop.f32.mrb[0].mxu0
      %v881 = vadd.f32 0.0, %v880
      %v882 = vpop.f32.mrb[0].mxu0
      %v883 = vpop.f32.mrb[0].mxu0
      %v884 = vadd.f32 0.0, %v883
      %v885 = vpop.f32.mrb[0].mxu0
      %886 = vmatprep.mubr.bf16.mxu0 0
      %887 = vmatmul.mubr.bf16.gmra.mrb[0].mxu0 %v724
      %v888 = vpop.f32.mrb[0].mxu0
      %v889 = vadd.f32 0.0, %v888
      %v890 = vpop.f32.mrb[0].mxu0
      %v891 = vpop.f32.mrb[0].mxu0
      %v892 = vadd.f32 0.0, %v891
      %v893 = vpop.f32.mrb[0].mxu0
      %894 = vmatprep.mubr.bf16.mxu0 0
      %895 = vmatmul.mubr.bf16.gmra.mrb[0].mxu0 %v727
      %v896 = vpop.f32.mrb[0].mxu0
      %v897 = vadd.f32 0.0, %v896
      %v898 = vpop.f32.mrb[0].mxu0
      %v899 = vpop.f32.mrb[0].mxu0
      %v900 = vadd.f32 0.0, %v899
      %v901 = vpop.f32.mrb[0].mxu0
      %902 = vmatprep.mubr.bf16.mxu0 0
      %903 = vmatmul.mubr.bf16.gmra.mrb[0].mxu0 %v730
      %v904 = vpop.f32.mrb[0].mxu0
      %v905 = vadd.f32 0.0, %v904
      %v906 = vpop.f32.mrb[0].mxu0
      %v907 = vpop.f32.mrb[0].mxu0
      %v908 = vadd.f32 0.0, %v907
      %v909 = vpop.f32.mrb[0].mxu0
      %910 = vmatprep.mubr.bf16.mxu0 0
      %911 = vmatmul.mubr.bf16.gmra.mrb[0].mxu0 %v733
      %v912 = vpop.f32.mrb[0].mxu0
      %v913 = vadd.f32 0.0, %v912
      %v914 = vpop.f32.mrb[0].mxu0
      %v915 = vpop.f32.mrb[0].mxu0
      %v916 = vadd.f32 0.0, %v915
      %v917 = vpop.f32.mrb[0].mxu0
      %918 = vmatprep.mubr.bf16.mxu0 0
      %919 = vmatmul.mubr.bf16.gmra.mrb[0].mxu0 %v736
      %v920 = vpop.f32.mrb[0].mxu0
      %v921 = vadd.f32 0.0, %v920
      %v922 = vpop.f32.mrb[0].mxu0
      %v923 = vpop.f32.mrb[0].mxu0
      %v924 = vadd.f32 0.0, %v923
      %v925 = vpop.f32.mrb[0].mxu0
      %926 = vmatprep.mubr.bf16.mxu0 0
      %927 = vmatmul.mubr.bf16.gmra.mrb[0].mxu0 %v739
      %v928 = vpop.f32.mrb[0].mxu0
      %v929 = vadd.f32 0.0, %v928
      %v930 = vpop.f32.mrb[0].mxu0
      %v931 = vpop.f32.mrb[0].mxu0
      %v932 = vadd.f32 0.0, %v931
      %v933 = vpop.f32.mrb[0].mxu0
      %934 = vmatprep.mubr.bf16.mxu0 0
      %935 = vmatmul.mubr.bf16.gmra.mrb[0].mxu0 %v742
      %v936 = vpop.f32.mrb[0].mxu0
      %v937 = vadd.f32 0.0, %v936
      %v938 = vpop.f32.mrb[0].mxu0
      %v939 = vpop.f32.mrb[0].mxu0
      %v940 = vadd.f32 0.0, %v939
      %v941 = vpop.f32.mrb[0].mxu0
      %942 = vmatprep.mubr.bf16.mxu0 0
      %943 = vmatmul.mubr.bf16.gmra.mrb[0].mxu0 %v745
      %v944 = vpop.f32.mrb[0].mxu0
      %v945 = vadd.f32 0.0, %v944
      %v946 = vpop.f32.mrb[0].mxu0
      %v947 = vpop.f32.mrb[0].mxu0
      %v948 = vadd.f32 0.0, %v947
      %v949 = vpop.f32.mrb[0].mxu0
      %950 = vmatprep.mubr.bf16.mxu0 0
      %951 = vmatmul.mubr.bf16.gmra.mrb[0].mxu0 %v748
      %v952 = vpop.f32.mrb[0].mxu0
      %v953 = vadd.f32 0.0, %v952
      %v954 = vpop.f32.mrb[0].mxu0
      %v955 = vpop.f32.mrb[0].mxu0
      %v956 = vadd.f32 0.0, %v955
      %v957 = vpop.f32.mrb[0].mxu0
      %958 = vmatprep.mubr.bf16.mxu0 0
      %959 = vmatmul.mubr.bf16.gmra.mrb[0].mxu0 %v751
      %v960 = vpop.f32.mrb[0].mxu0
      %v961 = vadd.f32 0.0, %v960
      %v962 = vpop.f32.mrb[0].mxu0
      %v963 = vpop.f32.mrb[0].mxu0
      %v964 = vadd.f32 0.0, %v963
      %v965 = vpop.f32.mrb[0].mxu0
      %966 = vmatprep.mubr.bf16.mxu0 0
      %967 = vmatmul.mubr.bf16.gmra.mrb[0].mxu0 %v754
      %v968 = vpop.f32.mrb[0].mxu0
      %v969 = vadd.f32 0.0, %v968
      %v970 = vpop.f32.mrb[0].mxu0
      %v971 = vpop.f32.mrb[0].mxu0
      %v972 = vadd.f32 0.0, %v971
      %v973 = vpop.f32.mrb[0].mxu0
      %974 = vmatprep.mubr.bf16.mxu0 0
      %975 = vmatmul.mubr.bf16.gmra.mrb[0].mxu0 %v757
      %v976 = vpop.f32.mrb[0].mxu0
      %v977 = vadd.f32 0.0, %v976
      %v978 = vpop.f32.mrb[0].mxu0
      %v979 = vpop.f32.mrb[0].mxu0
      %v980 = vadd.f32 0.0, %v979
      %v981 = vpop.f32.mrb[0].mxu0
      %982 = vmatprep.mubr.bf16.mxu0 0
      %983 = vmatmul.mubr.bf16.gmra.mrb[0].mxu0 %v760
      %v984 = vpop.f32.mrb[0].mxu0
      %v985 = vadd.f32 0.0, %v984
      %v986 = vpop.f32.mrb[0].mxu0
      %v987 = vpop.f32.mrb[0].mxu0
      %v988 = vadd.f32 0.0, %v987
      %v989 = vpop.f32.mrb[0].mxu0
      %990 = vdwg.mxu0
      %v991 = vsel %vm689, %v467, 0
      %v993 = vsel %vm689, %v468, 0
      %v995 = vsel %vm689, %v469, 0
      %v997 = vsel %vm689, %v470, 0
      %v999 = vsel %vm689, %v471, 0
      %v1001 = vsel %vm689, %v472, 0
      %v1003 = vsel %vm689, %v473, 0
      %v1005 = vsel %vm689, %v474, 0
      %v1007 = vsel %vm689, %v475, 0
      %v1009 = vsel %vm689, %v476, 0
      %v1011 = vsel %vm689, %v477, 0
      %v1013 = vsel %vm689, %v478, 0
      %v1015 = vsel %vm689, %v479, 0
      %v1017 = vsel %vm689, %v480, 0
      %v1019 = vsel %vm689, %v481, 0
      %v1021 = vsel %vm689, %v482, 0
      %v1023 = vsel %vm689, %v483, 0
      %v1025 = vsel %vm689, %v484, 0
      %v1027 = vsel %vm689, %v485, 0
      %v1029 = vsel %vm689, %v486, 0
      %v1031 = vsel %vm689, %v487, 0
      %v1033 = vsel %vm689, %v488, 0
      %v1035 = vsel %vm689, %v489, 0
      %v1037 = vsel %vm689, %v490, 0
      %v1040 = vsel %vm762, %v365, 0
      %1042 = vmatprep.subr.bf16.mxu0 0
      %1043 = vmatpush1.bf16.msra.mxu0 %v1040
      %1044 = vmatprep.subr.bf16.mxu0 0
      %1045 = vmatpush1.bf16.msra.mxu0 0
      %1046 = vmatprep.subr.bf16.mxu0 0
      %1047 = vmatpush1.bf16.msra.mxu0 0
      %1048 = vmatprep.subr.bf16.mxu0 0
      %1049 = vmatpush1.bf16.msra.mxu0 0
      %1050 = vmatprep.subr.bf16.mxu0 0
      %1051 = vmatpush1.bf16.msra.mxu0 0
      %1052 = vmatprep.subr.bf16.mxu0 0
      %1053 = vmatpush1.bf16.msra.mxu0 0
      %1054 = vmatprep.subr.bf16.mxu0 0
      %1055 = vmatpush1.bf16.msra.mxu0 0
      %1056 = vmatprep.subr.bf16.mxu0 0
      %1057 = vmatpush1.bf16.msra.mxu0 0
      %1058 = vmatprep.subr.bf16.mxu0 0
      %1059 = vmatpush1.bf16.msra.mxu0 0
      %1060 = vmatprep.subr.bf16.mxu0 0
      %1061 = vmatpush1.bf16.msra.mxu0 0
      %1062 = vmatprep.subr.bf16.mxu0 0
      %1063 = vmatpush1.bf16.msra.mxu0 0
      %1064 = vmatprep.subr.bf16.mxu0 0
      %1065 = vmatpush1.bf16.msra.mxu0 0
      %1066 = vmatprep.subr.bf16.mxu0 0
      %1067 = vmatpush1.bf16.msra.mxu0 0
      %1068 = vmatprep.subr.bf16.mxu0 0
      %1069 = vmatpush1.bf16.msra.mxu0 0
      %1070 = vmatprep.subr.bf16.mxu0 0
      %1071 = vmatpush1.bf16.msra.mxu0 0
      %1072 = vmatprep.subr.bf16.mxu0 0
      %1073 = vmatpush1.bf16.msra.mxu0 0
      %1074 = vmatprep.mubr.bf16.mxu0 0
      %1075 = vmatmul.mubr.bf16.gmra.mrb[0].mxu0 %v991
      %v1076 = vpop.f32.mrb[0].mxu0
      %v1077 = vadd.f32 %v801, %v1076
      %v1078 = vpop.f32.mrb[0].mxu0
      %v1079 = vpop.f32.mrb[0].mxu0
      %v1080 = vadd.f32 %v804, %v1079
      %v1081 = vpop.f32.mrb[0].mxu0
      %1082 = vmatprep.mubr.bf16.mxu0 0
      %1083 = vmatmul.mubr.bf16.gmra.mrb[0].mxu0 %v993
      %v1084 = vpop.f32.mrb[0].mxu0
      %v1085 = vadd.f32 %v809, %v1084
      %v1086 = vpop.f32.mrb[0].mxu0
      %v1087 = vpop.f32.mrb[0].mxu0
      %v1088 = vadd.f32 %v812, %v1087
      %v1089 = vpop.f32.mrb[0].mxu0
      %1090 = vmatprep.mubr.bf16.mxu0 0
      %1091 = vmatmul.mubr.bf16.gmra.mrb[0].mxu0 %v995
      %v1092 = vpop.f32.mrb[0].mxu0
      %v1093 = vadd.f32 %v817, %v1092
      %v1094 = vpop.f32.mrb[0].mxu0
      %v1095 = vpop.f32.mrb[0].mxu0
      %v1096 = vadd.f32 %v820, %v1095
      %v1097 = vpop.f32.mrb[0].mxu0
      %1098 = vmatprep.mubr.bf16.mxu0 0
      %1099 = vmatmul.mubr.bf16.gmra.mrb[0].mxu0 %v997
      %v1100 = vpop.f32.mrb[0].mxu0
      %v1101 = vadd.f32 %v825, %v1100
      %v1102 = vpop.f32.mrb[0].mxu0
      %v1103 = vpop.f32.mrb[0].mxu0
      %v1104 = vadd.f32 %v828, %v1103
      %v1105 = vpop.f32.mrb[0].mxu0
      %1106 = vmatprep.mubr.bf16.mxu0 0
      %1107 = vmatmul.mubr.bf16.gmra.mrb[0].mxu0 %v999
      %v1108 = vpop.f32.mrb[0].mxu0
      %v1109 = vadd.f32 %v833, %v1108
      %v1110 = vpop.f32.mrb[0].mxu0
      %v1111 = vpop.f32.mrb[0].mxu0
      %v1112 = vadd.f32 %v836, %v1111
      %v1113 = vpop.f32.mrb[0].mxu0
      %1114 = vmatprep.mubr.bf16.mxu0 0
      %1115 = vmatmul.mubr.bf16.gmra.mrb[0].mxu0 %v1001
      %v1116 = vpop.f32.mrb[0].mxu0
      %v1117 = vadd.f32 %v841, %v1116
      %v1118 = vpop.f32.mrb[0].mxu0
      %v1119 = vpop.f32.mrb[0].mxu0
      %v1120 = vadd.f32 %v844, %v1119
      %v1121 = vpop.f32.mrb[0].mxu0
      %1122 = vmatprep.mubr.bf16.mxu0 0
      %1123 = vmatmul.mubr.bf16.gmra.mrb[0].mxu0 %v1003
      %v1124 = vpop.f32.mrb[0].mxu0
      %v1125 = vadd.f32 %v849, %v1124
      %v1126 = vpop.f32.mrb[0].mxu0
      %v1127 = vpop.f32.mrb[0].mxu0
      %v1128 = vadd.f32 %v852, %v1127
      %v1129 = vpop.f32.mrb[0].mxu0
      %1130 = vmatprep.mubr.bf16.mxu0 0
      %1131 = vmatmul.mubr.bf16.gmra.mrb[0].mxu0 %v1005
      %v1132 = vpop.f32.mrb[0].mxu0
      %v1133 = vadd.f32 %v857, %v1132
      %v1134 = vpop.f32.mrb[0].mxu0
      %v1135 = vpop.f32.mrb[0].mxu0
      %v1136 = vadd.f32 %v860, %v1135
      %v1137 = vpop.f32.mrb[0].mxu0
      %1138 = vmatprep.mubr.bf16.mxu0 0
      %1139 = vmatmul.mubr.bf16.gmra.mrb[0].mxu0 %v1007
      %v1140 = vpop.f32.mrb[0].mxu0
      %v1141 = vadd.f32 %v865, %v1140
      %v1142 = vpop.f32.mrb[0].mxu0
      %v1143 = vpop.f32.mrb[0].mxu0
      %v1144 = vadd.f32 %v868, %v1143
      %v1145 = vpop.f32.mrb[0].mxu0
      %1146 = vmatprep.mubr.bf16.mxu0 0
      %1147 = vmatmul.mubr.bf16.gmra.mrb[0].mxu0 %v1009
      %v1148 = vpop.f32.mrb[0].mxu0
      %v1149 = vadd.f32 %v873, %v1148
      %v1150 = vpop.f32.mrb[0].mxu0
      %v1151 = vpop.f32.mrb[0].mxu0
      %v1152 = vadd.f32 %v876, %v1151
      %v1153 = vpop.f32.mrb[0].mxu0
      %1154 = vmatprep.mubr.bf16.mxu0 0
      %1155 = vmatmul.mubr.bf16.gmra.mrb[0].mxu0 %v1011
      %v1156 = vpop.f32.mrb[0].mxu0
      %v1157 = vadd.f32 %v881, %v1156
      %v1158 = vpop.f32.mrb[0].mxu0
      %v1159 = vpop.f32.mrb[0].mxu0
      %v1160 = vadd.f32 %v884, %v1159
      %v1161 = vpop.f32.mrb[0].mxu0
      %1162 = vmatprep.mubr.bf16.mxu0 0
      %1163 = vmatmul.mubr.bf16.gmra.mrb[0].mxu0 %v1013
      %v1164 = vpop.f32.mrb[0].mxu0
      %v1165 = vadd.f32 %v889, %v1164
      %v1166 = vpop.f32.mrb[0].mxu0
      %v1167 = vpop.f32.mrb[0].mxu0
      %v1168 = vadd.f32 %v892, %v1167
      %v1169 = vpop.f32.mrb[0].mxu0
      %1170 = vmatprep.mubr.bf16.mxu0 0
      %1171 = vmatmul.mubr.bf16.gmra.mrb[0].mxu0 %v1015
      %v1172 = vpop.f32.mrb[0].mxu0
      %v1173 = vadd.f32 %v897, %v1172
      %v1174 = vpop.f32.mrb[0].mxu0
      %v1175 = vpop.f32.mrb[0].mxu0
      %v1176 = vadd.f32 %v900, %v1175
      %v1177 = vpop.f32.mrb[0].mxu0
      %1178 = vmatprep.mubr.bf16.mxu0 0
      %1179 = vmatmul.mubr.bf16.gmra.mrb[0].mxu0 %v1017
      %v1180 = vpop.f32.mrb[0].mxu0
      %v1181 = vadd.f32 %v905, %v1180
      %v1182 = vpop.f32.mrb[0].mxu0
      %v1183 = vpop.f32.mrb[0].mxu0
      %v1184 = vadd.f32 %v908, %v1183
      %v1185 = vpop.f32.mrb[0].mxu0
      %1186 = vmatprep.mubr.bf16.mxu0 0
      %1187 = vmatmul.mubr.bf16.gmra.mrb[0].mxu0 %v1019
      %v1188 = vpop.f32.mrb[0].mxu0
      %v1189 = vadd.f32 %v913, %v1188
      %v1190 = vpop.f32.mrb[0].mxu0
      %v1191 = vpop.f32.mrb[0].mxu0
      %v1192 = vadd.f32 %v916, %v1191
      %v1193 = vpop.f32.mrb[0].mxu0
      %1194 = vmatprep.mubr.bf16.mxu0 0
      %1195 = vmatmul.mubr.bf16.gmra.mrb[0].mxu0 %v1021
      %v1196 = vpop.f32.mrb[0].mxu0
      %v1197 = vadd.f32 %v921, %v1196
      %v1198 = vpop.f32.mrb[0].mxu0
      %v1199 = vpop.f32.mrb[0].mxu0
      %v1200 = vadd.f32 %v924, %v1199
      %v1201 = vpop.f32.mrb[0].mxu0
      %1202 = vmatprep.mubr.bf16.mxu0 0
      %1203 = vmatmul.mubr.bf16.gmra.mrb[0].mxu0 %v1023
      %v1204 = vpop.f32.mrb[0].mxu0
      %v1205 = vadd.f32 %v929, %v1204
      %v1206 = vpop.f32.mrb[0].mxu0
      %v1207 = vpop.f32.mrb[0].mxu0
      %v1208 = vadd.f32 %v932, %v1207
      %v1209 = vpop.f32.mrb[0].mxu0
      %1210 = vmatprep.mubr.bf16.mxu0 0
      %1211 = vmatmul.mubr.bf16.gmra.mrb[0].mxu0 %v1025
      %v1212 = vpop.f32.mrb[0].mxu0
      %v1213 = vadd.f32 %v937, %v1212
      %v1214 = vpop.f32.mrb[0].mxu0
      %v1215 = vpop.f32.mrb[0].mxu0
      %v1216 = vadd.f32 %v940, %v1215
      %v1217 = vpop.f32.mrb[0].mxu0
      %1218 = vmatprep.mubr.bf16.mxu0 0
      %1219 = vmatmul.mubr.bf16.gmra.mrb[0].mxu0 %v1027
      %v1220 = vpop.f32.mrb[0].mxu0
      %v1221 = vadd.f32 %v945, %v1220
      %v1222 = vpop.f32.mrb[0].mxu0
      %v1223 = vpop.f32.mrb[0].mxu0
      %v1224 = vadd.f32 %v948, %v1223
      %v1225 = vpop.f32.mrb[0].mxu0
      %1226 = vmatprep.mubr.bf16.mxu0 0
      %1227 = vmatmul.mubr.bf16.gmra.mrb[0].mxu0 %v1029
      %v1228 = vpop.f32.mrb[0].mxu0
      %v1229 = vadd.f32 %v953, %v1228
      %v1230 = vpop.f32.mrb[0].mxu0
      %v1231 = vpop.f32.mrb[0].mxu0
      %v1232 = vadd.f32 %v956, %v1231
      %v1233 = vpop.f32.mrb[0].mxu0
      %1234 = vmatprep.mubr.bf16.mxu0 0
      %1235 = vmatmul.mubr.bf16.gmra.mrb[0].mxu0 %v1031
      %v1236 = vpop.f32.mrb[0].mxu0
      %v1237 = vadd.f32 %v961, %v1236
      %v1238 = vpop.f32.mrb[0].mxu0
      %v1239 = vpop.f32.mrb[0].mxu0
      %v1240 = vadd.f32 %v964, %v1239
      %v1241 = vpop.f32.mrb[0].mxu0
      %1242 = vmatprep.mubr.bf16.mxu0 0
      %1243 = vmatmul.mubr.bf16.gmra.mrb[0].mxu0 %v1033
      %v1244 = vpop.f32.mrb[0].mxu0
      %v1245 = vadd.f32 %v969, %v1244
      %v1246 = vpop.f32.mrb[0].mxu0
      %v1247 = vpop.f32.mrb[0].mxu0
      %v1248 = vadd.f32 %v972, %v1247
      %v1249 = vpop.f32.mrb[0].mxu0
      %1250 = vmatprep.mubr.bf16.mxu0 0
      %1251 = vmatmul.mubr.bf16.gmra.mrb[0].mxu0 %v1035
      %v1252 = vpop.f32.mrb[0].mxu0
      %v1253 = vadd.f32 %v977, %v1252
      %v1254 = vpop.f32.mrb[0].mxu0
      %v1255 = vpop.f32.mrb[0].mxu0
      %v1256 = vadd.f32 %v980, %v1255
      %v1257 = vpop.f32.mrb[0].mxu0
      %1258 = vmatprep.mubr.bf16.mxu0 0
      %1259 = vmatmul.mubr.bf16.gmra.mrb[0].mxu0 %v1037
      %v1260 = vpop.f32.mrb[0].mxu0
      %v1261 = vadd.f32 %v985, %v1260
      %v1262 = vpop.f32.mrb[0].mxu0
      %v1263 = vpop.f32.mrb[0].mxu0
      %v1264 = vadd.f32 %v988, %v1263
      %v1265 = vpop.f32.mrb[0].mxu0
      %1266 = vdwg.mxu0
      %v1267 = vld [vmem:[%s286] sm:$0xe]
      %s1268 = scalar_lea.vmem %s290, 4
      %v1269 = vld [vmem:[%s1268] sm:$0x3]
      %v1271 = vunpack.c.l.b16 %v1267
      %v1272 = vpack.c.b16 %v419, %v1271
      %vm1273 = vcmask 1046528
      %v1274 = vrot.slane %v1272, 1
      %v1275 = vrot.slane %v468, 1
      %v1276 = vsel %vm1273, %v1274, %v1275
      %v1277 = vrot.slane %v469, 1
      %v1278 = vsel %vm1273, %v1275, %v1277
      %v1279 = vrot.slane %v470, 1
      %v1280 = vsel %vm1273, %v1277, %v1279
      %v1281 = vrot.slane %v471, 1
      %v1282 = vsel %vm1273, %v1279, %v1281
      %v1283 = vrot.slane %v472, 1
      %v1284 = vsel %vm1273, %v1281, %v1283
      %v1285 = vrot.slane %v473, 1
      %v1286 = vsel %vm1273, %v1283, %v1285
      %v1287 = vrot.slane %v474, 1
      %v1288 = vsel %vm1273, %v1285, %v1287
      %v1289 = vrot.slane %v475, 1
      %v1290 = vsel %vm1273, %v1287, %v1289
      %v1291 = vrot.slane %v476, 1
      %v1292 = vsel %vm1273, %v1289, %v1291
      %v1293 = vrot.slane %v477, 1
      %v1294 = vsel %vm1273, %v1291, %v1293
      %v1295 = vrot.slane %v478, 1
      %v1296 = vsel %vm1273, %v1293, %v1295
      %v1297 = vrot.slane %v479, 1
      %v1298 = vsel %vm1273, %v1295, %v1297
      %v1299 = vrot.slane %v480, 1
      %v1300 = vsel %vm1273, %v1297, %v1299
      %v1301 = vrot.slane %v481, 1
      %v1302 = vsel %vm1273, %v1299, %v1301
      %v1303 = vrot.slane %v482, 1
      %v1304 = vsel %vm1273, %v1301, %v1303
      %v1305 = vrot.slane %v483, 1
      %v1306 = vsel %vm1273, %v1303, %v1305
      %v1307 = vrot.slane %v484, 1
      %v1308 = vsel %vm1273, %v1305, %v1307
      %v1309 = vrot.slane %v485, 1
      %v1310 = vsel %vm1273, %v1307, %v1309
      %v1311 = vrot.slane %v486, 1
      %v1312 = vsel %vm1273, %v1309, %v1311
      %v1313 = vrot.slane %v487, 1
      %v1314 = vsel %vm1273, %v1311, %v1313
      %v1315 = vrot.slane %v488, 1
      %v1316 = vsel %vm1273, %v1313, %v1315
      %v1317 = vrot.slane %v489, 1
      %v1318 = vsel %vm1273, %v1315, %v1317
      %v1319 = vrot.slane %v490, 1
      %v1320 = vsel %vm1273, %v1317, %v1319
      %v1321 = vrot.slane %v491, 1
      %v1322 = vsel %vm1273, %v1319, %v1321
      %v1324 = vsel %vm689, %v1276, 0
      %v1327 = vsel %vm689, %v1278, 0
      %v1330 = vsel %vm689, %v1280, 0
      %v1333 = vsel %vm689, %v1282, 0
      %v1336 = vsel %vm689, %v1284, 0
      %v1339 = vsel %vm689, %v1286, 0
      %v1342 = vsel %vm689, %v1288, 0
      %v1345 = vsel %vm689, %v1290, 0
      %v1348 = vsel %vm689, %v1292, 0
      %v1351 = vsel %vm689, %v1294, 0
      %v1354 = vsel %vm689, %v1296, 0
      %v1357 = vsel %vm689, %v1298, 0
      %v1360 = vsel %vm689, %v1300, 0
      %v1363 = vsel %vm689, %v1302, 0
      %v1366 = vsel %vm689, %v1304, 0
      %v1369 = vsel %vm689, %v1306, 0
      %v1372 = vsel %vm689, %v1308, 0
      %v1375 = vsel %vm689, %v1310, 0
      %v1378 = vsel %vm689, %v1312, 0
      %v1381 = vsel %vm689, %v1314, 0
      %v1384 = vsel %vm689, %v1316, 0
      %v1387 = vsel %vm689, %v1318, 0
      %v1390 = vsel %vm689, %v1320, 0
      %v1393 = vsel %vm689, %v1322, 0
      %v1396 = vsel %vm762, %v1269, 0
      %1398 = vmatprep.subr.bf16.mxu0 0
      %1399 = vmatpush1.bf16.msra.mxu0 %v1396
      %1400 = vmatprep.subr.bf16.mxu0 0
      %1401 = vmatpush1.bf16.msra.mxu0 0
      %1402 = vmatprep.subr.bf16.mxu0 0
      %1403 = vmatpush1.bf16.msra.mxu0 0
      %1404 = vmatprep.subr.bf16.mxu0 0
      %1405 = vmatpush1.bf16.msra.mxu0 0
      %1406 = vmatprep.subr.bf16.mxu0 0
      %1407 = vmatpush1.bf16.msra.mxu0 0
      %1408 = vmatprep.subr.bf16.mxu0 0
      %1409 = vmatpush1.bf16.msra.mxu0 0
      %1410 = vmatprep.subr.bf16.mxu0 0
      %1411 = vmatpush1.bf16.msra.mxu0 0
      %1412 = vmatprep.subr.bf16.mxu0 0
      %1413 = vmatpush1.bf16.msra.mxu0 0
      %1414 = vmatprep.subr.bf16.mxu0 0
      %1415 = vmatpush1.bf16.msra.mxu0 0
      %1416 = vmatprep.subr.bf16.mxu0 0
      %1417 = vmatpush1.bf16.msra.mxu0 0
      %1418 = vmatprep.subr.bf16.mxu0 0
      %1419 = vmatpush1.bf16.msra.mxu0 0
      %1420 = vmatprep.subr.bf16.mxu0 0
      %1421 = vmatpush1.bf16.msra.mxu0 0
      %1422 = vmatprep.subr.bf16.mxu0 0
      %1423 = vmatpush1.bf16.msra.mxu0 0
      %1424 = vmatprep.subr.bf16.mxu0 0
      %1425 = vmatpush1.bf16.msra.mxu0 0
      %1426 = vmatprep.subr.bf16.mxu0 0
      %1427 = vmatpush1.bf16.msra.mxu0 0
      %1428 = vmatprep.subr.bf16.mxu0 0
      %1429 = vmatpush1.bf16.msra.mxu0 0
      %1430 = vmatprep.mubr.bf16.mxu0 0
      %1431 = vmatmul.mubr.bf16.gmra.mrb[0].mxu0 %v1324
      %v1432 = vpop.f32.mrb[0].mxu0
      %v1433 = vadd.f32 0.0, %v1432
      %v1434 = vpop.f32.mrb[0].mxu0
      %v1435 = vpop.f32.mrb[0].mxu0
      %v1436 = vadd.f32 0.0, %v1435
      %v1437 = vpop.f32.mrb[0].mxu0
      %1438 = vmatprep.mubr.bf16.mxu0 0
      %1439 = vmatmul.mubr.bf16.gmra.mrb[0].mxu0 %v1327
      %v1440 = vpop.f32.mrb[0].mxu0
      %v1441 = vadd.f32 0.0, %v1440
      %v1442 = vpop.f32.mrb[0].mxu0
      %v1443 = vpop.f32.mrb[0].mxu0
      %v1444 = vadd.f32 0.0, %v1443
      %v1445 = vpop.f32.mrb[0].mxu0
      %1446 = vmatprep.mubr.bf16.mxu0 0
      %1447 = vmatmul.mubr.bf16.gmra.mrb[0].mxu0 %v1330
      %v1448 = vpop.f32.mrb[0].mxu0
      %v1449 = vadd.f32 0.0, %v1448
      %v1450 = vpop.f32.mrb[0].mxu0
      %v1451 = vpop.f32.mrb[0].mxu0
      %v1452 = vadd.f32 0.0, %v1451
      %v1453 = vpop.f32.mrb[0].mxu0
      %1454 = vmatprep.mubr.bf16.mxu0 0
      %1455 = vmatmul.mubr.bf16.gmra.mrb[0].mxu0 %v1333
      %v1456 = vpop.f32.mrb[0].mxu0
      %v1457 = vadd.f32 0.0, %v1456
      %v1458 = vpop.f32.mrb[0].mxu0
      %v1459 = vpop.f32.mrb[0].mxu0
      %v1460 = vadd.f32 0.0, %v1459
      %v1461 = vpop.f32.mrb[0].mxu0
      %1462 = vmatprep.mubr.bf16.mxu0 0
      %1463 = vmatmul.mubr.bf16.gmra.mrb[0].mxu0 %v1336
      %v1464 = vpop.f32.mrb[0].mxu0
      %v1465 = vadd.f32 0.0, %v1464
      %v1466 = vpop.f32.mrb[0].mxu0
      %v1467 = vpop.f32.mrb[0].mxu0
      %v1468 = vadd.f32 0.0, %v1467
      %v1469 = vpop.f32.mrb[0].mxu0
      %1470 = vmatprep.mubr.bf16.mxu0 0
      %1471 = vmatmul.mubr.bf16.gmra.mrb[0].mxu0 %v1339
      %v1472 = vpop.f32.mrb[0].mxu0
      %v1473 = vadd.f32 0.0, %v1472
      %v1474 = vpop.f32.mrb[0].mxu0
      %v1475 = vpop.f32.mrb[0].mxu0
      %v1476 = vadd.f32 0.0, %v1475
      %v1477 = vpop.f32.mrb[0].mxu0
      %1478 = vmatprep.mubr.bf16.mxu0 0
      %1479 = vmatmul.mubr.bf16.gmra.mrb[0].mxu0 %v1342
      %v1480 = vpop.f32.mrb[0].mxu0
      %v1481 = vadd.f32 0.0, %v1480
      %v1482 = vpop.f32.mrb[0].mxu0
      %v1483 = vpop.f32.mrb[0].mxu0
      %v1484 = vadd.f32 0.0, %v1483
      %v1485 = vpop.f32.mrb[0].mxu0
      %1486 = vmatprep.mubr.bf16.mxu0 0
      %1487 = vmatmul.mubr.bf16.gmra.mrb[0].mxu0 %v1345
      %v1488 = vpop.f32.mrb[0].mxu0
      %v1489 = vadd.f32 0.0, %v1488
      %v1490 = vpop.f32.mrb[0].mxu0
      %v1491 = vpop.f32.mrb[0].mxu0
      %v1492 = vadd.f32 0.0, %v1491
      %v1493 = vpop.f32.mrb[0].mxu0
      %1494 = vmatprep.mubr.bf16.mxu0 0
      %1495 = vmatmul.mubr.bf16.gmra.mrb[0].mxu0 %v1348
      %v1496 = vpop.f32.mrb[0].mxu0
      %v1497 = vadd.f32 0.0, %v1496
      %v1498 = vpop.f32.mrb[0].mxu0
      %v1499 = vpop.f32.mrb[0].mxu0
      %v1500 = vadd.f32 0.0, %v1499
      %v1501 = vpop.f32.mrb[0].mxu0
      %1502 = vmatprep.mubr.bf16.mxu0 0
      %1503 = vmatmul.mubr.bf16.gmra.mrb[0].mxu0 %v1351
      %v1504 = vpop.f32.mrb[0].mxu0
      %v1505 = vadd.f32 0.0, %v1504
      %v1506 = vpop.f32.mrb[0].mxu0
      %v1507 = vpop.f32.mrb[0].mxu0
      %v1508 = vadd.f32 0.0, %v1507
      %v1509 = vpop.f32.mrb[0].mxu0
      %1510 = vmatprep.mubr.bf16.mxu0 0
      %1511 = vmatmul.mubr.bf16.gmra.mrb[0].mxu0 %v1354
      %v1512 = vpop.f32.mrb[0].mxu0
      %v1513 = vadd.f32 0.0, %v1512
      %v1514 = vpop.f32.mrb[0].mxu0
      %v1515 = vpop.f32.mrb[0].mxu0
      %v1516 = vadd.f32 0.0, %v1515
      %v1517 = vpop.f32.mrb[0].mxu0
      %1518 = vmatprep.mubr.bf16.mxu0 0
      %1519 = vmatmul.mubr.bf16.gmra.mrb[0].mxu0 %v1357
      %v1520 = vpop.f32.mrb[0].mxu0
      %v1521 = vadd.f32 0.0, %v1520
      %v1522 = vpop.f32.mrb[0].mxu0
      %v1523 = vpop.f32.mrb[0].mxu0
      %v1524 = vadd.f32 0.0, %v1523
      %v1525 = vpop.f32.mrb[0].mxu0
      %1526 = vmatprep.mubr.bf16.mxu0 0
      %1527 = vmatmul.mubr.bf16.gmra.mrb[0].mxu0 %v1360
      %v1528 = vpop.f32.mrb[0].mxu0
      %v1529 = vadd.f32 0.0, %v1528
      %v1530 = vpop.f32.mrb[0].mxu0
      %v1531 = vpop.f32.mrb[0].mxu0
      %v1532 = vadd.f32 0.0, %v1531
      %v1533 = vpop.f32.mrb[0].mxu0
      %1534 = vmatprep.mubr.bf16.mxu0 0
      %1535 = vmatmul.mubr.bf16.gmra.mrb[0].mxu0 %v1363
      %v1536 = vpop.f32.mrb[0].mxu0
      %v1537 = vadd.f32 0.0, %v1536
      %v1538 = vpop.f32.mrb[0].mxu0
      %v1539 = vpop.f32.mrb[0].mxu0
      %v1540 = vadd.f32 0.0, %v1539
      %v1541 = vpop.f32.mrb[0].mxu0
      %1542 = vmatprep.mubr.bf16.mxu0 0
      %1543 = vmatmul.mubr.bf16.gmra.mrb[0].mxu0 %v1366
      %v1544 = vpop.f32.mrb[0].mxu0
      %v1545 = vadd.f32 0.0, %v1544
      %v1546 = vpop.f32.mrb[0].mxu0
      %v1547 = vpop.f32.mrb[0].mxu0
      %v1548 = vadd.f32 0.0, %v1547
      %v1549 = vpop.f32.mrb[0].mxu0
      %1550 = vmatprep.mubr.bf16.mxu0 0
      %1551 = vmatmul.mubr.bf16.gmra.mrb[0].mxu0 %v1369
      %v1552 = vpop.f32.mrb[0].mxu0
      %v1553 = vadd.f32 0.0, %v1552
      %v1554 = vpop.f32.mrb[0].mxu0
      %v1555 = vpop.f32.mrb[0].mxu0
      %v1556 = vadd.f32 0.0, %v1555
      %v1557 = vpop.f32.mrb[0].mxu0
      %1558 = vmatprep.mubr.bf16.mxu0 0
      %1559 = vmatmul.mubr.bf16.gmra.mrb[0].mxu0 %v1372
      %v1560 = vpop.f32.mrb[0].mxu0
      %v1561 = vadd.f32 0.0, %v1560
      %v1562 = vpop.f32.mrb[0].mxu0
      %v1563 = vpop.f32.mrb[0].mxu0
      %v1564 = vadd.f32 0.0, %v1563
      %v1565 = vpop.f32.mrb[0].mxu0
      %1566 = vmatprep.mubr.bf16.mxu0 0
      %1567 = vmatmul.mubr.bf16.gmra.mrb[0].mxu0 %v1375
      %v1568 = vpop.f32.mrb[0].mxu0
      %v1569 = vadd.f32 0.0, %v1568
      %v1570 = vpop.f32.mrb[0].mxu0
      %v1571 = vpop.f32.mrb[0].mxu0
      %v1572 = vadd.f32 0.0, %v1571
      %v1573 = vpop.f32.mrb[0].mxu0
      %1574 = vmatprep.mubr.bf16.mxu0 0
      %1575 = vmatmul.mubr.bf16.gmra.mrb[0].mxu0 %v1378
      %v1576 = vpop.f32.mrb[0].mxu0
      %v1577 = vadd.f32 0.0, %v1576
      %v1578 = vpop.f32.mrb[0].mxu0
      %v1579 = vpop.f32.mrb[0].mxu0
      %v1580 = vadd.f32 0.0, %v1579
      %v1581 = vpop.f32.mrb[0].mxu0
      %1582 = vmatprep.mubr.bf16.mxu0 0
      %1583 = vmatmul.mubr.bf16.gmra.mrb[0].mxu0 %v1381
      %v1584 = vpop.f32.mrb[0].mxu0
      %v1585 = vadd.f32 0.0, %v1584
      %v1586 = vpop.f32.mrb[0].mxu0
      %v1587 = vpop.f32.mrb[0].mxu0
      %v1588 = vadd.f32 0.0, %v1587
      %v1589 = vpop.f32.mrb[0].mxu0
      %1590 = vmatprep.mubr.bf16.mxu0 0
      %1591 = vmatmul.mubr.bf16.gmra.mrb[0].mxu0 %v1384
      %v1592 = vpop.f32.mrb[0].mxu0
      %v1593 = vadd.f32 0.0, %v1592
      %v1594 = vpop.f32.mrb[0].mxu0
      %v1595 = vpop.f32.mrb[0].mxu0
      %v1596 = vadd.f32 0.0, %v1595
      %v1597 = vpop.f32.mrb[0].mxu0
      %1598 = vmatprep.mubr.bf16.mxu0 0
      %1599 = vmatmul.mubr.bf16.gmra.mrb[0].mxu0 %v1387
      %v1600 = vpop.f32.mrb[0].mxu0
      %v1601 = vadd.f32 0.0, %v1600
      %v1602 = vpop.f32.mrb[0].mxu0
      %v1603 = vpop.f32.mrb[0].mxu0
      %v1604 = vadd.f32 0.0, %v1603
      %v1605 = vpop.f32.mrb[0].mxu0
      %1606 = vmatprep.mubr.bf16.mxu0 0
      %1607 = vmatmul.mubr.bf16.gmra.mrb[0].mxu0 %v1390
      %v1608 = vpop.f32.mrb[0].mxu0
      %v1609 = vadd.f32 0.0, %v1608
      %v1610 = vpop.f32.mrb[0].mxu0
      %v1611 = vpop.f32.mrb[0].mxu0
      %v1612 = vadd.f32 0.0, %v1611
      %v1613 = vpop.f32.mrb[0].mxu0
      %1614 = vmatprep.mubr.bf16.mxu0 0
      %1615 = vmatmul.mubr.bf16.gmra.mrb[0].mxu0 %v1393
      %v1616 = vpop.f32.mrb[0].mxu0
      %v1617 = vadd.f32 0.0, %v1616
      %v1618 = vpop.f32.mrb[0].mxu0
      %v1619 = vpop.f32.mrb[0].mxu0
      %v1620 = vadd.f32 0.0, %v1619
      %v1621 = vpop.f32.mrb[0].mxu0
      %1622 = vdwg.mxu0
      %v1623 = vadd.f32 %v1077, %v1433
      %v1624 = vadd.f32 %v1080, %v1436
      %v1625 = vadd.f32 %v1085, %v1441
      %v1626 = vadd.f32 %v1088, %v1444
      %v1627 = vadd.f32 %v1093, %v1449
      %v1628 = vadd.f32 %v1096, %v1452
      %v1629 = vadd.f32 %v1101, %v1457
      %v1630 = vadd.f32 %v1104, %v1460
      %v1631 = vadd.f32 %v1109, %v1465
      %v1632 = vadd.f32 %v1112, %v1468
      %v1633 = vadd.f32 %v1117, %v1473
      %v1634 = vadd.f32 %v1120, %v1476
      %v1635 = vadd.f32 %v1125, %v1481
      %v1636 = vadd.f32 %v1128, %v1484
      %v1637 = vadd.f32 %v1133, %v1489
      %v1638 = vadd.f32 %v1136, %v1492
      %v1639 = vadd.f32 %v1141, %v1497
      %v1640 = vadd.f32 %v1144, %v1500
      %v1641 = vadd.f32 %v1149, %v1505
      %v1642 = vadd.f32 %v1152, %v1508
      %v1643 = vadd.f32 %v1157, %v1513
      %v1644 = vadd.f32 %v1160, %v1516
      %v1645 = vadd.f32 %v1165, %v1521
      %v1646 = vadd.f32 %v1168, %v1524
      %v1647 = vadd.f32 %v1173, %v1529
      %v1648 = vadd.f32 %v1176, %v1532
      %v1649 = vadd.f32 %v1181, %v1537
      %v1650 = vadd.f32 %v1184, %v1540
      %v1651 = vadd.f32 %v1189, %v1545
      %v1652 = vadd.f32 %v1192, %v1548
      %v1653 = vadd.f32 %v1197, %v1553
      %v1654 = vadd.f32 %v1200, %v1556
      %v1655 = vadd.f32 %v1205, %v1561
      %v1656 = vadd.f32 %v1208, %v1564
      %v1657 = vadd.f32 %v1213, %v1569
      %v1658 = vadd.f32 %v1216, %v1572
      %v1659 = vadd.f32 %v1221, %v1577
      %v1660 = vadd.f32 %v1224, %v1580
      %v1661 = vadd.f32 %v1229, %v1585
      %v1662 = vadd.f32 %v1232, %v1588
      %v1663 = vadd.f32 %v1237, %v1593
      %v1664 = vadd.f32 %v1240, %v1596
      %v1665 = vadd.f32 %v1245, %v1601
      %v1666 = vadd.f32 %v1248, %v1604
      %v1667 = vadd.f32 %v1253, %v1609
      %v1668 = vadd.f32 %v1256, %v1612
      %v1669 = vadd.f32 %v1261, %v1617
      %v1670 = vadd.f32 %v1264, %v1620
      %v1671 = vld [vmem:[%s286 + $0xc] sm:$0xf]
      %v1672 = vld [vmem:[%s286 + $0x10] sm:$0xf]
      %v1673 = vld [vmem:[%s286 + $0x14] sm:$0xf]
      %v1674 = vld [vmem:[%s286 + $0x18] sm:$0xf]
      %v1675 = vld [vmem:[%s286 + $0x1c] sm:$0xf]
      %v1676 = vld [vmem:[%s286 + $0x20] sm:$0xf]
      %v1677 = vld [vmem:[%s286 + $0x24] sm:$0xf]
      %v1678 = vld [vmem:[%s286 + $0x28] sm:$0xf]
      %v1679 = vld [vmem:[%s286 + $0x2c] sm:$0xf]
      %v1680 = vld [vmem:[%s286 + $0x30] sm:$0xf]
      %v1681 = vld [vmem:[%s286 + $0x34] sm:$0xf]
      %v1682 = vld [vmem:[%s286 + $0x38] sm:$0xf]
      %v1683 = vld [vmem:[%s286 + $0x3c] sm:$0xf]
      %v1684 = vld [vmem:[%s286 + $0x40] sm:$0xf]
      %v1685 = vld [vmem:[%s286 + $0x44] sm:$0xf]
      %v1686 = vld [vmem:[%s286 + $0x48] sm:$0xf]
      %v1687 = vld [vmem:[%s286 + $0x4c] sm:$0xf]
      %v1688 = vld [vmem:[%s286 + $0x50] sm:$0xf]
      %v1689 = vld [vmem:[%s286 + $0x54] sm:$0xf]
      %v1690 = vld [vmem:[%s286 + $0x58] sm:$0xf]
      %v1691 = vld [vmem:[%s286 + $0x5c] sm:$0xf]
      %v1692 = vld [vmem:[%s286 + $0x60] sm:$0xf]
      %v1693 = vld [vmem:[%s286 + $0x64] sm:$0xf]
      %v1694 = vld [vmem:[%s286 + $0x68] sm:$0xf]
      %v1695 = vld [vmem:[%s286 + $0x6c] sm:$0xf]
      %v1696 = vld [vmem:[%s286 + $0x70] sm:$0xf]
      %v1697 = vld [vmem:[%s286 + $0x74] sm:$0xf]
      %v1698 = vld [vmem:[%s286 + $0x78] sm:$0xf]
      %v1699 = vld [vmem:[%s286 + $0x7c] sm:$0xf]
      %v1700 = vld [vmem:[%s286 + $0x80] sm:$0xf]
      %v1701 = vld [vmem:[%s286 + $0x84] sm:$0xf]
      %v1702 = vld [vmem:[%s286 + $0x88] sm:$0xf]
      %v1703 = vld [vmem:[%s286 + $0x8c] sm:$0xf]
      %v1704 = vld [vmem:[%s286 + $0x90] sm:$0xf]
      %v1705 = vld [vmem:[%s286 + $0x94] sm:$0xf]
      %v1706 = vld [vmem:[%s286 + $0x98] sm:$0xf]
      %v1707 = vld [vmem:[%s286 + $0x9c] sm:$0xf]
      %v1708 = vld [vmem:[%s286 + $0xa0] sm:$0xf]
      %v1709 = vld [vmem:[%s286 + $0xa4] sm:$0xf]
      %v1710 = vld [vmem:[%s286 + $0xa8] sm:$0xf]
      %v1711 = vld [vmem:[%s286 + $0xac] sm:$0xf]
      %v1712 = vld [vmem:[%s286 + $0xb0] sm:$0xf]
      %v1713 = vld [vmem:[%s286 + $0xb4] sm:$0xf]
      %v1714 = vld [vmem:[%s286 + $0xb8] sm:$0xf]
      %v1715 = vld [vmem:[%s286 + $0xbc] sm:$0xf]
      %v1716 = vld [vmem:[%s286 + $0xc0] sm:$0xf]
      %v1717 = vld [vmem:[%s286 + $0xc4] sm:$0xf]
      %v1718 = vld [vmem:[%s286 + $0xc8] sm:$0xf]
      %s1719 = scalar_lea.vmem %s290, 6
      %v1720 = vld [vmem:[%s1719] sm:$0x3]
      %v1769 = vunpack.c.l.b16 %v1671
      %v1770 = vunpack.c.l.b16 %v1672
      %v1771 = vunpack.c.l.b16 %v1673
      %v1772 = vunpack.c.l.b16 %v1674
      %v1773 = vunpack.c.l.b16 %v1675
      %v1774 = vunpack.c.l.b16 %v1676
      %v1775 = vunpack.c.l.b16 %v1677
      %v1776 = vunpack.c.l.b16 %v1678
      %v1777 = vunpack.c.l.b16 %v1679
      %v1778 = vunpack.c.l.b16 %v1680
      %v1779 = vunpack.c.l.b16 %v1681
      %v1780 = vunpack.c.l.b16 %v1682
      %v1781 = vunpack.c.l.b16 %v1683
      %v1782 = vunpack.c.l.b16 %v1684
      %v1783 = vunpack.c.l.b16 %v1685
      %v1784 = vunpack.c.l.b16 %v1686
      %v1785 = vunpack.c.l.b16 %v1687
      %v1786 = vunpack.c.l.b16 %v1688
      %v1787 = vunpack.c.l.b16 %v1689
      %v1788 = vunpack.c.l.b16 %v1690
      %v1789 = vunpack.c.l.b16 %v1691
      %v1790 = vunpack.c.l.b16 %v1692
      %v1791 = vunpack.c.l.b16 %v1693
      %v1792 = vunpack.c.l.b16 %v1694
      %v1793 = vunpack.c.l.b16 %v1695
      %v1794 = vunpack.c.l.b16 %v1696
      %v1795 = vunpack.c.l.b16 %v1697
      %v1796 = vunpack.c.l.b16 %v1698
      %v1797 = vunpack.c.l.b16 %v1699
      %v1798 = vunpack.c.l.b16 %v1700
      %v1799 = vunpack.c.l.b16 %v1701
      %v1800 = vunpack.c.l.b16 %v1702
      %v1801 = vunpack.c.l.b16 %v1703
      %v1802 = vunpack.c.l.b16 %v1704
      %v1803 = vunpack.c.l.b16 %v1705
      %v1804 = vunpack.c.l.b16 %v1706
      %v1805 = vunpack.c.l.b16 %v1707
      %v1806 = vunpack.c.l.b16 %v1708
      %v1807 = vunpack.c.l.b16 %v1709
      %v1808 = vunpack.c.l.b16 %v1710
      %v1809 = vunpack.c.l.b16 %v1711
      %v1810 = vunpack.c.l.b16 %v1712
      %v1811 = vunpack.c.l.b16 %v1713
      %v1812 = vunpack.c.l.b16 %v1714
      %v1813 = vunpack.c.l.b16 %v1715
      %v1814 = vunpack.c.l.b16 %v1716
      %v1815 = vunpack.c.l.b16 %v1717
      %v1816 = vunpack.c.l.b16 %v1718
      %v1817 = vpack.c.b16 %v1770, %v1769
      %v1818 = vpack.c.b16 %v1772, %v1771
      %v1819 = vpack.c.b16 %v1774, %v1773
      %v1820 = vpack.c.b16 %v1776, %v1775
      %v1821 = vpack.c.b16 %v1778, %v1777
      %v1822 = vpack.c.b16 %v1780, %v1779
      %v1823 = vpack.c.b16 %v1782, %v1781
      %v1824 = vpack.c.b16 %v1784, %v1783
      %v1825 = vpack.c.b16 %v1786, %v1785
      %v1826 = vpack.c.b16 %v1788, %v1787
      %v1827 = vpack.c.b16 %v1790, %v1789
      %v1828 = vpack.c.b16 %v1792, %v1791
      %v1829 = vpack.c.b16 %v1794, %v1793
      %v1830 = vpack.c.b16 %v1796, %v1795
      %v1831 = vpack.c.b16 %v1798, %v1797
      %v1832 = vpack.c.b16 %v1800, %v1799
      %v1833 = vpack.c.b16 %v1802, %v1801
      %v1834 = vpack.c.b16 %v1804, %v1803
      %v1835 = vpack.c.b16 %v1806, %v1805
      %v1836 = vpack.c.b16 %v1808, %v1807
      %v1837 = vpack.c.b16 %v1810, %v1809
      %v1838 = vpack.c.b16 %v1812, %v1811
      %v1839 = vpack.c.b16 %v1814, %v1813
      %v1840 = vpack.c.b16 %v1816, %v1815
      %v1842 = vsel %vm689, %v1817, 0
      %v1845 = vsel %vm689, %v1818, 0
      %v1848 = vsel %vm689, %v1819, 0
      %v1851 = vsel %vm689, %v1820, 0
      %v1854 = vsel %vm689, %v1821, 0
      %v1857 = vsel %vm689, %v1822, 0
      %v1860 = vsel %vm689, %v1823, 0
      %v1863 = vsel %vm689, %v1824, 0
      %v1866 = vsel %vm689, %v1825, 0
      %v1869 = vsel %vm689, %v1826, 0
      %v1872 = vsel %vm689, %v1827, 0
      %v1875 = vsel %vm689, %v1828, 0
      %v1878 = vsel %vm689, %v1829, 0
      %v1881 = vsel %vm689, %v1830, 0
      %v1884 = vsel %vm689, %v1831, 0
      %v1887 = vsel %vm689, %v1832, 0
      %v1890 = vsel %vm689, %v1833, 0
      %v1893 = vsel %vm689, %v1834, 0
      %v1896 = vsel %vm689, %v1835, 0
      %v1899 = vsel %vm689, %v1836, 0
      %v1902 = vsel %vm689, %v1837, 0
      %v1905 = vsel %vm689, %v1838, 0
      %v1908 = vsel %vm689, %v1839, 0
      %v1911 = vsel %vm689, %v1840, 0
      %v1914 = vsel %vm762, %v1720, 0
      %1916 = vmatprep.subr.bf16.mxu0 0
      %1917 = vmatpush1.bf16.msra.mxu0 %v1914
      %1918 = vmatprep.subr.bf16.mxu0 0
      %1919 = vmatpush1.bf16.msra.mxu0 0
      %1920 = vmatprep.subr.bf16.mxu0 0
      %1921 = vmatpush1.bf16.msra.mxu0 0
      %1922 = vmatprep.subr.bf16.mxu0 0
      %1923 = vmatpush1.bf16.msra.mxu0 0
      %1924 = vmatprep.subr.bf16.mxu0 0
      %1925 = vmatpush1.bf16.msra.mxu0 0
      %1926 = vmatprep.subr.bf16.mxu0 0
      %1927 = vmatpush1.bf16.msra.mxu0 0
      %1928 = vmatprep.subr.bf16.mxu0 0
      %1929 = vmatpush1.bf16.msra.mxu0 0
      %1930 = vmatprep.subr.bf16.mxu0 0
      %1931 = vmatpush1.bf16.msra.mxu0 0
      %1932 = vmatprep.subr.bf16.mxu0 0
      %1933 = vmatpush1.bf16.msra.mxu0 0
      %1934 = vmatprep.subr.bf16.mxu0 0
      %1935 = vmatpush1.bf16.msra.mxu0 0
      %1936 = vmatprep.subr.bf16.mxu0 0
      %1937 = vmatpush1.bf16.msra.mxu0 0
      %1938 = vmatprep.subr.bf16.mxu0 0
      %1939 = vmatpush1.bf16.msra.mxu0 0
      %1940 = vmatprep.subr.bf16.mxu0 0
      %1941 = vmatpush1.bf16.msra.mxu0 0
      %1942 = vmatprep.subr.bf16.mxu0 0
      %1943 = vmatpush1.bf16.msra.mxu0 0
      %1944 = vmatprep.subr.bf16.mxu0 0
      %1945 = vmatpush1.bf16.msra.mxu0 0
      %1946 = vmatprep.subr.bf16.mxu0 0
      %1947 = vmatpush1.bf16.msra.mxu0 0
      %1948 = vmatprep.mubr.bf16.mxu0 0
      %1949 = vmatmul.mubr.bf16.gmra.mrb[0].mxu0 %v1842
      %v1950 = vpop.f32.mrb[0].mxu0
      %v1951 = vadd.f32 0.0, %v1950
      %v1952 = vpop.f32.mrb[0].mxu0
      %v1953 = vpop.f32.mrb[0].mxu0
      %v1954 = vadd.f32 0.0, %v1953
      %v1955 = vpop.f32.mrb[0].mxu0
      %1956 = vmatprep.mubr.bf16.mxu0 0
      %1957 = vmatmul.mubr.bf16.gmra.mrb[0].mxu0 %v1845
      %v1958 = vpop.f32.mrb[0].mxu0
      %v1959 = vadd.f32 0.0, %v1958
      %v1960 = vpop.f32.mrb[0].mxu0
      %v1961 = vpop.f32.mrb[0].mxu0
      %v1962 = vadd.f32 0.0, %v1961
      %v1963 = vpop.f32.mrb[0].mxu0
      %1964 = vmatprep.mubr.bf16.mxu0 0
      %1965 = vmatmul.mubr.bf16.gmra.mrb[0].mxu0 %v1848
      %v1966 = vpop.f32.mrb[0].mxu0
      %v1967 = vadd.f32 0.0, %v1966
      %v1968 = vpop.f32.mrb[0].mxu0
      %v1969 = vpop.f32.mrb[0].mxu0
      %v1970 = vadd.f32 0.0, %v1969
      %v1971 = vpop.f32.mrb[0].mxu0
      %1972 = vmatprep.mubr.bf16.mxu0 0
      %1973 = vmatmul.mubr.bf16.gmra.mrb[0].mxu0 %v1851
      %v1974 = vpop.f32.mrb[0].mxu0
      %v1975 = vadd.f32 0.0, %v1974
      %v1976 = vpop.f32.mrb[0].mxu0
      %v1977 = vpop.f32.mrb[0].mxu0
      %v1978 = vadd.f32 0.0, %v1977
      %v1979 = vpop.f32.mrb[0].mxu0
      %1980 = vmatprep.mubr.bf16.mxu0 0
      %1981 = vmatmul.mubr.bf16.gmra.mrb[0].mxu0 %v1854
      %v1982 = vpop.f32.mrb[0].mxu0
      %v1983 = vadd.f32 0.0, %v1982
      %v1984 = vpop.f32.mrb[0].mxu0
      %v1985 = vpop.f32.mrb[0].mxu0
      %v1986 = vadd.f32 0.0, %v1985
      %v1987 = vpop.f32.mrb[0].mxu0
      %1988 = vmatprep.mubr.bf16.mxu0 0
      %1989 = vmatmul.mubr.bf16.gmra.mrb[0].mxu0 %v1857
      %v1990 = vpop.f32.mrb[0].mxu0
      %v1991 = vadd.f32 0.0, %v1990
      %v1992 = vpop.f32.mrb[0].mxu0
      %v1993 = vpop.f32.mrb[0].mxu0
      %v1994 = vadd.f32 0.0, %v1993
      %v1995 = vpop.f32.mrb[0].mxu0
      %1996 = vmatprep.mubr.bf16.mxu0 0
      %1997 = vmatmul.mubr.bf16.gmra.mrb[0].mxu0 %v1860
      %v1998 = vpop.f32.mrb[0].mxu0
      %v1999 = vadd.f32 0.0, %v1998
      %v2000 = vpop.f32.mrb[0].mxu0
      %v2001 = vpop.f32.mrb[0].mxu0
      %v2002 = vadd.f32 0.0, %v2001
      %v2003 = vpop.f32.mrb[0].mxu0
      %2004 = vmatprep.mubr.bf16.mxu0 0
      %2005 = vmatmul.mubr.bf16.gmra.mrb[0].mxu0 %v1863
      %v2006 = vpop.f32.mrb[0].mxu0
      %v2007 = vadd.f32 0.0, %v2006
      %v2008 = vpop.f32.mrb[0].mxu0
      %v2009 = vpop.f32.mrb[0].mxu0
      %v2010 = vadd.f32 0.0, %v2009
      %v2011 = vpop.f32.mrb[0].mxu0
      %2012 = vmatprep.mubr.bf16.mxu0 0
      %2013 = vmatmul.mubr.bf16.gmra.mrb[0].mxu0 %v1866
      %v2014 = vpop.f32.mrb[0].mxu0
      %v2015 = vadd.f32 0.0, %v2014
      %v2016 = vpop.f32.mrb[0].mxu0
      %v2017 = vpop.f32.mrb[0].mxu0
      %v2018 = vadd.f32 0.0, %v2017
      %v2019 = vpop.f32.mrb[0].mxu0
      %2020 = vmatprep.mubr.bf16.mxu0 0
      %2021 = vmatmul.mubr.bf16.gmra.mrb[0].mxu0 %v1869
      %v2022 = vpop.f32.mrb[0].mxu0
      %v2023 = vadd.f32 0.0, %v2022
      %v2024 = vpop.f32.mrb[0].mxu0
      %v2025 = vpop.f32.mrb[0].mxu0
      %v2026 = vadd.f32 0.0, %v2025
      %v2027 = vpop.f32.mrb[0].mxu0
      %2028 = vmatprep.mubr.bf16.mxu0 0
      %2029 = vmatmul.mubr.bf16.gmra.mrb[0].mxu0 %v1872
      %v2030 = vpop.f32.mrb[0].mxu0
      %v2031 = vadd.f32 0.0, %v2030
      %v2032 = vpop.f32.mrb[0].mxu0
      %v2033 = vpop.f32.mrb[0].mxu0
      %v2034 = vadd.f32 0.0, %v2033
      %v2035 = vpop.f32.mrb[0].mxu0
      %2036 = vmatprep.mubr.bf16.mxu0 0
      %2037 = vmatmul.mubr.bf16.gmra.mrb[0].mxu0 %v1875
      %v2038 = vpop.f32.mrb[0].mxu0
      %v2039 = vadd.f32 0.0, %v2038
      %v2040 = vpop.f32.mrb[0].mxu0
      %v2041 = vpop.f32.mrb[0].mxu0
      %v2042 = vadd.f32 0.0, %v2041
      %v2043 = vpop.f32.mrb[0].mxu0
      %2044 = vmatprep.mubr.bf16.mxu0 0
      %2045 = vmatmul.mubr.bf16.gmra.mrb[0].mxu0 %v1878
      %v2046 = vpop.f32.mrb[0].mxu0
      %v2047 = vadd.f32 0.0, %v2046
      %v2048 = vpop.f32.mrb[0].mxu0
      %v2049 = vpop.f32.mrb[0].mxu0
      %v2050 = vadd.f32 0.0, %v2049
      %v2051 = vpop.f32.mrb[0].mxu0
      %2052 = vmatprep.mubr.bf16.mxu0 0
      %2053 = vmatmul.mubr.bf16.gmra.mrb[0].mxu0 %v1881
      %v2054 = vpop.f32.mrb[0].mxu0
      %v2055 = vadd.f32 0.0, %v2054
      %v2056 = vpop.f32.mrb[0].mxu0
      %v2057 = vpop.f32.mrb[0].mxu0
      %v2058 = vadd.f32 0.0, %v2057
      %v2059 = vpop.f32.mrb[0].mxu0
      %2060 = vmatprep.mubr.bf16.mxu0 0
      %2061 = vmatmul.mubr.bf16.gmra.mrb[0].mxu0 %v1884
      %v2062 = vpop.f32.mrb[0].mxu0
      %v2063 = vadd.f32 0.0, %v2062
      %v2064 = vpop.f32.mrb[0].mxu0
      %v2065 = vpop.f32.mrb[0].mxu0
      %v2066 = vadd.f32 0.0, %v2065
      %v2067 = vpop.f32.mrb[0].mxu0
      %2068 = vmatprep.mubr.bf16.mxu0 0
      %2069 = vmatmul.mubr.bf16.gmra.mrb[0].mxu0 %v1887
      %v2070 = vpop.f32.mrb[0].mxu0
      %v2071 = vadd.f32 0.0, %v2070
      %v2072 = vpop.f32.mrb[0].mxu0
      %v2073 = vpop.f32.mrb[0].mxu0
      %v2074 = vadd.f32 0.0, %v2073
      %v2075 = vpop.f32.mrb[0].mxu0
      %2076 = vmatprep.mubr.bf16.mxu0 0
      %2077 = vmatmul.mubr.bf16.gmra.mrb[0].mxu0 %v1890
      %v2078 = vpop.f32.mrb[0].mxu0
      %v2079 = vadd.f32 0.0, %v2078
      %v2080 = vpop.f32.mrb[0].mxu0
      %v2081 = vpop.f32.mrb[0].mxu0
      %v2082 = vadd.f32 0.0, %v2081
      %v2083 = vpop.f32.mrb[0].mxu0
      %2084 = vmatprep.mubr.bf16.mxu0 0
      %2085 = vmatmul.mubr.bf16.gmra.mrb[0].mxu0 %v1893
      %v2086 = vpop.f32.mrb[0].mxu0
      %v2087 = vadd.f32 0.0, %v2086
      %v2088 = vpop.f32.mrb[0].mxu0
      %v2089 = vpop.f32.mrb[0].mxu0
      %v2090 = vadd.f32 0.0, %v2089
      %v2091 = vpop.f32.mrb[0].mxu0
      %2092 = vmatprep.mubr.bf16.mxu0 0
      %2093 = vmatmul.mubr.bf16.gmra.mrb[0].mxu0 %v1896
      %v2094 = vpop.f32.mrb[0].mxu0
      %v2095 = vadd.f32 0.0, %v2094
      %v2096 = vpop.f32.mrb[0].mxu0
      %v2097 = vpop.f32.mrb[0].mxu0
      %v2098 = vadd.f32 0.0, %v2097
      %v2099 = vpop.f32.mrb[0].mxu0
      %2100 = vmatprep.mubr.bf16.mxu0 0
      %2101 = vmatmul.mubr.bf16.gmra.mrb[0].mxu0 %v1899
      %v2102 = vpop.f32.mrb[0].mxu0
      %v2103 = vadd.f32 0.0, %v2102
      %v2104 = vpop.f32.mrb[0].mxu0
      %v2105 = vpop.f32.mrb[0].mxu0
      %v2106 = vadd.f32 0.0, %v2105
      %v2107 = vpop.f32.mrb[0].mxu0
      %2108 = vmatprep.mubr.bf16.mxu0 0
      %2109 = vmatmul.mubr.bf16.gmra.mrb[0].mxu0 %v1902
      %v2110 = vpop.f32.mrb[0].mxu0
      %v2111 = vadd.f32 0.0, %v2110
      %v2112 = vpop.f32.mrb[0].mxu0
      %v2113 = vpop.f32.mrb[0].mxu0
      %v2114 = vadd.f32 0.0, %v2113
      %v2115 = vpop.f32.mrb[0].mxu0
      %2116 = vmatprep.mubr.bf16.mxu0 0
      %2117 = vmatmul.mubr.bf16.gmra.mrb[0].mxu0 %v1905
      %v2118 = vpop.f32.mrb[0].mxu0
      %v2119 = vadd.f32 0.0, %v2118
      %v2120 = vpop.f32.mrb[0].mxu0
      %v2121 = vpop.f32.mrb[0].mxu0
      %v2122 = vadd.f32 0.0, %v2121
      %v2123 = vpop.f32.mrb[0].mxu0
      %2124 = vmatprep.mubr.bf16.mxu0 0
      %2125 = vmatmul.mubr.bf16.gmra.mrb[0].mxu0 %v1908
      %v2126 = vpop.f32.mrb[0].mxu0
      %v2127 = vadd.f32 0.0, %v2126
      %v2128 = vpop.f32.mrb[0].mxu0
      %v2129 = vpop.f32.mrb[0].mxu0
      %v2130 = vadd.f32 0.0, %v2129
      %v2131 = vpop.f32.mrb[0].mxu0
      %2132 = vmatprep.mubr.bf16.mxu0 0
      %2133 = vmatmul.mubr.bf16.gmra.mrb[0].mxu0 %v1911
      %v2134 = vpop.f32.mrb[0].mxu0
      %v2135 = vadd.f32 0.0, %v2134
      %v2136 = vpop.f32.mrb[0].mxu0
      %v2137 = vpop.f32.mrb[0].mxu0
      %v2138 = vadd.f32 0.0, %v2137
      %v2139 = vpop.f32.mrb[0].mxu0
      %2140 = vdwg.mxu0
      %v2141 = vadd.f32 %v1623, %v1951
      %v2142 = vadd.f32 %v1624, %v1954
      %v2143 = vadd.f32 %v1625, %v1959
      %v2144 = vadd.f32 %v1626, %v1962
      %v2145 = vadd.f32 %v1627, %v1967
      %v2146 = vadd.f32 %v1628, %v1970
      %v2147 = vadd.f32 %v1629, %v1975
      %v2148 = vadd.f32 %v1630, %v1978
      %v2149 = vadd.f32 %v1631, %v1983
      %v2150 = vadd.f32 %v1632, %v1986
      %v2151 = vadd.f32 %v1633, %v1991
      %v2152 = vadd.f32 %v1634, %v1994
      %v2153 = vadd.f32 %v1635, %v1999
      %v2154 = vadd.f32 %v1636, %v2002
      %v2155 = vadd.f32 %v1637, %v2007
      %v2156 = vadd.f32 %v1638, %v2010
      %v2157 = vadd.f32 %v1639, %v2015
      %v2158 = vadd.f32 %v1640, %v2018
      %v2159 = vadd.f32 %v1641, %v2023
      %v2160 = vadd.f32 %v1642, %v2026
      %v2161 = vadd.f32 %v1643, %v2031
      %v2162 = vadd.f32 %v1644, %v2034
      %v2163 = vadd.f32 %v1645, %v2039
      %v2164 = vadd.f32 %v1646, %v2042
      %v2165 = vadd.f32 %v1647, %v2047
      %v2166 = vadd.f32 %v1648, %v2050
      %v2167 = vadd.f32 %v1649, %v2055
      %v2168 = vadd.f32 %v1650, %v2058
      %v2169 = vadd.f32 %v1651, %v2063
      %v2170 = vadd.f32 %v1652, %v2066
      %v2171 = vadd.f32 %v1653, %v2071
      %v2172 = vadd.f32 %v1654, %v2074
      %v2173 = vadd.f32 %v1655, %v2079
      %v2174 = vadd.f32 %v1656, %v2082
      %v2175 = vadd.f32 %v1657, %v2087
      %v2176 = vadd.f32 %v1658, %v2090
      %v2177 = vadd.f32 %v1659, %v2095
      %v2178 = vadd.f32 %v1660, %v2098
      %v2179 = vadd.f32 %v1661, %v2103
      %v2180 = vadd.f32 %v1662, %v2106
      %v2181 = vadd.f32 %v1663, %v2111
      %v2182 = vadd.f32 %v1664, %v2114
      %v2183 = vadd.f32 %v1665, %v2119
      %v2184 = vadd.f32 %v1666, %v2122
      %v2185 = vadd.f32 %v1667, %v2127
      %v2186 = vadd.f32 %v1668, %v2130
      %v2187 = vadd.f32 %v1669, %v2135
      %v2188 = vadd.f32 %v1670, %v2138
      %v2189 = vld [vmem:[%s286 + $0xc] sm:$0xf]
      %v2190 = vld [vmem:[%s286 + $0x10] sm:$0xf]
      %v2191 = vld [vmem:[%s286 + $0x14] sm:$0xf]
      %v2192 = vld [vmem:[%s286 + $0x18] sm:$0xf]
      %v2193 = vld [vmem:[%s286 + $0x1c] sm:$0xf]
      %v2194 = vld [vmem:[%s286 + $0x20] sm:$0xf]
      %v2195 = vld [vmem:[%s286 + $0x24] sm:$0xf]
      %v2196 = vld [vmem:[%s286 + $0x28] sm:$0xf]
      %v2197 = vld [vmem:[%s286 + $0x2c] sm:$0xf]
      %v2198 = vld [vmem:[%s286 + $0x30] sm:$0xf]
      %v2199 = vld [vmem:[%s286 + $0x34] sm:$0xf]
      %v2200 = vld [vmem:[%s286 + $0x38] sm:$0xf]
      %v2201 = vld [vmem:[%s286 + $0x3c] sm:$0xf]
      %v2202 = vld [vmem:[%s286 + $0x40] sm:$0xf]
      %v2203 = vld [vmem:[%s286 + $0x44] sm:$0xf]
      %v2204 = vld [vmem:[%s286 + $0x48] sm:$0xf]
      %v2205 = vld [vmem:[%s286 + $0x4c] sm:$0xf]
      %v2206 = vld [vmem:[%s286 + $0x50] sm:$0xf]
      %v2207 = vld [vmem:[%s286 + $0x54] sm:$0xf]
      %v2208 = vld [vmem:[%s286 + $0x58] sm:$0xf]
      %v2209 = vld [vmem:[%s286 + $0x5c] sm:$0xf]
      %v2210 = vld [vmem:[%s286 + $0x60] sm:$0xf]
      %v2211 = vld [vmem:[%s286 + $0x64] sm:$0xf]
      %v2212 = vld [vmem:[%s286 + $0x68] sm:$0xf]
      %v2213 = vld [vmem:[%s286 + $0x6c] sm:$0xf]
      %v2214 = vld [vmem:[%s286 + $0x70] sm:$0xf]
      %v2215 = vld [vmem:[%s286 + $0x74] sm:$0xf]
      %v2216 = vld [vmem:[%s286 + $0x78] sm:$0xf]
      %v2217 = vld [vmem:[%s286 + $0x7c] sm:$0xf]
      %v2218 = vld [vmem:[%s286 + $0x80] sm:$0xf]
      %v2219 = vld [vmem:[%s286 + $0x84] sm:$0xf]
      %v2220 = vld [vmem:[%s286 + $0x88] sm:$0xf]
      %v2221 = vld [vmem:[%s286 + $0x8c] sm:$0xf]
      %v2222 = vld [vmem:[%s286 + $0x90] sm:$0xf]
      %v2223 = vld [vmem:[%s286 + $0x94] sm:$0xf]
      %v2224 = vld [vmem:[%s286 + $0x98] sm:$0xf]
      %v2225 = vld [vmem:[%s286 + $0x9c] sm:$0xf]
      %v2226 = vld [vmem:[%s286 + $0xa0] sm:$0xf]
      %v2227 = vld [vmem:[%s286 + $0xa4] sm:$0xf]
      %v2228 = vld [vmem:[%s286 + $0xa8] sm:$0xf]
      %v2229 = vld [vmem:[%s286 + $0xac] sm:$0xf]
      %v2230 = vld [vmem:[%s286 + $0xb0] sm:$0xf]
      %v2231 = vld [vmem:[%s286 + $0xb4] sm:$0xf]
      %v2232 = vld [vmem:[%s286 + $0xb8] sm:$0xf]
      %v2233 = vld [vmem:[%s286 + $0xbc] sm:$0xf]
      %v2234 = vld [vmem:[%s286 + $0xc0] sm:$0xf]
      %v2235 = vld [vmem:[%s286 + $0xc4] sm:$0xf]
      %v2236 = vld [vmem:[%s286 + $0xc8] sm:$0xf]
      %v2237 = vld [vmem:[%s286 + $0xcc] sm:$0x1]
      %s2238 = scalar_lea.vmem %s290, 8
      %v2239 = vld [vmem:[%s2238] sm:$0x3]
      %v2289 = vunpack.c.l.b16 %v2189
      %v2290 = vunpack.c.l.b16 %v2190
      %v2291 = vunpack.c.l.b16 %v2191
      %v2292 = vunpack.c.l.b16 %v2192
      %v2293 = vunpack.c.l.b16 %v2193
      %v2294 = vunpack.c.l.b16 %v2194
      %v2295 = vunpack.c.l.b16 %v2195
      %v2296 = vunpack.c.l.b16 %v2196
      %v2297 = vunpack.c.l.b16 %v2197
      %v2298 = vunpack.c.l.b16 %v2198
      %v2299 = vunpack.c.l.b16 %v2199
      %v2300 = vunpack.c.l.b16 %v2200
      %v2301 = vunpack.c.l.b16 %v2201
      %v2302 = vunpack.c.l.b16 %v2202
      %v2303 = vunpack.c.l.b16 %v2203
      %v2304 = vunpack.c.l.b16 %v2204
      %v2305 = vunpack.c.l.b16 %v2205
      %v2306 = vunpack.c.l.b16 %v2206
      %v2307 = vunpack.c.l.b16 %v2207
      %v2308 = vunpack.c.l.b16 %v2208
      %v2309 = vunpack.c.l.b16 %v2209
      %v2310 = vunpack.c.l.b16 %v2210
      %v2311 = vunpack.c.l.b16 %v2211
      %v2312 = vunpack.c.l.b16 %v2212
      %v2313 = vunpack.c.l.b16 %v2213
      %v2314 = vunpack.c.l.b16 %v2214
      %v2315 = vunpack.c.l.b16 %v2215
      %v2316 = vunpack.c.l.b16 %v2216
      %v2317 = vunpack.c.l.b16 %v2217
      %v2318 = vunpack.c.l.b16 %v2218
      %v2319 = vunpack.c.l.b16 %v2219
      %v2320 = vunpack.c.l.b16 %v2220
      %v2321 = vunpack.c.l.b16 %v2221
      %v2322 = vunpack.c.l.b16 %v2222
      %v2323 = vunpack.c.l.b16 %v2223
      %v2324 = vunpack.c.l.b16 %v2224
      %v2325 = vunpack.c.l.b16 %v2225
      %v2326 = vunpack.c.l.b16 %v2226
      %v2327 = vunpack.c.l.b16 %v2227
      %v2328 = vunpack.c.l.b16 %v2228
      %v2329 = vunpack.c.l.b16 %v2229
      %v2330 = vunpack.c.l.b16 %v2230
      %v2331 = vunpack.c.l.b16 %v2231
      %v2332 = vunpack.c.l.b16 %v2232
      %v2333 = vunpack.c.l.b16 %v2233
      %v2334 = vunpack.c.l.b16 %v2234
      %v2335 = vunpack.c.l.b16 %v2235
      %v2336 = vunpack.c.l.b16 %v2236
      %v2337 = vunpack.c.l.b16 %v2237
      %v2338 = vpack.c.b16 %v2290, %v2289
      %v2339 = vpack.c.b16 %v2292, %v2291
      %v2340 = vpack.c.b16 %v2294, %v2293
      %v2341 = vpack.c.b16 %v2296, %v2295
      %v2342 = vpack.c.b16 %v2298, %v2297
      %v2343 = vpack.c.b16 %v2300, %v2299
      %v2344 = vpack.c.b16 %v2302, %v2301
      %v2345 = vpack.c.b16 %v2304, %v2303
      %v2346 = vpack.c.b16 %v2306, %v2305
      %v2347 = vpack.c.b16 %v2308, %v2307
      %v2348 = vpack.c.b16 %v2310, %v2309
      %v2349 = vpack.c.b16 %v2312, %v2311
      %v2350 = vpack.c.b16 %v2314, %v2313
      %v2351 = vpack.c.b16 %v2316, %v2315
      %v2352 = vpack.c.b16 %v2318, %v2317
      %v2353 = vpack.c.b16 %v2320, %v2319
      %v2354 = vpack.c.b16 %v2322, %v2321
      %v2355 = vpack.c.b16 %v2324, %v2323
      %v2356 = vpack.c.b16 %v2326, %v2325
      %v2357 = vpack.c.b16 %v2328, %v2327
      %v2358 = vpack.c.b16 %v2330, %v2329
      %v2359 = vpack.c.b16 %v2332, %v2331
      %v2360 = vpack.c.b16 %v2334, %v2333
      %v2361 = vpack.c.b16 %v2336, %v2335
      %v2362 = vpack.c.b16 %v2337, %v2337
      %v2364 = vshrl.u32 %v2338, 16
      %v2366 = vshll.u32 %v2338, 16
      %v2368 = vrot.slane %v2366, 1
      %v2369 = vor.u32 %v2364, %v2368
      %v2371 = vshll.u32 %v2339, 16
      %v2373 = vrot.slane %v2371, 1
      %v2374 = vsel %vm492, %v2369, %v2373
      %v2375 = vshrl.u32 %v2339, 16
      %v2377 = vor.u32 %v2375, %v2373
      %v2379 = vshll.u32 %v2340, 16
      %v2381 = vrot.slane %v2379, 1
      %v2382 = vsel %vm492, %v2377, %v2381
      %v2383 = vshrl.u32 %v2340, 16
      %v2385 = vor.u32 %v2383, %v2381
      %v2387 = vshll.u32 %v2341, 16
      %v2389 = vrot.slane %v2387, 1
      %v2390 = vsel %vm492, %v2385, %v2389
      %v2391 = vshrl.u32 %v2341, 16
      %v2393 = vor.u32 %v2391, %v2389
      %v2395 = vshll.u32 %v2342, 16
      %v2397 = vrot.slane %v2395, 1
      %v2398 = vsel %vm492, %v2393, %v2397
      %v2399 = vshrl.u32 %v2342, 16
      %v2401 = vor.u32 %v2399, %v2397
      %v2403 = vshll.u32 %v2343, 16
      %v2405 = vrot.slane %v2403, 1
      %v2406 = vsel %vm492, %v2401, %v2405
      %v2407 = vshrl.u32 %v2343, 16
      %v2409 = vor.u32 %v2407, %v2405
      %v2411 = vshll.u32 %v2344, 16
      %v2413 = vrot.slane %v2411, 1
      %v2414 = vsel %vm492, %v2409, %v2413
      %v2415 = vshrl.u32 %v2344, 16
      %v2417 = vor.u32 %v2415, %v2413
      %v2419 = vshll.u32 %v2345, 16
      %v2421 = vrot.slane %v2419, 1
      %v2422 = vsel %vm492, %v2417, %v2421
      %v2423 = vshrl.u32 %v2345, 16
      %v2425 = vor.u32 %v2423, %v2421
      %v2427 = vshll.u32 %v2346, 16
      %v2429 = vrot.slane %v2427, 1
      %v2430 = vsel %vm492, %v2425, %v2429
      %v2431 = vshrl.u32 %v2346, 16
      %v2433 = vor.u32 %v2431, %v2429
      %v2435 = vshll.u32 %v2347, 16
      %v2437 = vrot.slane %v2435, 1
      %v2438 = vsel %vm492, %v2433, %v2437
      %v2439 = vshrl.u32 %v2347, 16
      %v2441 = vor.u32 %v2439, %v2437
      %v2443 = vshll.u32 %v2348, 16
      %v2445 = vrot.slane %v2443, 1
      %v2446 = vsel %vm492, %v2441, %v2445
      %v2447 = vshrl.u32 %v2348, 16
      %v2449 = vor.u32 %v2447, %v2445
      %v2451 = vshll.u32 %v2349, 16
      %v2453 = vrot.slane %v2451, 1
      %v2454 = vsel %vm492, %v2449, %v2453
      %v2455 = vshrl.u32 %v2349, 16
      %v2457 = vor.u32 %v2455, %v2453
      %v2459 = vshll.u32 %v2350, 16
      %v2461 = vrot.slane %v2459, 1
      %v2462 = vsel %vm492, %v2457, %v2461
      %v2463 = vshrl.u32 %v2350, 16
      %v2465 = vor.u32 %v2463, %v2461
      %v2467 = vshll.u32 %v2351, 16
      %v2469 = vrot.slane %v2467, 1
      %v2470 = vsel %vm492, %v2465, %v2469
      %v2471 = vshrl.u32 %v2351, 16
      %v2473 = vor.u32 %v2471, %v2469
      %v2475 = vshll.u32 %v2352, 16
      %v2477 = vrot.slane %v2475, 1
      %v2478 = vsel %vm492, %v2473, %v2477
      %v2479 = vshrl.u32 %v2352, 16
      %v2481 = vor.u32 %v2479, %v2477
      %v2483 = vshll.u32 %v2353, 16
      %v2485 = vrot.slane %v2483, 1
      %v2486 = vsel %vm492, %v2481, %v2485
      %v2487 = vshrl.u32 %v2353, 16
      %v2489 = vor.u32 %v2487, %v2485
      %v2491 = vshll.u32 %v2354, 16
      %v2493 = vrot.slane %v2491, 1
      %v2494 = vsel %vm492, %v2489, %v2493
      %v2495 = vshrl.u32 %v2354, 16
      %v2497 = vor.u32 %v2495, %v2493
      %v2499 = vshll.u32 %v2355, 16
      %v2501 = vrot.slane %v2499, 1
      %v2502 = vsel %vm492, %v2497, %v2501
      %v2503 = vshrl.u32 %v2355, 16
      %v2505 = vor.u32 %v2503, %v2501
      %v2507 = vshll.u32 %v2356, 16
      %v2509 = vrot.slane %v2507, 1
      %v2510 = vsel %vm492, %v2505, %v2509
      %v2511 = vshrl.u32 %v2356, 16
      %v2513 = vor.u32 %v2511, %v2509
      %v2515 = vshll.u32 %v2357, 16
      %v2517 = vrot.slane %v2515, 1
      %v2518 = vsel %vm492, %v2513, %v2517
      %v2519 = vshrl.u32 %v2357, 16
      %v2521 = vor.u32 %v2519, %v2517
      %v2523 = vshll.u32 %v2358, 16
      %v2525 = vrot.slane %v2523, 1
      %v2526 = vsel %vm492, %v2521, %v2525
      %v2527 = vshrl.u32 %v2358, 16
      %v2529 = vor.u32 %v2527, %v2525
      %v2531 = vshll.u32 %v2359, 16
      %v2533 = vrot.slane %v2531, 1
      %v2534 = vsel %vm492, %v2529, %v2533
      %v2535 = vshrl.u32 %v2359, 16
      %v2537 = vor.u32 %v2535, %v2533
      %v2539 = vshll.u32 %v2360, 16
      %v2541 = vrot.slane %v2539, 1
      %v2542 = vsel %vm492, %v2537, %v2541
      %v2543 = vshrl.u32 %v2360, 16
      %v2545 = vor.u32 %v2543, %v2541
      %v2547 = vshll.u32 %v2361, 16
      %v2549 = vrot.slane %v2547, 1
      %v2550 = vsel %vm492, %v2545, %v2549
      %v2551 = vshrl.u32 %v2361, 16
      %v2553 = vor.u32 %v2551, %v2549
      %v2555 = vshll.u32 %v2362, 16
      %v2557 = vrot.slane %v2555, 1
      %v2558 = vsel %vm492, %v2553, %v2557
      %v2560 = vsel %vm689, %v2374, 0
      %v2563 = vsel %vm689, %v2382, 0
      %v2566 = vsel %vm689, %v2390, 0
      %v2569 = vsel %vm689, %v2398, 0
      %v2572 = vsel %vm689, %v2406, 0
      %v2575 = vsel %vm689, %v2414, 0
      %v2578 = vsel %vm689, %v2422, 0
      %v2581 = vsel %vm689, %v2430, 0
      %v2584 = vsel %vm689, %v2438, 0
      %v2587 = vsel %vm689, %v2446, 0
      %v2590 = vsel %vm689, %v2454, 0
      %v2593 = vsel %vm689, %v2462, 0
      %v2596 = vsel %vm689, %v2470, 0
      %v2599 = vsel %vm689, %v2478, 0
      %v2602 = vsel %vm689, %v2486, 0
      %v2605 = vsel %vm689, %v2494, 0
      %v2608 = vsel %vm689, %v2502, 0
      %v2611 = vsel %vm689, %v2510, 0
      %v2614 = vsel %vm689, %v2518, 0
      %v2617 = vsel %vm689, %v2526, 0
      %v2620 = vsel %vm689, %v2534, 0
      %v2623 = vsel %vm689, %v2542, 0
      %v2626 = vsel %vm689, %v2550, 0
      %v2629 = vsel %vm689, %v2558, 0
      %v2632 = vsel %vm762, %v2239, 0
      %2634 = vmatprep.subr.bf16.mxu0 0
      %2635 = vmatpush1.bf16.msra.mxu0 %v2632
      %2636 = vmatprep.subr.bf16.mxu0 0
      %2637 = vmatpush1.bf16.msra.mxu0 0
      %2638 = vmatprep.subr.bf16.mxu0 0
      %2639 = vmatpush1.bf16.msra.mxu0 0
      %2640 = vmatprep.subr.bf16.mxu0 0
      %2641 = vmatpush1.bf16.msra.mxu0 0
      %2642 = vmatprep.subr.bf16.mxu0 0
      %2643 = vmatpush1.bf16.msra.mxu0 0
      %2644 = vmatprep.subr.bf16.mxu0 0
      %2645 = vmatpush1.bf16.msra.mxu0 0
      %2646 = vmatprep.subr.bf16.mxu0 0
      %2647 = vmatpush1.bf16.msra.mxu0 0
      %2648 = vmatprep.subr.bf16.mxu0 0
      %2649 = vmatpush1.bf16.msra.mxu0 0
      %2650 = vmatprep.subr.bf16.mxu0 0
      %2651 = vmatpush1.bf16.msra.mxu0 0
      %2652 = vmatprep.subr.bf16.mxu0 0
      %2653 = vmatpush1.bf16.msra.mxu0 0
      %2654 = vmatprep.subr.bf16.mxu0 0
      %2655 = vmatpush1.bf16.msra.mxu0 0
      %2656 = vmatprep.subr.bf16.mxu0 0
      %2657 = vmatpush1.bf16.msra.mxu0 0
      %2658 = vmatprep.subr.bf16.mxu0 0
      %2659 = vmatpush1.bf16.msra.mxu0 0
      %2660 = vmatprep.subr.bf16.mxu0 0
      %2661 = vmatpush1.bf16.msra.mxu0 0
      %2662 = vmatprep.subr.bf16.mxu0 0
      %2663 = vmatpush1.bf16.msra.mxu0 0
      %2664 = vmatprep.subr.bf16.mxu0 0
      %2665 = vmatpush1.bf16.msra.mxu0 0
      %2666 = vmatprep.mubr.bf16.mxu0 0
      %2667 = vmatmul.mubr.bf16.gmra.mrb[0].mxu0 %v2560
      %v2668 = vpop.f32.mrb[0].mxu0
      %v2669 = vadd.f32 0.0, %v2668
      %v2670 = vpop.f32.mrb[0].mxu0
      %v2671 = vpop.f32.mrb[0].mxu0
      %v2672 = vadd.f32 0.0, %v2671
      %v2673 = vpop.f32.mrb[0].mxu0
      %2674 = vmatprep.mubr.bf16.mxu0 0
      %2675 = vmatmul.mubr.bf16.gmra.mrb[0].mxu0 %v2563
      %v2676 = vpop.f32.mrb[0].mxu0
      %v2677 = vadd.f32 0.0, %v2676
      %v2678 = vpop.f32.mrb[0].mxu0
      %v2679 = vpop.f32.mrb[0].mxu0
      %v2680 = vadd.f32 0.0, %v2679
      %v2681 = vpop.f32.mrb[0].mxu0
      %2682 = vmatprep.mubr.bf16.mxu0 0
      %2683 = vmatmul.mubr.bf16.gmra.mrb[0].mxu0 %v2566
      %v2684 = vpop.f32.mrb[0].mxu0
      %v2685 = vadd.f32 0.0, %v2684
      %v2686 = vpop.f32.mrb[0].mxu0
      %v2687 = vpop.f32.mrb[0].mxu0
      %v2688 = vadd.f32 0.0, %v2687
      %v2689 = vpop.f32.mrb[0].mxu0
      %2690 = vmatprep.mubr.bf16.mxu0 0
      %2691 = vmatmul.mubr.bf16.gmra.mrb[0].mxu0 %v2569
      %v2692 = vpop.f32.mrb[0].mxu0
      %v2693 = vadd.f32 0.0, %v2692
      %v2694 = vpop.f32.mrb[0].mxu0
      %v2695 = vpop.f32.mrb[0].mxu0
      %v2696 = vadd.f32 0.0, %v2695
      %v2697 = vpop.f32.mrb[0].mxu0
      %2698 = vmatprep.mubr.bf16.mxu0 0
      %2699 = vmatmul.mubr.bf16.gmra.mrb[0].mxu0 %v2572
      %v2700 = vpop.f32.mrb[0].mxu0
      %v2701 = vadd.f32 0.0, %v2700
      %v2702 = vpop.f32.mrb[0].mxu0
      %v2703 = vpop.f32.mrb[0].mxu0
      %v2704 = vadd.f32 0.0, %v2703
      %v2705 = vpop.f32.mrb[0].mxu0
      %2706 = vmatprep.mubr.bf16.mxu0 0
      %2707 = vmatmul.mubr.bf16.gmra.mrb[0].mxu0 %v2575
      %v2708 = vpop.f32.mrb[0].mxu0
      %v2709 = vadd.f32 0.0, %v2708
      %v2710 = vpop.f32.mrb[0].mxu0
      %v2711 = vpop.f32.mrb[0].mxu0
      %v2712 = vadd.f32 0.0, %v2711
      %v2713 = vpop.f32.mrb[0].mxu0
      %2714 = vmatprep.mubr.bf16.mxu0 0
      %2715 = vmatmul.mubr.bf16.gmra.mrb[0].mxu0 %v2578
      %v2716 = vpop.f32.mrb[0].mxu0
      %v2717 = vadd.f32 0.0, %v2716
      %v2718 = vpop.f32.mrb[0].mxu0
      %v2719 = vpop.f32.mrb[0].mxu0
      %v2720 = vadd.f32 0.0, %v2719
      %v2721 = vpop.f32.mrb[0].mxu0
      %2722 = vmatprep.mubr.bf16.mxu0 0
      %2723 = vmatmul.mubr.bf16.gmra.mrb[0].mxu0 %v2581
      %v2724 = vpop.f32.mrb[0].mxu0
      %v2725 = vadd.f32 0.0, %v2724
      %v2726 = vpop.f32.mrb[0].mxu0
      %v2727 = vpop.f32.mrb[0].mxu0
      %v2728 = vadd.f32 0.0, %v2727
      %v2729 = vpop.f32.mrb[0].mxu0
      %2730 = vmatprep.mubr.bf16.mxu0 0
      %2731 = vmatmul.mubr.bf16.gmra.mrb[0].mxu0 %v2584
      %v2732 = vpop.f32.mrb[0].mxu0
      %v2733 = vadd.f32 0.0, %v2732
      %v2734 = vpop.f32.mrb[0].mxu0
      %v2735 = vpop.f32.mrb[0].mxu0
      %v2736 = vadd.f32 0.0, %v2735
      %v2737 = vpop.f32.mrb[0].mxu0
      %2738 = vmatprep.mubr.bf16.mxu0 0
      %2739 = vmatmul.mubr.bf16.gmra.mrb[0].mxu0 %v2587
      %v2740 = vpop.f32.mrb[0].mxu0
      %v2741 = vadd.f32 0.0, %v2740
      %v2742 = vpop.f32.mrb[0].mxu0
      %v2743 = vpop.f32.mrb[0].mxu0
      %v2744 = vadd.f32 0.0, %v2743
      %v2745 = vpop.f32.mrb[0].mxu0
      %2746 = vmatprep.mubr.bf16.mxu0 0
      %2747 = vmatmul.mubr.bf16.gmra.mrb[0].mxu0 %v2590
      %v2748 = vpop.f32.mrb[0].mxu0
      %v2749 = vadd.f32 0.0, %v2748
      %v2750 = vpop.f32.mrb[0].mxu0
      %v2751 = vpop.f32.mrb[0].mxu0
      %v2752 = vadd.f32 0.0, %v2751
      %v2753 = vpop.f32.mrb[0].mxu0
      %2754 = vmatprep.mubr.bf16.mxu0 0
      %2755 = vmatmul.mubr.bf16.gmra.mrb[0].mxu0 %v2593
      %v2756 = vpop.f32.mrb[0].mxu0
      %v2757 = vadd.f32 0.0, %v2756
      %v2758 = vpop.f32.mrb[0].mxu0
      %v2759 = vpop.f32.mrb[0].mxu0
      %v2760 = vadd.f32 0.0, %v2759
      %v2761 = vpop.f32.mrb[0].mxu0
      %2762 = vmatprep.mubr.bf16.mxu0 0
      %2763 = vmatmul.mubr.bf16.gmra.mrb[0].mxu0 %v2596
      %v2764 = vpop.f32.mrb[0].mxu0
      %v2765 = vadd.f32 0.0, %v2764
      %v2766 = vpop.f32.mrb[0].mxu0
      %v2767 = vpop.f32.mrb[0].mxu0
      %v2768 = vadd.f32 0.0, %v2767
      %v2769 = vpop.f32.mrb[0].mxu0
      %2770 = vmatprep.mubr.bf16.mxu0 0
      %2771 = vmatmul.mubr.bf16.gmra.mrb[0].mxu0 %v2599
      %v2772 = vpop.f32.mrb[0].mxu0
      %v2773 = vadd.f32 0.0, %v2772
      %v2774 = vpop.f32.mrb[0].mxu0
      %v2775 = vpop.f32.mrb[0].mxu0
      %v2776 = vadd.f32 0.0, %v2775
      %v2777 = vpop.f32.mrb[0].mxu0
      %2778 = vmatprep.mubr.bf16.mxu0 0
      %2779 = vmatmul.mubr.bf16.gmra.mrb[0].mxu0 %v2602
      %v2780 = vpop.f32.mrb[0].mxu0
      %v2781 = vadd.f32 0.0, %v2780
      %v2782 = vpop.f32.mrb[0].mxu0
      %v2783 = vpop.f32.mrb[0].mxu0
      %v2784 = vadd.f32 0.0, %v2783
      %v2785 = vpop.f32.mrb[0].mxu0
      %2786 = vmatprep.mubr.bf16.mxu0 0
      %2787 = vmatmul.mubr.bf16.gmra.mrb[0].mxu0 %v2605
      %v2788 = vpop.f32.mrb[0].mxu0
      %v2789 = vadd.f32 0.0, %v2788
      %v2790 = vpop.f32.mrb[0].mxu0
      %v2791 = vpop.f32.mrb[0].mxu0
      %v2792 = vadd.f32 0.0, %v2791
      %v2793 = vpop.f32.mrb[0].mxu0
      %2794 = vmatprep.mubr.bf16.mxu0 0
      %2795 = vmatmul.mubr.bf16.gmra.mrb[0].mxu0 %v2608
      %v2796 = vpop.f32.mrb[0].mxu0
      %v2797 = vadd.f32 0.0, %v2796
      %v2798 = vpop.f32.mrb[0].mxu0
      %v2799 = vpop.f32.mrb[0].mxu0
      %v2800 = vadd.f32 0.0, %v2799
      %v2801 = vpop.f32.mrb[0].mxu0
      %2802 = vmatprep.mubr.bf16.mxu0 0
      %2803 = vmatmul.mubr.bf16.gmra.mrb[0].mxu0 %v2611
      %v2804 = vpop.f32.mrb[0].mxu0
      %v2805 = vadd.f32 0.0, %v2804
      %v2806 = vpop.f32.mrb[0].mxu0
      %v2807 = vpop.f32.mrb[0].mxu0
      %v2808 = vadd.f32 0.0, %v2807
      %v2809 = vpop.f32.mrb[0].mxu0
      %2810 = vmatprep.mubr.bf16.mxu0 0
      %2811 = vmatmul.mubr.bf16.gmra.mrb[0].mxu0 %v2614
      %v2812 = vpop.f32.mrb[0].mxu0
      %v2813 = vadd.f32 0.0, %v2812
      %v2814 = vpop.f32.mrb[0].mxu0
      %v2815 = vpop.f32.mrb[0].mxu0
      %v2816 = vadd.f32 0.0, %v2815
      %v2817 = vpop.f32.mrb[0].mxu0
      %2818 = vmatprep.mubr.bf16.mxu0 0
      %2819 = vmatmul.mubr.bf16.gmra.mrb[0].mxu0 %v2617
      %v2820 = vpop.f32.mrb[0].mxu0
      %v2821 = vadd.f32 0.0, %v2820
      %v2822 = vpop.f32.mrb[0].mxu0
      %v2823 = vpop.f32.mrb[0].mxu0
      %v2824 = vadd.f32 0.0, %v2823
      %v2825 = vpop.f32.mrb[0].mxu0
      %2826 = vmatprep.mubr.bf16.mxu0 0
      %2827 = vmatmul.mubr.bf16.gmra.mrb[0].mxu0 %v2620
      %v2828 = vpop.f32.mrb[0].mxu0
      %v2829 = vadd.f32 0.0, %v2828
      %v2830 = vpop.f32.mrb[0].mxu0
      %v2831 = vpop.f32.mrb[0].mxu0
      %v2832 = vadd.f32 0.0, %v2831
      %v2833 = vpop.f32.mrb[0].mxu0
      %2834 = vmatprep.mubr.bf16.mxu0 0
      %2835 = vmatmul.mubr.bf16.gmra.mrb[0].mxu0 %v2623
      %v2836 = vpop.f32.mrb[0].mxu0
      %v2837 = vadd.f32 0.0, %v2836
      %v2838 = vpop.f32.mrb[0].mxu0
      %v2839 = vpop.f32.mrb[0].mxu0
      %v2840 = vadd.f32 0.0, %v2839
      %v2841 = vpop.f32.mrb[0].mxu0
      %2842 = vmatprep.mubr.bf16.mxu0 0
      %2843 = vmatmul.mubr.bf16.gmra.mrb[0].mxu0 %v2626
      %v2844 = vpop.f32.mrb[0].mxu0
      %v2845 = vadd.f32 0.0, %v2844
      %v2846 = vpop.f32.mrb[0].mxu0
      %v2847 = vpop.f32.mrb[0].mxu0
      %v2848 = vadd.f32 0.0, %v2847
      %v2849 = vpop.f32.mrb[0].mxu0
      %2850 = vmatprep.mubr.bf16.mxu0 0
      %2851 = vmatmul.mubr.bf16.gmra.mrb[0].mxu0 %v2629
      %v2852 = vpop.f32.mrb[0].mxu0
      %v2853 = vadd.f32 0.0, %v2852
      %v2854 = vpop.f32.mrb[0].mxu0
      %v2855 = vpop.f32.mrb[0].mxu0
      %v2856 = vadd.f32 0.0, %v2855
      %v2857 = vpop.f32.mrb[0].mxu0
      %2858 = vdwg.mxu0
      %v2859 = vadd.f32 %v2141, %v2669
      %v2860 = vadd.f32 %v2142, %v2672
      %v2861 = vadd.f32 %v2143, %v2677
      %v2862 = vadd.f32 %v2144, %v2680
      %v2863 = vadd.f32 %v2145, %v2685
      %v2864 = vadd.f32 %v2146, %v2688
      %v2865 = vadd.f32 %v2147, %v2693
      %v2866 = vadd.f32 %v2148, %v2696
      %v2867 = vadd.f32 %v2149, %v2701
      %v2868 = vadd.f32 %v2150, %v2704
      %v2869 = vadd.f32 %v2151, %v2709
      %v2870 = vadd.f32 %v2152, %v2712
      %v2871 = vadd.f32 %v2153, %v2717
      %v2872 = vadd.f32 %v2154, %v2720
      %v2873 = vadd.f32 %v2155, %v2725
      %v2874 = vadd.f32 %v2156, %v2728
      %v2875 = vadd.f32 %v2157, %v2733
      %v2876 = vadd.f32 %v2158, %v2736
      %v2877 = vadd.f32 %v2159, %v2741
      %v2878 = vadd.f32 %v2160, %v2744
      %v2879 = vadd.f32 %v2161, %v2749
      %v2880 = vadd.f32 %v2162, %v2752
      %v2881 = vadd.f32 %v2163, %v2757
      %v2882 = vadd.f32 %v2164, %v2760
      %v2883 = vadd.f32 %v2165, %v2765
      %v2884 = vadd.f32 %v2166, %v2768
      %v2885 = vadd.f32 %v2167, %v2773
      %v2886 = vadd.f32 %v2168, %v2776
      %v2887 = vadd.f32 %v2169, %v2781
      %v2888 = vadd.f32 %v2170, %v2784
      %v2889 = vadd.f32 %v2171, %v2789
      %v2890 = vadd.f32 %v2172, %v2792
      %v2891 = vadd.f32 %v2173, %v2797
      %v2892 = vadd.f32 %v2174, %v2800
      %v2893 = vadd.f32 %v2175, %v2805
      %v2894 = vadd.f32 %v2176, %v2808
      %v2895 = vadd.f32 %v2177, %v2813
      %v2896 = vadd.f32 %v2178, %v2816
      %v2897 = vadd.f32 %v2179, %v2821
      %v2898 = vadd.f32 %v2180, %v2824
      %v2899 = vadd.f32 %v2181, %v2829
      %v2900 = vadd.f32 %v2182, %v2832
      %v2901 = vadd.f32 %v2183, %v2837
      %v2902 = vadd.f32 %v2184, %v2840
      %v2903 = vadd.f32 %v2185, %v2845
      %v2904 = vadd.f32 %v2186, %v2848
      %v2905 = vadd.f32 %v2187, %v2853
      %v2906 = vadd.f32 %v2188, %v2856
      %v2907 = vld [vmem:[%s286 + $0xc] sm:$0xe]
      %s2908 = scalar_lea.vmem %s290, 10
      %v2909 = vld [vmem:[%s2908] sm:$0x3]
      %v2911 = vunpack.c.l.b16 %v2907
      %v2912 = vpack.c.b16 %v2290, %v2911
      %v2913 = vrot.slane %v2912, 1
      %v2914 = vrot.slane %v2339, 1
      %v2915 = vsel %vm1273, %v2913, %v2914
      %v2916 = vrot.slane %v2340, 1
      %v2917 = vsel %vm1273, %v2914, %v2916
      %v2918 = vrot.slane %v2341, 1
      %v2919 = vsel %vm1273, %v2916, %v2918
      %v2920 = vrot.slane %v2342, 1
      %v2921 = vsel %vm1273, %v2918, %v2920
      %v2922 = vrot.slane %v2343, 1
      %v2923 = vsel %vm1273, %v2920, %v2922
      %v2924 = vrot.slane %v2344, 1
      %v2925 = vsel %vm1273, %v2922, %v2924
      %v2926 = vrot.slane %v2345, 1
      %v2927 = vsel %vm1273, %v2924, %v2926
      %v2928 = vrot.slane %v2346, 1
      %v2929 = vsel %vm1273, %v2926, %v2928
      %v2930 = vrot.slane %v2347, 1
      %v2931 = vsel %vm1273, %v2928, %v2930
      %v2932 = vrot.slane %v2348, 1
      %v2933 = vsel %vm1273, %v2930, %v2932
      %v2934 = vrot.slane %v2349, 1
      %v2935 = vsel %vm1273, %v2932, %v2934
      %v2936 = vrot.slane %v2350, 1
      %v2937 = vsel %vm1273, %v2934, %v2936
      %v2938 = vrot.slane %v2351, 1
      %v2939 = vsel %vm1273, %v2936, %v2938
      %v2940 = vrot.slane %v2352, 1
      %v2941 = vsel %vm1273, %v2938, %v2940
      %v2942 = vrot.slane %v2353, 1
      %v2943 = vsel %vm1273, %v2940, %v2942
      %v2944 = vrot.slane %v2354, 1
      %v2945 = vsel %vm1273, %v2942, %v2944
      %v2946 = vrot.slane %v2355, 1
      %v2947 = vsel %vm1273, %v2944, %v2946
      %v2948 = vrot.slane %v2356, 1
      %v2949 = vsel %vm1273, %v2946, %v2948
      %v2950 = vrot.slane %v2357, 1
      %v2951 = vsel %vm1273, %v2948, %v2950
      %v2952 = vrot.slane %v2358, 1
      %v2953 = vsel %vm1273, %v2950, %v2952
      %v2954 = vrot.slane %v2359, 1
      %v2955 = vsel %vm1273, %v2952, %v2954
      %v2956 = vrot.slane %v2360, 1
      %v2957 = vsel %vm1273, %v2954, %v2956
      %v2958 = vrot.slane %v2361, 1
      %v2959 = vsel %vm1273, %v2956, %v2958
      %v2960 = vrot.slane %v2362, 1
      %v2961 = vsel %vm1273, %v2958, %v2960
      %v2963 = vsel %vm689, %v2915, 0
      %v2966 = vsel %vm689, %v2917, 0
      %v2969 = vsel %vm689, %v2919, 0
      %v2972 = vsel %vm689, %v2921, 0
      %v2975 = vsel %vm689, %v2923, 0
      %v2978 = vsel %vm689, %v2925, 0
      %v2981 = vsel %vm689, %v2927, 0
      %v2984 = vsel %vm689, %v2929, 0
      %v2987 = vsel %vm689, %v2931, 0
      %v2990 = vsel %vm689, %v2933, 0
      %v2993 = vsel %vm689, %v2935, 0
      %v2996 = vsel %vm689, %v2937, 0
      %v2999 = vsel %vm689, %v2939, 0
      %v3002 = vsel %vm689, %v2941, 0
      %v3005 = vsel %vm689, %v2943, 0
      %v3008 = vsel %vm689, %v2945, 0
      %v3011 = vsel %vm689, %v2947, 0
      %v3014 = vsel %vm689, %v2949, 0
      %v3017 = vsel %vm689, %v2951, 0
      %v3020 = vsel %vm689, %v2953, 0
      %v3023 = vsel %vm689, %v2955, 0
      %v3026 = vsel %vm689, %v2957, 0
      %v3029 = vsel %vm689, %v2959, 0
      %v3032 = vsel %vm689, %v2961, 0
      %v3035 = vsel %vm762, %v2909, 0
      %3037 = vmatprep.subr.bf16.mxu0 0
      %3038 = vmatpush1.bf16.msra.mxu0 %v3035
      %3039 = vmatprep.subr.bf16.mxu0 0
      %3040 = vmatpush1.bf16.msra.mxu0 0
      %3041 = vmatprep.subr.bf16.mxu0 0
      %3042 = vmatpush1.bf16.msra.mxu0 0
      %3043 = vmatprep.subr.bf16.mxu0 0
      %3044 = vmatpush1.bf16.msra.mxu0 0
      %3045 = vmatprep.subr.bf16.mxu0 0
      %3046 = vmatpush1.bf16.msra.mxu0 0
      %3047 = vmatprep.subr.bf16.mxu0 0
      %3048 = vmatpush1.bf16.msra.mxu0 0
      %3049 = vmatprep.subr.bf16.mxu0 0
      %3050 = vmatpush1.bf16.msra.mxu0 0
      %3051 = vmatprep.subr.bf16.mxu0 0
      %3052 = vmatpush1.bf16.msra.mxu0 0
      %3053 = vmatprep.subr.bf16.mxu0 0
      %3054 = vmatpush1.bf16.msra.mxu0 0
      %3055 = vmatprep.subr.bf16.mxu0 0
      %3056 = vmatpush1.bf16.msra.mxu0 0
      %3057 = vmatprep.subr.bf16.mxu0 0
      %3058 = vmatpush1.bf16.msra.mxu0 0
      %3059 = vmatprep.subr.bf16.mxu0 0
      %3060 = vmatpush1.bf16.msra.mxu0 0
      %3061 = vmatprep.subr.bf16.mxu0 0
      %3062 = vmatpush1.bf16.msra.mxu0 0
      %3063 = vmatprep.subr.bf16.mxu0 0
      %3064 = vmatpush1.bf16.msra.mxu0 0
      %3065 = vmatprep.subr.bf16.mxu0 0
      %3066 = vmatpush1.bf16.msra.mxu0 0
      %3067 = vmatprep.subr.bf16.mxu0 0
      %3068 = vmatpush1.bf16.msra.mxu0 0
      %3069 = vmatprep.mubr.bf16.mxu0 0
      %3070 = vmatmul.mubr.bf16.gmra.mrb[0].mxu0 %v2963
      %v3071 = vpop.f32.mrb[0].mxu0
      %v3072 = vadd.f32 0.0, %v3071
      %v3073 = vpop.f32.mrb[0].mxu0
      %v3074 = vpop.f32.mrb[0].mxu0
      %v3075 = vadd.f32 0.0, %v3074
      %v3076 = vpop.f32.mrb[0].mxu0
      %3077 = vmatprep.mubr.bf16.mxu0 0
      %3078 = vmatmul.mubr.bf16.gmra.mrb[0].mxu0 %v2966
      %v3079 = vpop.f32.mrb[0].mxu0
      %v3080 = vadd.f32 0.0, %v3079
      %v3081 = vpop.f32.mrb[0].mxu0
      %v3082 = vpop.f32.mrb[0].mxu0
      %v3083 = vadd.f32 0.0, %v3082
      %v3084 = vpop.f32.mrb[0].mxu0
      %3085 = vmatprep.mubr.bf16.mxu0 0
      %3086 = vmatmul.mubr.bf16.gmra.mrb[0].mxu0 %v2969
      %v3087 = vpop.f32.mrb[0].mxu0
      %v3088 = vadd.f32 0.0, %v3087
      %v3089 = vpop.f32.mrb[0].mxu0
      %v3090 = vpop.f32.mrb[0].mxu0
      %v3091 = vadd.f32 0.0, %v3090
      %v3092 = vpop.f32.mrb[0].mxu0
      %3093 = vmatprep.mubr.bf16.mxu0 0
      %3094 = vmatmul.mubr.bf16.gmra.mrb[0].mxu0 %v2972
      %v3095 = vpop.f32.mrb[0].mxu0
      %v3096 = vadd.f32 0.0, %v3095
      %v3097 = vpop.f32.mrb[0].mxu0
      %v3098 = vpop.f32.mrb[0].mxu0
      %v3099 = vadd.f32 0.0, %v3098
      %v3100 = vpop.f32.mrb[0].mxu0
      %3101 = vmatprep.mubr.bf16.mxu0 0
      %3102 = vmatmul.mubr.bf16.gmra.mrb[0].mxu0 %v2975
      %v3103 = vpop.f32.mrb[0].mxu0
      %v3104 = vadd.f32 0.0, %v3103
      %v3105 = vpop.f32.mrb[0].mxu0
      %v3106 = vpop.f32.mrb[0].mxu0
      %v3107 = vadd.f32 0.0, %v3106
      %v3108 = vpop.f32.mrb[0].mxu0
      %3109 = vmatprep.mubr.bf16.mxu0 0
      %3110 = vmatmul.mubr.bf16.gmra.mrb[0].mxu0 %v2978
      %v3111 = vpop.f32.mrb[0].mxu0
      %v3112 = vadd.f32 0.0, %v3111
      %v3113 = vpop.f32.mrb[0].mxu0
      %v3114 = vpop.f32.mrb[0].mxu0
      %v3115 = vadd.f32 0.0, %v3114
      %v3116 = vpop.f32.mrb[0].mxu0
      %3117 = vmatprep.mubr.bf16.mxu0 0
      %3118 = vmatmul.mubr.bf16.gmra.mrb[0].mxu0 %v2981
      %v3119 = vpop.f32.mrb[0].mxu0
      %v3120 = vadd.f32 0.0, %v3119
      %v3121 = vpop.f32.mrb[0].mxu0
      %v3122 = vpop.f32.mrb[0].mxu0
      %v3123 = vadd.f32 0.0, %v3122
      %v3124 = vpop.f32.mrb[0].mxu0
      %3125 = vmatprep.mubr.bf16.mxu0 0
      %3126 = vmatmul.mubr.bf16.gmra.mrb[0].mxu0 %v2984
      %v3127 = vpop.f32.mrb[0].mxu0
      %v3128 = vadd.f32 0.0, %v3127
      %v3129 = vpop.f32.mrb[0].mxu0
      %v3130 = vpop.f32.mrb[0].mxu0
      %v3131 = vadd.f32 0.0, %v3130
      %v3132 = vpop.f32.mrb[0].mxu0
      %3133 = vmatprep.mubr.bf16.mxu0 0
      %3134 = vmatmul.mubr.bf16.gmra.mrb[0].mxu0 %v2987
      %v3135 = vpop.f32.mrb[0].mxu0
      %v3136 = vadd.f32 0.0, %v3135
      %v3137 = vpop.f32.mrb[0].mxu0
      %v3138 = vpop.f32.mrb[0].mxu0
      %v3139 = vadd.f32 0.0, %v3138
      %v3140 = vpop.f32.mrb[0].mxu0
      %3141 = vmatprep.mubr.bf16.mxu0 0
      %3142 = vmatmul.mubr.bf16.gmra.mrb[0].mxu0 %v2990
      %v3143 = vpop.f32.mrb[0].mxu0
      %v3144 = vadd.f32 0.0, %v3143
      %v3145 = vpop.f32.mrb[0].mxu0
      %v3146 = vpop.f32.mrb[0].mxu0
      %v3147 = vadd.f32 0.0, %v3146
      %v3148 = vpop.f32.mrb[0].mxu0
      %3149 = vmatprep.mubr.bf16.mxu0 0
      %3150 = vmatmul.mubr.bf16.gmra.mrb[0].mxu0 %v2993
      %v3151 = vpop.f32.mrb[0].mxu0
      %v3152 = vadd.f32 0.0, %v3151
      %v3153 = vpop.f32.mrb[0].mxu0
      %v3154 = vpop.f32.mrb[0].mxu0
      %v3155 = vadd.f32 0.0, %v3154
      %v3156 = vpop.f32.mrb[0].mxu0
      %3157 = vmatprep.mubr.bf16.mxu0 0
      %3158 = vmatmul.mubr.bf16.gmra.mrb[0].mxu0 %v2996
      %v3159 = vpop.f32.mrb[0].mxu0
      %v3160 = vadd.f32 0.0, %v3159
      %v3161 = vpop.f32.mrb[0].mxu0
      %v3162 = vpop.f32.mrb[0].mxu0
      %v3163 = vadd.f32 0.0, %v3162
      %v3164 = vpop.f32.mrb[0].mxu0
      %3165 = vmatprep.mubr.bf16.mxu0 0
      %3166 = vmatmul.mubr.bf16.gmra.mrb[0].mxu0 %v2999
      %v3167 = vpop.f32.mrb[0].mxu0
      %v3168 = vadd.f32 0.0, %v3167
      %v3169 = vpop.f32.mrb[0].mxu0
      %v3170 = vpop.f32.mrb[0].mxu0
      %v3171 = vadd.f32 0.0, %v3170
      %v3172 = vpop.f32.mrb[0].mxu0
      %3173 = vmatprep.mubr.bf16.mxu0 0
      %3174 = vmatmul.mubr.bf16.gmra.mrb[0].mxu0 %v3002
      %v3175 = vpop.f32.mrb[0].mxu0
      %v3176 = vadd.f32 0.0, %v3175
      %v3177 = vpop.f32.mrb[0].mxu0
      %v3178 = vpop.f32.mrb[0].mxu0
      %v3179 = vadd.f32 0.0, %v3178
      %v3180 = vpop.f32.mrb[0].mxu0
      %3181 = vmatprep.mubr.bf16.mxu0 0
      %3182 = vmatmul.mubr.bf16.gmra.mrb[0].mxu0 %v3005
      %v3183 = vpop.f32.mrb[0].mxu0
      %v3184 = vadd.f32 0.0, %v3183
      %v3185 = vpop.f32.mrb[0].mxu0
      %v3186 = vpop.f32.mrb[0].mxu0
      %v3187 = vadd.f32 0.0, %v3186
      %v3188 = vpop.f32.mrb[0].mxu0
      %3189 = vmatprep.mubr.bf16.mxu0 0
      %3190 = vmatmul.mubr.bf16.gmra.mrb[0].mxu0 %v3008
      %v3191 = vpop.f32.mrb[0].mxu0
      %v3192 = vadd.f32 0.0, %v3191
      %v3193 = vpop.f32.mrb[0].mxu0
      %v3194 = vpop.f32.mrb[0].mxu0
      %v3195 = vadd.f32 0.0, %v3194
      %v3196 = vpop.f32.mrb[0].mxu0
      %3197 = vmatprep.mubr.bf16.mxu0 0
      %3198 = vmatmul.mubr.bf16.gmra.mrb[0].mxu0 %v3011
      %v3199 = vpop.f32.mrb[0].mxu0
      %v3200 = vadd.f32 0.0, %v3199
      %v3201 = vpop.f32.mrb[0].mxu0
      %v3202 = vpop.f32.mrb[0].mxu0
      %v3203 = vadd.f32 0.0, %v3202
      %v3204 = vpop.f32.mrb[0].mxu0
      %3205 = vmatprep.mubr.bf16.mxu0 0
      %3206 = vmatmul.mubr.bf16.gmra.mrb[0].mxu0 %v3014
      %v3207 = vpop.f32.mrb[0].mxu0
      %v3208 = vadd.f32 0.0, %v3207
      %v3209 = vpop.f32.mrb[0].mxu0
      %v3210 = vpop.f32.mrb[0].mxu0
      %v3211 = vadd.f32 0.0, %v3210
      %v3212 = vpop.f32.mrb[0].mxu0
      %3213 = vmatprep.mubr.bf16.mxu0 0
      %3214 = vmatmul.mubr.bf16.gmra.mrb[0].mxu0 %v3017
      %v3215 = vpop.f32.mrb[0].mxu0
      %v3216 = vadd.f32 0.0, %v3215
      %v3217 = vpop.f32.mrb[0].mxu0
      %v3218 = vpop.f32.mrb[0].mxu0
      %v3219 = vadd.f32 0.0, %v3218
      %v3220 = vpop.f32.mrb[0].mxu0
      %3221 = vmatprep.mubr.bf16.mxu0 0
      %3222 = vmatmul.mubr.bf16.gmra.mrb[0].mxu0 %v3020
      %v3223 = vpop.f32.mrb[0].mxu0
      %v3224 = vadd.f32 0.0, %v3223
      %v3225 = vpop.f32.mrb[0].mxu0
      %v3226 = vpop.f32.mrb[0].mxu0
      %v3227 = vadd.f32 0.0, %v3226
      %v3228 = vpop.f32.mrb[0].mxu0
      %3229 = vmatprep.mubr.bf16.mxu0 0
      %3230 = vmatmul.mubr.bf16.gmra.mrb[0].mxu0 %v3023
      %v3231 = vpop.f32.mrb[0].mxu0
      %v3232 = vadd.f32 0.0, %v3231
      %v3233 = vpop.f32.mrb[0].mxu0
      %v3234 = vpop.f32.mrb[0].mxu0
      %v3235 = vadd.f32 0.0, %v3234
      %v3236 = vpop.f32.mrb[0].mxu0
      %3237 = vmatprep.mubr.bf16.mxu0 0
      %3238 = vmatmul.mubr.bf16.gmra.mrb[0].mxu0 %v3026
      %v3239 = vpop.f32.mrb[0].mxu0
      %v3240 = vadd.f32 0.0, %v3239
      %v3241 = vpop.f32.mrb[0].mxu0
      %v3242 = vpop.f32.mrb[0].mxu0
      %v3243 = vadd.f32 0.0, %v3242
      %v3244 = vpop.f32.mrb[0].mxu0
      %3245 = vmatprep.mubr.bf16.mxu0 0
      %3246 = vmatmul.mubr.bf16.gmra.mrb[0].mxu0 %v3029
      %v3247 = vpop.f32.mrb[0].mxu0
      %v3248 = vadd.f32 0.0, %v3247
      %v3249 = vpop.f32.mrb[0].mxu0
      %v3250 = vpop.f32.mrb[0].mxu0
      %v3251 = vadd.f32 0.0, %v3250
      %v3252 = vpop.f32.mrb[0].mxu0
      %3253 = vmatprep.mubr.bf16.mxu0 0
      %3254 = vmatmul.mubr.bf16.gmra.mrb[0].mxu0 %v3032
      %v3255 = vpop.f32.mrb[0].mxu0
      %v3256 = vadd.f32 0.0, %v3255
      %v3257 = vpop.f32.mrb[0].mxu0
      %v3258 = vpop.f32.mrb[0].mxu0
      %v3259 = vadd.f32 0.0, %v3258
      %v3260 = vpop.f32.mrb[0].mxu0
      %3261 = vdwg.mxu0
      %v3262 = vadd.f32 %v2859, %v3072
      %v3263 = vadd.f32 %v2860, %v3075
      %v3264 = vadd.f32 %v2861, %v3080
      %v3265 = vadd.f32 %v2862, %v3083
      %v3266 = vadd.f32 %v2863, %v3088
      %v3267 = vadd.f32 %v2864, %v3091
      %v3268 = vadd.f32 %v2865, %v3096
      %v3269 = vadd.f32 %v2866, %v3099
      %v3270 = vadd.f32 %v2867, %v3104
      %v3271 = vadd.f32 %v2868, %v3107
      %v3272 = vadd.f32 %v2869, %v3112
      %v3273 = vadd.f32 %v2870, %v3115
      %v3274 = vadd.f32 %v2871, %v3120
      %v3275 = vadd.f32 %v2872, %v3123
      %v3276 = vadd.f32 %v2873, %v3128
      %v3277 = vadd.f32 %v2874, %v3131
      %v3278 = vadd.f32 %v2875, %v3136
      %v3279 = vadd.f32 %v2876, %v3139
      %v3280 = vadd.f32 %v2877, %v3144
      %v3281 = vadd.f32 %v2878, %v3147
      %v3282 = vadd.f32 %v2879, %v3152
      %v3283 = vadd.f32 %v2880, %v3155
      %v3284 = vadd.f32 %v2881, %v3160
      %v3285 = vadd.f32 %v2882, %v3163
      %v3286 = vadd.f32 %v2883, %v3168
      %v3287 = vadd.f32 %v2884, %v3171
      %v3288 = vadd.f32 %v2885, %v3176
      %v3289 = vadd.f32 %v2886, %v3179
      %v3290 = vadd.f32 %v2887, %v3184
      %v3291 = vadd.f32 %v2888, %v3187
      %v3292 = vadd.f32 %v2889, %v3192
      %v3293 = vadd.f32 %v2890, %v3195
      %v3294 = vadd.f32 %v2891, %v3200
      %v3295 = vadd.f32 %v2892, %v3203
      %v3296 = vadd.f32 %v2893, %v3208
      %v3297 = vadd.f32 %v2894, %v3211
      %v3298 = vadd.f32 %v2895, %v3216
      %v3299 = vadd.f32 %v2896, %v3219
      %v3300 = vadd.f32 %v2897, %v3224
      %v3301 = vadd.f32 %v2898, %v3227
      %v3302 = vadd.f32 %v2899, %v3232
      %v3303 = vadd.f32 %v2900, %v3235
      %v3304 = vadd.f32 %v2901, %v3240
      %v3305 = vadd.f32 %v2902, %v3243
      %v3306 = vadd.f32 %v2903, %v3248
      %v3307 = vadd.f32 %v2904, %v3251
      %v3308 = vadd.f32 %v2905, %v3256
      %v3309 = vadd.f32 %v2906, %v3259
      %v3310 = vld [vmem:[%s286 + $0x18] sm:$0xf]
      %v3311 = vld [vmem:[%s286 + $0x1c] sm:$0xf]
      %v3312 = vld [vmem:[%s286 + $0x20] sm:$0xf]
      %v3313 = vld [vmem:[%s286 + $0x24] sm:$0xf]
      %v3314 = vld [vmem:[%s286 + $0x28] sm:$0xf]
      %v3315 = vld [vmem:[%s286 + $0x2c] sm:$0xf]
      %v3316 = vld [vmem:[%s286 + $0x30] sm:$0xf]
      %v3317 = vld [vmem:[%s286 + $0x34] sm:$0xf]
      %v3318 = vld [vmem:[%s286 + $0x38] sm:$0xf]
      %v3319 = vld [vmem:[%s286 + $0x3c] sm:$0xf]
      %v3320 = vld [vmem:[%s286 + $0x40] sm:$0xf]
      %v3321 = vld [vmem:[%s286 + $0x44] sm:$0xf]
      %v3322 = vld [vmem:[%s286 + $0x48] sm:$0xf]
      %v3323 = vld [vmem:[%s286 + $0x4c] sm:$0xf]
      %v3324 = vld [vmem:[%s286 + $0x50] sm:$0xf]
      %v3325 = vld [vmem:[%s286 + $0x54] sm:$0xf]
      %v3326 = vld [vmem:[%s286 + $0x58] sm:$0xf]
      %v3327 = vld [vmem:[%s286 + $0x5c] sm:$0xf]
      %v3328 = vld [vmem:[%s286 + $0x60] sm:$0xf]
      %v3329 = vld [vmem:[%s286 + $0x64] sm:$0xf]
      %v3330 = vld [vmem:[%s286 + $0x68] sm:$0xf]
      %v3331 = vld [vmem:[%s286 + $0x6c] sm:$0xf]
      %v3332 = vld [vmem:[%s286 + $0x70] sm:$0xf]
      %v3333 = vld [vmem:[%s286 + $0x74] sm:$0xf]
      %v3334 = vld [vmem:[%s286 + $0x78] sm:$0xf]
      %v3335 = vld [vmem:[%s286 + $0x7c] sm:$0xf]
      %v3336 = vld [vmem:[%s286 + $0x80] sm:$0xf]
      %v3337 = vld [vmem:[%s286 + $0x84] sm:$0xf]
      %v3338 = vld [vmem:[%s286 + $0x88] sm:$0xf]
      %v3339 = vld [vmem:[%s286 + $0x8c] sm:$0xf]
      %v3340 = vld [vmem:[%s286 + $0x90] sm:$0xf]
      %v3341 = vld [vmem:[%s286 + $0x94] sm:$0xf]
      %v3342 = vld [vmem:[%s286 + $0x98] sm:$0xf]
      %v3343 = vld [vmem:[%s286 + $0x9c] sm:$0xf]
      %v3344 = vld [vmem:[%s286 + $0xa0] sm:$0xf]
      %v3345 = vld [vmem:[%s286 + $0xa4] sm:$0xf]
      %v3346 = vld [vmem:[%s286 + $0xa8] sm:$0xf]
      %v3347 = vld [vmem:[%s286 + $0xac] sm:$0xf]
      %v3348 = vld [vmem:[%s286 + $0xb0] sm:$0xf]
      %v3349 = vld [vmem:[%s286 + $0xb4] sm:$0xf]
      %v3350 = vld [vmem:[%s286 + $0xb8] sm:$0xf]
      %v3351 = vld [vmem:[%s286 + $0xbc] sm:$0xf]
      %v3352 = vld [vmem:[%s286 + $0xc0] sm:$0xf]
      %v3353 = vld [vmem:[%s286 + $0xc4] sm:$0xf]
      %v3354 = vld [vmem:[%s286 + $0xc8] sm:$0xf]
      %v3355 = vld [vmem:[%s286 + $0xcc] sm:$0xf]
      %v3356 = vld [vmem:[%s286 + $0xd0] sm:$0xf]
      %v3357 = vld [vmem:[%s286 + $0xd4] sm:$0xf]
      %s3358 = scalar_lea.vmem %s290, 12
      %v3359 = vld [vmem:[%s3358] sm:$0x3]
      %v3408 = vunpack.c.l.b16 %v3310
      %v3409 = vunpack.c.l.b16 %v3311
      %v3410 = vunpack.c.l.b16 %v3312
      %v3411 = vunpack.c.l.b16 %v3313
      %v3412 = vunpack.c.l.b16 %v3314
      %v3413 = vunpack.c.l.b16 %v3315
      %v3414 = vunpack.c.l.b16 %v3316
      %v3415 = vunpack.c.l.b16 %v3317
      %v3416 = vunpack.c.l.b16 %v3318
      %v3417 = vunpack.c.l.b16 %v3319
      %v3418 = vunpack.c.l.b16 %v3320
      %v3419 = vunpack.c.l.b16 %v3321
      %v3420 = vunpack.c.l.b16 %v3322
      %v3421 = vunpack.c.l.b16 %v3323
      %v3422 = vunpack.c.l.b16 %v3324
      %v3423 = vunpack.c.l.b16 %v3325
      %v3424 = vunpack.c.l.b16 %v3326
      %v3425 = vunpack.c.l.b16 %v3327
      %v3426 = vunpack.c.l.b16 %v3328
      %v3427 = vunpack.c.l.b16 %v3329
      %v3428 = vunpack.c.l.b16 %v3330
      %v3429 = vunpack.c.l.b16 %v3331
      %v3430 = vunpack.c.l.b16 %v3332
      %v3431 = vunpack.c.l.b16 %v3333
      %v3432 = vunpack.c.l.b16 %v3334
      %v3433 = vunpack.c.l.b16 %v3335
      %v3434 = vunpack.c.l.b16 %v3336
      %v3435 = vunpack.c.l.b16 %v3337
      %v3436 = vunpack.c.l.b16 %v3338
      %v3437 = vunpack.c.l.b16 %v3339
      %v3438 = vunpack.c.l.b16 %v3340
      %v3439 = vunpack.c.l.b16 %v3341
      %v3440 = vunpack.c.l.b16 %v3342
      %v3441 = vunpack.c.l.b16 %v3343
      %v3442 = vunpack.c.l.b16 %v3344
      %v3443 = vunpack.c.l.b16 %v3345
      %v3444 = vunpack.c.l.b16 %v3346
      %v3445 = vunpack.c.l.b16 %v3347
      %v3446 = vunpack.c.l.b16 %v3348
      %v3447 = vunpack.c.l.b16 %v3349
      %v3448 = vunpack.c.l.b16 %v3350
      %v3449 = vunpack.c.l.b16 %v3351
      %v3450 = vunpack.c.l.b16 %v3352
      %v3451 = vunpack.c.l.b16 %v3353
      %v3452 = vunpack.c.l.b16 %v3354
      %v3453 = vunpack.c.l.b16 %v3355
      %v3454 = vunpack.c.l.b16 %v3356
      %v3455 = vunpack.c.l.b16 %v3357
      %v3456 = vpack.c.b16 %v3409, %v3408
      %v3457 = vpack.c.b16 %v3411, %v3410
      %v3458 = vpack.c.b16 %v3413, %v3412
      %v3459 = vpack.c.b16 %v3415, %v3414
      %v3460 = vpack.c.b16 %v3417, %v3416
      %v3461 = vpack.c.b16 %v3419, %v3418
      %v3462 = vpack.c.b16 %v3421, %v3420
      %v3463 = vpack.c.b16 %v3423, %v3422
      %v3464 = vpack.c.b16 %v3425, %v3424
      %v3465 = vpack.c.b16 %v3427, %v3426
      %v3466 = vpack.c.b16 %v3429, %v3428
      %v3467 = vpack.c.b16 %v3431, %v3430
      %v3468 = vpack.c.b16 %v3433, %v3432
      %v3469 = vpack.c.b16 %v3435, %v3434
      %v3470 = vpack.c.b16 %v3437, %v3436
      %v3471 = vpack.c.b16 %v3439, %v3438
      %v3472 = vpack.c.b16 %v3441, %v3440
      %v3473 = vpack.c.b16 %v3443, %v3442
      %v3474 = vpack.c.b16 %v3445, %v3444
      %v3475 = vpack.c.b16 %v3447, %v3446
      %v3476 = vpack.c.b16 %v3449, %v3448
      %v3477 = vpack.c.b16 %v3451, %v3450
      %v3478 = vpack.c.b16 %v3453, %v3452
      %v3479 = vpack.c.b16 %v3455, %v3454
      %v3481 = vsel %vm689, %v3456, 0
      %v3484 = vsel %vm689, %v3457, 0
      %v3487 = vsel %vm689, %v3458, 0
      %v3490 = vsel %vm689, %v3459, 0
      %v3493 = vsel %vm689, %v3460, 0
      %v3496 = vsel %vm689, %v3461, 0
      %v3499 = vsel %vm689, %v3462, 0
      %v3502 = vsel %vm689, %v3463, 0
      %v3505 = vsel %vm689, %v3464, 0
      %v3508 = vsel %vm689, %v3465, 0
      %v3511 = vsel %vm689, %v3466, 0
      %v3514 = vsel %vm689, %v3467, 0
      %v3517 = vsel %vm689, %v3468, 0
      %v3520 = vsel %vm689, %v3469, 0
      %v3523 = vsel %vm689, %v3470, 0
      %v3526 = vsel %vm689, %v3471, 0
      %v3529 = vsel %vm689, %v3472, 0
      %v3532 = vsel %vm689, %v3473, 0
      %v3535 = vsel %vm689, %v3474, 0
      %v3538 = vsel %vm689, %v3475, 0
      %v3541 = vsel %vm689, %v3476, 0
      %v3544 = vsel %vm689, %v3477, 0
      %v3547 = vsel %vm689, %v3478, 0
      %v3550 = vsel %vm689, %v3479, 0
      %v3553 = vsel %vm762, %v3359, 0
      %3555 = vmatprep.subr.bf16.mxu0 0
      %3556 = vmatpush1.bf16.msra.mxu0 %v3553
      %3557 = vmatprep.subr.bf16.mxu0 0
      %3558 = vmatpush1.bf16.msra.mxu0 0
      %3559 = vmatprep.subr.bf16.mxu0 0
      %3560 = vmatpush1.bf16.msra.mxu0 0
      %3561 = vmatprep.subr.bf16.mxu0 0
      %3562 = vmatpush1.bf16.msra.mxu0 0
      %3563 = vmatprep.subr.bf16.mxu0 0
      %3564 = vmatpush1.bf16.msra.mxu0 0
      %3565 = vmatprep.subr.bf16.mxu0 0
      %3566 = vmatpush1.bf16.msra.mxu0 0
      %3567 = vmatprep.subr.bf16.mxu0 0
      %3568 = vmatpush1.bf16.msra.mxu0 0
      %3569 = vmatprep.subr.bf16.mxu0 0
      %3570 = vmatpush1.bf16.msra.mxu0 0
      %3571 = vmatprep.subr.bf16.mxu0 0
      %3572 = vmatpush1.bf16.msra.mxu0 0
      %3573 = vmatprep.subr.bf16.mxu0 0
      %3574 = vmatpush1.bf16.msra.mxu0 0
      %3575 = vmatprep.subr.bf16.mxu0 0
      %3576 = vmatpush1.bf16.msra.mxu0 0
      %3577 = vmatprep.subr.bf16.mxu0 0
      %3578 = vmatpush1.bf16.msra.mxu0 0
      %3579 = vmatprep.subr.bf16.mxu0 0
      %3580 = vmatpush1.bf16.msra.mxu0 0
      %3581 = vmatprep.subr.bf16.mxu0 0
      %3582 = vmatpush1.bf16.msra.mxu0 0
      %3583 = vmatprep.subr.bf16.mxu0 0
      %3584 = vmatpush1.bf16.msra.mxu0 0
      %3585 = vmatprep.subr.bf16.mxu0 0
      %3586 = vmatpush1.bf16.msra.mxu0 0
      %3587 = vmatprep.mubr.bf16.mxu0 0
      %3588 = vmatmul.mubr.bf16.gmra.mrb[0].mxu0 %v3481
      %v3589 = vpop.f32.mrb[0].mxu0
      %v3590 = vadd.f32 0.0, %v3589
      %v3591 = vpop.f32.mrb[0].mxu0
      %v3592 = vpop.f32.mrb[0].mxu0
      %v3593 = vadd.f32 0.0, %v3592
      %v3594 = vpop.f32.mrb[0].mxu0
      %3595 = vmatprep.mubr.bf16.mxu0 0
      %3596 = vmatmul.mubr.bf16.gmra.mrb[0].mxu0 %v3484
      %v3597 = vpop.f32.mrb[0].mxu0
      %v3598 = vadd.f32 0.0, %v3597
      %v3599 = vpop.f32.mrb[0].mxu0
      %v3600 = vpop.f32.mrb[0].mxu0
      %v3601 = vadd.f32 0.0, %v3600
      %v3602 = vpop.f32.mrb[0].mxu0
      %3603 = vmatprep.mubr.bf16.mxu0 0
      %3604 = vmatmul.mubr.bf16.gmra.mrb[0].mxu0 %v3487
      %v3605 = vpop.f32.mrb[0].mxu0
      %v3606 = vadd.f32 0.0, %v3605
      %v3607 = vpop.f32.mrb[0].mxu0
      %v3608 = vpop.f32.mrb[0].mxu0
      %v3609 = vadd.f32 0.0, %v3608
      %v3610 = vpop.f32.mrb[0].mxu0
      %3611 = vmatprep.mubr.bf16.mxu0 0
      %3612 = vmatmul.mubr.bf16.gmra.mrb[0].mxu0 %v3490
      %v3613 = vpop.f32.mrb[0].mxu0
      %v3614 = vadd.f32 0.0, %v3613
      %v3615 = vpop.f32.mrb[0].mxu0
      %v3616 = vpop.f32.mrb[0].mxu0
      %v3617 = vadd.f32 0.0, %v3616
      %v3618 = vpop.f32.mrb[0].mxu0
      %3619 = vmatprep.mubr.bf16.mxu0 0
      %3620 = vmatmul.mubr.bf16.gmra.mrb[0].mxu0 %v3493
      %v3621 = vpop.f32.mrb[0].mxu0
      %v3622 = vadd.f32 0.0, %v3621
      %v3623 = vpop.f32.mrb[0].mxu0
      %v3624 = vpop.f32.mrb[0].mxu0
      %v3625 = vadd.f32 0.0, %v3624
      %v3626 = vpop.f32.mrb[0].mxu0
      %3627 = vmatprep.mubr.bf16.mxu0 0
      %3628 = vmatmul.mubr.bf16.gmra.mrb[0].mxu0 %v3496
      %v3629 = vpop.f32.mrb[0].mxu0
      %v3630 = vadd.f32 0.0, %v3629
      %v3631 = vpop.f32.mrb[0].mxu0
      %v3632 = vpop.f32.mrb[0].mxu0
      %v3633 = vadd.f32 0.0, %v3632
      %v3634 = vpop.f32.mrb[0].mxu0
      %3635 = vmatprep.mubr.bf16.mxu0 0
      %3636 = vmatmul.mubr.bf16.gmra.mrb[0].mxu0 %v3499
      %v3637 = vpop.f32.mrb[0].mxu0
      %v3638 = vadd.f32 0.0, %v3637
      %v3639 = vpop.f32.mrb[0].mxu0
      %v3640 = vpop.f32.mrb[0].mxu0
      %v3641 = vadd.f32 0.0, %v3640
      %v3642 = vpop.f32.mrb[0].mxu0
      %3643 = vmatprep.mubr.bf16.mxu0 0
      %3644 = vmatmul.mubr.bf16.gmra.mrb[0].mxu0 %v3502
      %v3645 = vpop.f32.mrb[0].mxu0
      %v3646 = vadd.f32 0.0, %v3645
      %v3647 = vpop.f32.mrb[0].mxu0
      %v3648 = vpop.f32.mrb[0].mxu0
      %v3649 = vadd.f32 0.0, %v3648
      %v3650 = vpop.f32.mrb[0].mxu0
      %3651 = vmatprep.mubr.bf16.mxu0 0
      %3652 = vmatmul.mubr.bf16.gmra.mrb[0].mxu0 %v3505
      %v3653 = vpop.f32.mrb[0].mxu0
      %v3654 = vadd.f32 0.0, %v3653
      %v3655 = vpop.f32.mrb[0].mxu0
      %v3656 = vpop.f32.mrb[0].mxu0
      %v3657 = vadd.f32 0.0, %v3656
      %v3658 = vpop.f32.mrb[0].mxu0
      %3659 = vmatprep.mubr.bf16.mxu0 0
      %3660 = vmatmul.mubr.bf16.gmra.mrb[0].mxu0 %v3508
      %v3661 = vpop.f32.mrb[0].mxu0
      %v3662 = vadd.f32 0.0, %v3661
      %v3663 = vpop.f32.mrb[0].mxu0
      %v3664 = vpop.f32.mrb[0].mxu0
      %v3665 = vadd.f32 0.0, %v3664
      %v3666 = vpop.f32.mrb[0].mxu0
      %3667 = vmatprep.mubr.bf16.mxu0 0
      %3668 = vmatmul.mubr.bf16.gmra.mrb[0].mxu0 %v3511
      %v3669 = vpop.f32.mrb[0].mxu0
      %v3670 = vadd.f32 0.0, %v3669
      %v3671 = vpop.f32.mrb[0].mxu0
      %v3672 = vpop.f32.mrb[0].mxu0
      %v3673 = vadd.f32 0.0, %v3672
      %v3674 = vpop.f32.mrb[0].mxu0
      %3675 = vmatprep.mubr.bf16.mxu0 0
      %3676 = vmatmul.mubr.bf16.gmra.mrb[0].mxu0 %v3514
      %v3677 = vpop.f32.mrb[0].mxu0
      %v3678 = vadd.f32 0.0, %v3677
      %v3679 = vpop.f32.mrb[0].mxu0
      %v3680 = vpop.f32.mrb[0].mxu0
      %v3681 = vadd.f32 0.0, %v3680
      %v3682 = vpop.f32.mrb[0].mxu0
      %3683 = vmatprep.mubr.bf16.mxu0 0
      %3684 = vmatmul.mubr.bf16.gmra.mrb[0].mxu0 %v3517
      %v3685 = vpop.f32.mrb[0].mxu0
      %v3686 = vadd.f32 0.0, %v3685
      %v3687 = vpop.f32.mrb[0].mxu0
      %v3688 = vpop.f32.mrb[0].mxu0
      %v3689 = vadd.f32 0.0, %v3688
      %v3690 = vpop.f32.mrb[0].mxu0
      %3691 = vmatprep.mubr.bf16.mxu0 0
      %3692 = vmatmul.mubr.bf16.gmra.mrb[0].mxu0 %v3520
      %v3693 = vpop.f32.mrb[0].mxu0
      %v3694 = vadd.f32 0.0, %v3693
      %v3695 = vpop.f32.mrb[0].mxu0
      %v3696 = vpop.f32.mrb[0].mxu0
      %v3697 = vadd.f32 0.0, %v3696
      %v3698 = vpop.f32.mrb[0].mxu0
      %3699 = vmatprep.mubr.bf16.mxu0 0
      %3700 = vmatmul.mubr.bf16.gmra.mrb[0].mxu0 %v3523
      %v3701 = vpop.f32.mrb[0].mxu0
      %v3702 = vadd.f32 0.0, %v3701
      %v3703 = vpop.f32.mrb[0].mxu0
      %v3704 = vpop.f32.mrb[0].mxu0
      %v3705 = vadd.f32 0.0, %v3704
      %v3706 = vpop.f32.mrb[0].mxu0
      %3707 = vmatprep.mubr.bf16.mxu0 0
      %3708 = vmatmul.mubr.bf16.gmra.mrb[0].mxu0 %v3526
      %v3709 = vpop.f32.mrb[0].mxu0
      %v3710 = vadd.f32 0.0, %v3709
      %v3711 = vpop.f32.mrb[0].mxu0
      %v3712 = vpop.f32.mrb[0].mxu0
      %v3713 = vadd.f32 0.0, %v3712
      %v3714 = vpop.f32.mrb[0].mxu0
      %3715 = vmatprep.mubr.bf16.mxu0 0
      %3716 = vmatmul.mubr.bf16.gmra.mrb[0].mxu0 %v3529
      %v3717 = vpop.f32.mrb[0].mxu0
      %v3718 = vadd.f32 0.0, %v3717
      %v3719 = vpop.f32.mrb[0].mxu0
      %v3720 = vpop.f32.mrb[0].mxu0
      %v3721 = vadd.f32 0.0, %v3720
      %v3722 = vpop.f32.mrb[0].mxu0
      %3723 = vmatprep.mubr.bf16.mxu0 0
      %3724 = vmatmul.mubr.bf16.gmra.mrb[0].mxu0 %v3532
      %v3725 = vpop.f32.mrb[0].mxu0
      %v3726 = vadd.f32 0.0, %v3725
      %v3727 = vpop.f32.mrb[0].mxu0
      %v3728 = vpop.f32.mrb[0].mxu0
      %v3729 = vadd.f32 0.0, %v3728
      %v3730 = vpop.f32.mrb[0].mxu0
      %3731 = vmatprep.mubr.bf16.mxu0 0
      %3732 = vmatmul.mubr.bf16.gmra.mrb[0].mxu0 %v3535
      %v3733 = vpop.f32.mrb[0].mxu0
      %v3734 = vadd.f32 0.0, %v3733
      %v3735 = vpop.f32.mrb[0].mxu0
      %v3736 = vpop.f32.mrb[0].mxu0
      %v3737 = vadd.f32 0.0, %v3736
      %v3738 = vpop.f32.mrb[0].mxu0
      %3739 = vmatprep.mubr.bf16.mxu0 0
      %3740 = vmatmul.mubr.bf16.gmra.mrb[0].mxu0 %v3538
      %v3741 = vpop.f32.mrb[0].mxu0
      %v3742 = vadd.f32 0.0, %v3741
      %v3743 = vpop.f32.mrb[0].mxu0
      %v3744 = vpop.f32.mrb[0].mxu0
      %v3745 = vadd.f32 0.0, %v3744
      %v3746 = vpop.f32.mrb[0].mxu0
      %3747 = vmatprep.mubr.bf16.mxu0 0
      %3748 = vmatmul.mubr.bf16.gmra.mrb[0].mxu0 %v3541
      %v3749 = vpop.f32.mrb[0].mxu0
      %v3750 = vadd.f32 0.0, %v3749
      %v3751 = vpop.f32.mrb[0].mxu0
      %v3752 = vpop.f32.mrb[0].mxu0
      %v3753 = vadd.f32 0.0, %v3752
      %v3754 = vpop.f32.mrb[0].mxu0
      %3755 = vmatprep.mubr.bf16.mxu0 0
      %3756 = vmatmul.mubr.bf16.gmra.mrb[0].mxu0 %v3544
      %v3757 = vpop.f32.mrb[0].mxu0
      %v3758 = vadd.f32 0.0, %v3757
      %v3759 = vpop.f32.mrb[0].mxu0
      %v3760 = vpop.f32.mrb[0].mxu0
      %v3761 = vadd.f32 0.0, %v3760
      %v3762 = vpop.f32.mrb[0].mxu0
      %3763 = vmatprep.mubr.bf16.mxu0 0
      %3764 = vmatmul.mubr.bf16.gmra.mrb[0].mxu0 %v3547
      %v3765 = vpop.f32.mrb[0].mxu0
      %v3766 = vadd.f32 0.0, %v3765
      %v3767 = vpop.f32.mrb[0].mxu0
      %v3768 = vpop.f32.mrb[0].mxu0
      %v3769 = vadd.f32 0.0, %v3768
      %v3770 = vpop.f32.mrb[0].mxu0
      %3771 = vmatprep.mubr.bf16.mxu0 0
      %3772 = vmatmul.mubr.bf16.gmra.mrb[0].mxu0 %v3550
      %v3773 = vpop.f32.mrb[0].mxu0
      %v3774 = vadd.f32 0.0, %v3773
      %v3775 = vpop.f32.mrb[0].mxu0
      %v3776 = vpop.f32.mrb[0].mxu0
      %v3777 = vadd.f32 0.0, %v3776
      %v3778 = vpop.f32.mrb[0].mxu0
      %3779 = vdwg.mxu0
      %v3780 = vadd.f32 %v3262, %v3590
      %v3781 = vadd.f32 %v3263, %v3593
      %v3782 = vadd.f32 %v3264, %v3598
      %v3783 = vadd.f32 %v3265, %v3601
      %v3784 = vadd.f32 %v3266, %v3606
      %v3785 = vadd.f32 %v3267, %v3609
      %v3786 = vadd.f32 %v3268, %v3614
      %v3787 = vadd.f32 %v3269, %v3617
      %v3788 = vadd.f32 %v3270, %v3622
      %v3789 = vadd.f32 %v3271, %v3625
      %v3790 = vadd.f32 %v3272, %v3630
      %v3791 = vadd.f32 %v3273, %v3633
      %v3792 = vadd.f32 %v3274, %v3638
      %v3793 = vadd.f32 %v3275, %v3641
      %v3794 = vadd.f32 %v3276, %v3646
      %v3795 = vadd.f32 %v3277, %v3649
      %v3796 = vadd.f32 %v3278, %v3654
      %v3797 = vadd.f32 %v3279, %v3657
      %v3798 = vadd.f32 %v3280, %v3662
      %v3799 = vadd.f32 %v3281, %v3665
      %v3800 = vadd.f32 %v3282, %v3670
      %v3801 = vadd.f32 %v3283, %v3673
      %v3802 = vadd.f32 %v3284, %v3678
      %v3803 = vadd.f32 %v3285, %v3681
      %v3804 = vadd.f32 %v3286, %v3686
      %v3805 = vadd.f32 %v3287, %v3689
      %v3806 = vadd.f32 %v3288, %v3694
      %v3807 = vadd.f32 %v3289, %v3697
      %v3808 = vadd.f32 %v3290, %v3702
      %v3809 = vadd.f32 %v3291, %v3705
      %v3810 = vadd.f32 %v3292, %v3710
      %v3811 = vadd.f32 %v3293, %v3713
      %v3812 = vadd.f32 %v3294, %v3718
      %v3813 = vadd.f32 %v3295, %v3721
      %v3814 = vadd.f32 %v3296, %v3726
      %v3815 = vadd.f32 %v3297, %v3729
      %v3816 = vadd.f32 %v3298, %v3734
      %v3817 = vadd.f32 %v3299, %v3737
      %v3818 = vadd.f32 %v3300, %v3742
      %v3819 = vadd.f32 %v3301, %v3745
      %v3820 = vadd.f32 %v3302, %v3750
      %v3821 = vadd.f32 %v3303, %v3753
      %v3822 = vadd.f32 %v3304, %v3758
      %v3823 = vadd.f32 %v3305, %v3761
      %v3824 = vadd.f32 %v3306, %v3766
      %v3825 = vadd.f32 %v3307, %v3769
      %v3826 = vadd.f32 %v3308, %v3774
      %v3827 = vadd.f32 %v3309, %v3777
      %v3828 = vld [vmem:[%s286 + $0x18] sm:$0xf]
      %v3829 = vld [vmem:[%s286 + $0x1c] sm:$0xf]
      %v3830 = vld [vmem:[%s286 + $0x20] sm:$0xf]
      %v3831 = vld [vmem:[%s286 + $0x24] sm:$0xf]
      %v3832 = vld [vmem:[%s286 + $0x28] sm:$0xf]
      %v3833 = vld [vmem:[%s286 + $0x2c] sm:$0xf]
      %v3834 = vld [vmem:[%s286 + $0x30] sm:$0xf]
      %v3835 = vld [vmem:[%s286 + $0x34] sm:$0xf]
      %v3836 = vld [vmem:[%s286 + $0x38] sm:$0xf]
      %v3837 = vld [vmem:[%s286 + $0x3c] sm:$0xf]
      %v3838 = vld [vmem:[%s286 + $0x40] sm:$0xf]
      %v3839 = vld [vmem:[%s286 + $0x44] sm:$0xf]
      %v3840 = vld [vmem:[%s286 + $0x48] sm:$0xf]
      %v3841 = vld [vmem:[%s286 + $0x4c] sm:$0xf]
      %v3842 = vld [vmem:[%s286 + $0x50] sm:$0xf]
      %v3843 = vld [vmem:[%s286 + $0x54] sm:$0xf]
      %v3844 = vld [vmem:[%s286 + $0x58] sm:$0xf]
      %v3845 = vld [vmem:[%s286 + $0x5c] sm:$0xf]
      %v3846 = vld [vmem:[%s286 + $0x60] sm:$0xf]
      %v3847 = vld [vmem:[%s286 + $0x64] sm:$0xf]
      %v3848 = vld [vmem:[%s286 + $0x68] sm:$0xf]
      %v3849 = vld [vmem:[%s286 + $0x6c] sm:$0xf]
      %v3850 = vld [vmem:[%s286 + $0x70] sm:$0xf]
      %v3851 = vld [vmem:[%s286 + $0x74] sm:$0xf]
      %v3852 = vld [vmem:[%s286 + $0x78] sm:$0xf]
      %v3853 = vld [vmem:[%s286 + $0x7c] sm:$0xf]
      %v3854 = vld [vmem:[%s286 + $0x80] sm:$0xf]
      %v3855 = vld [vmem:[%s286 + $0x84] sm:$0xf]
      %v3856 = vld [vmem:[%s286 + $0x88] sm:$0xf]
      %v3857 = vld [vmem:[%s286 + $0x8c] sm:$0xf]
      %v3858 = vld [vmem:[%s286 + $0x90] sm:$0xf]
      %v3859 = vld [vmem:[%s286 + $0x94] sm:$0xf]
      %v3860 = vld [vmem:[%s286 + $0x98] sm:$0xf]
      %v3861 = vld [vmem:[%s286 + $0x9c] sm:$0xf]
      %v3862 = vld [vmem:[%s286 + $0xa0] sm:$0xf]
      %v3863 = vld [vmem:[%s286 + $0xa4] sm:$0xf]
      %v3864 = vld [vmem:[%s286 + $0xa8] sm:$0xf]
      %v3865 = vld [vmem:[%s286 + $0xac] sm:$0xf]
      %v3866 = vld [vmem:[%s286 + $0xb0] sm:$0xf]
      %v3867 = vld [vmem:[%s286 + $0xb4] sm:$0xf]
      %v3868 = vld [vmem:[%s286 + $0xb8] sm:$0xf]
      %v3869 = vld [vmem:[%s286 + $0xbc] sm:$0xf]
      %v3870 = vld [vmem:[%s286 + $0xc0] sm:$0xf]
      %v3871 = vld [vmem:[%s286 + $0xc4] sm:$0xf]
      %v3872 = vld [vmem:[%s286 + $0xc8] sm:$0xf]
      %v3873 = vld [vmem:[%s286 + $0xcc] sm:$0xf]
      %v3874 = vld [vmem:[%s286 + $0xd0] sm:$0xf]
      %v3875 = vld [vmem:[%s286 + $0xd4] sm:$0xf]
      %v3876 = vld [vmem:[%s286 + $0xd8] sm:$0x1]
      %s3877 = scalar_lea.vmem %s290, 14
      %v3878 = vld [vmem:[%s3877] sm:$0x3]
      %v3928 = vunpack.c.l.b16 %v3828
      %v3929 = vunpack.c.l.b16 %v3829
      %v3930 = vunpack.c.l.b16 %v3830
      %v3931 = vunpack.c.l.b16 %v3831
      %v3932 = vunpack.c.l.b16 %v3832
      %v3933 = vunpack.c.l.b16 %v3833
      %v3934 = vunpack.c.l.b16 %v3834
      %v3935 = vunpack.c.l.b16 %v3835
      %v3936 = vunpack.c.l.b16 %v3836
      %v3937 = vunpack.c.l.b16 %v3837
      %v3938 = vunpack.c.l.b16 %v3838
      %v3939 = vunpack.c.l.b16 %v3839
      %v3940 = vunpack.c.l.b16 %v3840
      %v3941 = vunpack.c.l.b16 %v3841
      %v3942 = vunpack.c.l.b16 %v3842
      %v3943 = vunpack.c.l.b16 %v3843
      %v3944 = vunpack.c.l.b16 %v3844
      %v3945 = vunpack.c.l.b16 %v3845
      %v3946 = vunpack.c.l.b16 %v3846
      %v3947 = vunpack.c.l.b16 %v3847
      %v3948 = vunpack.c.l.b16 %v3848
      %v3949 = vunpack.c.l.b16 %v3849
      %v3950 = vunpack.c.l.b16 %v3850
      %v3951 = vunpack.c.l.b16 %v3851
      %v3952 = vunpack.c.l.b16 %v3852
      %v3953 = vunpack.c.l.b16 %v3853
      %v3954 = vunpack.c.l.b16 %v3854
      %v3955 = vunpack.c.l.b16 %v3855
      %v3956 = vunpack.c.l.b16 %v3856
      %v3957 = vunpack.c.l.b16 %v3857
      %v3958 = vunpack.c.l.b16 %v3858
      %v3959 = vunpack.c.l.b16 %v3859
      %v3960 = vunpack.c.l.b16 %v3860
      %v3961 = vunpack.c.l.b16 %v3861
      %v3962 = vunpack.c.l.b16 %v3862
      %v3963 = vunpack.c.l.b16 %v3863
      %v3964 = vunpack.c.l.b16 %v3864
      %v3965 = vunpack.c.l.b16 %v3865
      %v3966 = vunpack.c.l.b16 %v3866
      %v3967 = vunpack.c.l.b16 %v3867
      %v3968 = vunpack.c.l.b16 %v3868
      %v3969 = vunpack.c.l.b16 %v3869
      %v3970 = vunpack.c.l.b16 %v3870
      %v3971 = vunpack.c.l.b16 %v3871
      %v3972 = vunpack.c.l.b16 %v3872
      %v3973 = vunpack.c.l.b16 %v3873
      %v3974 = vunpack.c.l.b16 %v3874
      %v3975 = vunpack.c.l.b16 %v3875
      %v3976 = vunpack.c.l.b16 %v3876
      %v3977 = vpack.c.b16 %v3929, %v3928
      %v3978 = vpack.c.b16 %v3931, %v3930
      %v3979 = vpack.c.b16 %v3933, %v3932
      %v3980 = vpack.c.b16 %v3935, %v3934
      %v3981 = vpack.c.b16 %v3937, %v3936
      %v3982 = vpack.c.b16 %v3939, %v3938
      %v3983 = vpack.c.b16 %v3941, %v3940
      %v3984 = vpack.c.b16 %v3943, %v3942
      %v3985 = vpack.c.b16 %v3945, %v3944
      %v3986 = vpack.c.b16 %v3947, %v3946
      %v3987 = vpack.c.b16 %v3949, %v3948
      %v3988 = vpack.c.b16 %v3951, %v3950
      %v3989 = vpack.c.b16 %v3953, %v3952
      %v3990 = vpack.c.b16 %v3955, %v3954
      %v3991 = vpack.c.b16 %v3957, %v3956
      %v3992 = vpack.c.b16 %v3959, %v3958
      %v3993 = vpack.c.b16 %v3961, %v3960
      %v3994 = vpack.c.b16 %v3963, %v3962
      %v3995 = vpack.c.b16 %v3965, %v3964
      %v3996 = vpack.c.b16 %v3967, %v3966
      %v3997 = vpack.c.b16 %v3969, %v3968
      %v3998 = vpack.c.b16 %v3971, %v3970
      %v3999 = vpack.c.b16 %v3973, %v3972
      %v4000 = vpack.c.b16 %v3975, %v3974
      %v4001 = vpack.c.b16 %v3976, %v3976
      %v4003 = vshrl.u32 %v3977, 16
      %v4005 = vshll.u32 %v3977, 16
      %v4007 = vrot.slane %v4005, 1
      %v4008 = vor.u32 %v4003, %v4007
      %v4010 = vshll.u32 %v3978, 16
      %v4012 = vrot.slane %v4010, 1
      %v4013 = vsel %vm492, %v4008, %v4012
      %v4014 = vshrl.u32 %v3978, 16
      %v4016 = vor.u32 %v4014, %v4012
      %v4018 = vshll.u32 %v3979, 16
      %v4020 = vrot.slane %v4018, 1
      %v4021 = vsel %vm492, %v4016, %v4020
      %v4022 = vshrl.u32 %v3979, 16
      %v4024 = vor.u32 %v4022, %v4020
      %v4026 = vshll.u32 %v3980, 16
      %v4028 = vrot.slane %v4026, 1
      %v4029 = vsel %vm492, %v4024, %v4028
      %v4030 = vshrl.u32 %v3980, 16
      %v4032 = vor.u32 %v4030, %v4028
      %v4034 = vshll.u32 %v3981, 16
      %v4036 = vrot.slane %v4034, 1
      %v4037 = vsel %vm492, %v4032, %v4036
      %v4038 = vshrl.u32 %v3981, 16
      %v4040 = vor.u32 %v4038, %v4036
      %v4042 = vshll.u32 %v3982, 16
      %v4044 = vrot.slane %v4042, 1
      %v4045 = vsel %vm492, %v4040, %v4044
      %v4046 = vshrl.u32 %v3982, 16
      %v4048 = vor.u32 %v4046, %v4044
      %v4050 = vshll.u32 %v3983, 16
      %v4052 = vrot.slane %v4050, 1
      %v4053 = vsel %vm492, %v4048, %v4052
      %v4054 = vshrl.u32 %v3983, 16
      %v4056 = vor.u32 %v4054, %v4052
      %v4058 = vshll.u32 %v3984, 16
      %v4060 = vrot.slane %v4058, 1
      %v4061 = vsel %vm492, %v4056, %v4060
      %v4062 = vshrl.u32 %v3984, 16
      %v4064 = vor.u32 %v4062, %v4060
      %v4066 = vshll.u32 %v3985, 16
      %v4068 = vrot.slane %v4066, 1
      %v4069 = vsel %vm492, %v4064, %v4068
      %v4070 = vshrl.u32 %v3985, 16
      %v4072 = vor.u32 %v4070, %v4068
      %v4074 = vshll.u32 %v3986, 16
      %v4076 = vrot.slane %v4074, 1
      %v4077 = vsel %vm492, %v4072, %v4076
      %v4078 = vshrl.u32 %v3986, 16
      %v4080 = vor.u32 %v4078, %v4076
      %v4082 = vshll.u32 %v3987, 16
      %v4084 = vrot.slane %v4082, 1
      %v4085 = vsel %vm492, %v4080, %v4084
      %v4086 = vshrl.u32 %v3987, 16
      %v4088 = vor.u32 %v4086, %v4084
      %v4090 = vshll.u32 %v3988, 16
      %v4092 = vrot.slane %v4090, 1
      %v4093 = vsel %vm492, %v4088, %v4092
      %v4094 = vshrl.u32 %v3988, 16
      %v4096 = vor.u32 %v4094, %v4092
      %v4098 = vshll.u32 %v3989, 16
      %v4100 = vrot.slane %v4098, 1
      %v4101 = vsel %vm492, %v4096, %v4100
      %v4102 = vshrl.u32 %v3989, 16
      %v4104 = vor.u32 %v4102, %v4100
      %v4106 = vshll.u32 %v3990, 16
      %v4108 = vrot.slane %v4106, 1
      %v4109 = vsel %vm492, %v4104, %v4108
      %v4110 = vshrl.u32 %v3990, 16
      %v4112 = vor.u32 %v4110, %v4108
      %v4114 = vshll.u32 %v3991, 16
      %v4116 = vrot.slane %v4114, 1
      %v4117 = vsel %vm492, %v4112, %v4116
      %v4118 = vshrl.u32 %v3991, 16
      %v4120 = vor.u32 %v4118, %v4116
      %v4122 = vshll.u32 %v3992, 16
      %v4124 = vrot.slane %v4122, 1
      %v4125 = vsel %vm492, %v4120, %v4124
      %v4126 = vshrl.u32 %v3992, 16
      %v4128 = vor.u32 %v4126, %v4124
      %v4130 = vshll.u32 %v3993, 16
      %v4132 = vrot.slane %v4130, 1
      %v4133 = vsel %vm492, %v4128, %v4132
      %v4134 = vshrl.u32 %v3993, 16
      %v4136 = vor.u32 %v4134, %v4132
      %v4138 = vshll.u32 %v3994, 16
      %v4140 = vrot.slane %v4138, 1
      %v4141 = vsel %vm492, %v4136, %v4140
      %v4142 = vshrl.u32 %v3994, 16
      %v4144 = vor.u32 %v4142, %v4140
      %v4146 = vshll.u32 %v3995, 16
      %v4148 = vrot.slane %v4146, 1
      %v4149 = vsel %vm492, %v4144, %v4148
      %v4150 = vshrl.u32 %v3995, 16
      %v4152 = vor.u32 %v4150, %v4148
      %v4154 = vshll.u32 %v3996, 16
      %v4156 = vrot.slane %v4154, 1
      %v4157 = vsel %vm492, %v4152, %v4156
      %v4158 = vshrl.u32 %v3996, 16
      %v4160 = vor.u32 %v4158, %v4156
      %v4162 = vshll.u32 %v3997, 16
      %v4164 = vrot.slane %v4162, 1
      %v4165 = vsel %vm492, %v4160, %v4164
      %v4166 = vshrl.u32 %v3997, 16
      %v4168 = vor.u32 %v4166, %v4164
      %v4170 = vshll.u32 %v3998, 16
      %v4172 = vrot.slane %v4170, 1
      %v4173 = vsel %vm492, %v4168, %v4172
      %v4174 = vshrl.u32 %v3998, 16
      %v4176 = vor.u32 %v4174, %v4172
      %v4178 = vshll.u32 %v3999, 16
      %v4180 = vrot.slane %v4178, 1
      %v4181 = vsel %vm492, %v4176, %v4180
      %v4182 = vshrl.u32 %v3999, 16
      %v4184 = vor.u32 %v4182, %v4180
      %v4186 = vshll.u32 %v4000, 16
      %v4188 = vrot.slane %v4186, 1
      %v4189 = vsel %vm492, %v4184, %v4188
      %v4190 = vshrl.u32 %v4000, 16
      %v4192 = vor.u32 %v4190, %v4188
      %v4194 = vshll.u32 %v4001, 16
      %v4196 = vrot.slane %v4194, 1
      %v4197 = vsel %vm492, %v4192, %v4196
      %v4199 = vsel %vm689, %v4013, 0
      %v4202 = vsel %vm689, %v4021, 0
      %v4205 = vsel %vm689, %v4029, 0
      %v4208 = vsel %vm689, %v4037, 0
      %v4211 = vsel %vm689, %v4045, 0
      %v4214 = vsel %vm689, %v4053, 0
      %v4217 = vsel %vm689, %v4061, 0
      %v4220 = vsel %vm689, %v4069, 0
      %v4223 = vsel %vm689, %v4077, 0
      %v4226 = vsel %vm689, %v4085, 0
      %v4229 = vsel %vm689, %v4093, 0
      %v4232 = vsel %vm689, %v4101, 0
      %v4235 = vsel %vm689, %v4109, 0
      %v4238 = vsel %vm689, %v4117, 0
      %v4241 = vsel %vm689, %v4125, 0
      %v4244 = vsel %vm689, %v4133, 0
      %v4247 = vsel %vm689, %v4141, 0
      %v4250 = vsel %vm689, %v4149, 0
      %v4253 = vsel %vm689, %v4157, 0
      %v4256 = vsel %vm689, %v4165, 0
      %v4259 = vsel %vm689, %v4173, 0
      %v4262 = vsel %vm689, %v4181, 0
      %v4265 = vsel %vm689, %v4189, 0
      %v4268 = vsel %vm689, %v4197, 0
      %v4271 = vsel %vm762, %v3878, 0
      %4273 = vmatprep.subr.bf16.mxu0 0
      %4274 = vmatpush1.bf16.msra.mxu0 %v4271
      %4275 = vmatprep.subr.bf16.mxu0 0
      %4276 = vmatpush1.bf16.msra.mxu0 0
      %4277 = vmatprep.subr.bf16.mxu0 0
      %4278 = vmatpush1.bf16.msra.mxu0 0
      %4279 = vmatprep.subr.bf16.mxu0 0
      %4280 = vmatpush1.bf16.msra.mxu0 0
      %4281 = vmatprep.subr.bf16.mxu0 0
      %4282 = vmatpush1.bf16.msra.mxu0 0
      %4283 = vmatprep.subr.bf16.mxu0 0
      %4284 = vmatpush1.bf16.msra.mxu0 0
      %4285 = vmatprep.subr.bf16.mxu0 0
      %4286 = vmatpush1.bf16.msra.mxu0 0
      %4287 = vmatprep.subr.bf16.mxu0 0
      %4288 = vmatpush1.bf16.msra.mxu0 0
      %4289 = vmatprep.subr.bf16.mxu0 0
      %4290 = vmatpush1.bf16.msra.mxu0 0
      %4291 = vmatprep.subr.bf16.mxu0 0
      %4292 = vmatpush1.bf16.msra.mxu0 0
      %4293 = vmatprep.subr.bf16.mxu0 0
      %4294 = vmatpush1.bf16.msra.mxu0 0
      %4295 = vmatprep.subr.bf16.mxu0 0
      %4296 = vmatpush1.bf16.msra.mxu0 0
      %4297 = vmatprep.subr.bf16.mxu0 0
      %4298 = vmatpush1.bf16.msra.mxu0 0
      %4299 = vmatprep.subr.bf16.mxu0 0
      %4300 = vmatpush1.bf16.msra.mxu0 0
      %4301 = vmatprep.subr.bf16.mxu0 0
      %4302 = vmatpush1.bf16.msra.mxu0 0
      %4303 = vmatprep.subr.bf16.mxu0 0
      %4304 = vmatpush1.bf16.msra.mxu0 0
      %4305 = vmatprep.mubr.bf16.mxu0 0
      %4306 = vmatmul.mubr.bf16.gmra.mrb[0].mxu0 %v4199
      %v4307 = vpop.f32.mrb[0].mxu0
      %v4308 = vadd.f32 0.0, %v4307
      %v4309 = vpop.f32.mrb[0].mxu0
      %v4310 = vpop.f32.mrb[0].mxu0
      %v4311 = vadd.f32 0.0, %v4310
      %v4312 = vpop.f32.mrb[0].mxu0
      %4313 = vmatprep.mubr.bf16.mxu0 0
      %4314 = vmatmul.mubr.bf16.gmra.mrb[0].mxu0 %v4202
      %v4315 = vpop.f32.mrb[0].mxu0
      %v4316 = vadd.f32 0.0, %v4315
      %v4317 = vpop.f32.mrb[0].mxu0
      %v4318 = vpop.f32.mrb[0].mxu0
      %v4319 = vadd.f32 0.0, %v4318
      %v4320 = vpop.f32.mrb[0].mxu0
      %4321 = vmatprep.mubr.bf16.mxu0 0
      %4322 = vmatmul.mubr.bf16.gmra.mrb[0].mxu0 %v4205
      %v4323 = vpop.f32.mrb[0].mxu0
      %v4324 = vadd.f32 0.0, %v4323
      %v4325 = vpop.f32.mrb[0].mxu0
      %v4326 = vpop.f32.mrb[0].mxu0
      %v4327 = vadd.f32 0.0, %v4326
      %v4328 = vpop.f32.mrb[0].mxu0
      %4329 = vmatprep.mubr.bf16.mxu0 0
      %4330 = vmatmul.mubr.bf16.gmra.mrb[0].mxu0 %v4208
      %v4331 = vpop.f32.mrb[0].mxu0
      %v4332 = vadd.f32 0.0, %v4331
      %v4333 = vpop.f32.mrb[0].mxu0
      %v4334 = vpop.f32.mrb[0].mxu0
      %v4335 = vadd.f32 0.0, %v4334
      %v4336 = vpop.f32.mrb[0].mxu0
      %4337 = vmatprep.mubr.bf16.mxu0 0
      %4338 = vmatmul.mubr.bf16.gmra.mrb[0].mxu0 %v4211
      %v4339 = vpop.f32.mrb[0].mxu0
      %v4340 = vadd.f32 0.0, %v4339
      %v4341 = vpop.f32.mrb[0].mxu0
      %v4342 = vpop.f32.mrb[0].mxu0
      %v4343 = vadd.f32 0.0, %v4342
      %v4344 = vpop.f32.mrb[0].mxu0
      %4345 = vmatprep.mubr.bf16.mxu0 0
      %4346 = vmatmul.mubr.bf16.gmra.mrb[0].mxu0 %v4214
      %v4347 = vpop.f32.mrb[0].mxu0
      %v4348 = vadd.f32 0.0, %v4347
      %v4349 = vpop.f32.mrb[0].mxu0
      %v4350 = vpop.f32.mrb[0].mxu0
      %v4351 = vadd.f32 0.0, %v4350
      %v4352 = vpop.f32.mrb[0].mxu0
      %4353 = vmatprep.mubr.bf16.mxu0 0
      %4354 = vmatmul.mubr.bf16.gmra.mrb[0].mxu0 %v4217
      %v4355 = vpop.f32.mrb[0].mxu0
      %v4356 = vadd.f32 0.0, %v4355
      %v4357 = vpop.f32.mrb[0].mxu0
      %v4358 = vpop.f32.mrb[0].mxu0
      %v4359 = vadd.f32 0.0, %v4358
      %v4360 = vpop.f32.mrb[0].mxu0
      %4361 = vmatprep.mubr.bf16.mxu0 0
      %4362 = vmatmul.mubr.bf16.gmra.mrb[0].mxu0 %v4220
      %v4363 = vpop.f32.mrb[0].mxu0
      %v4364 = vadd.f32 0.0, %v4363
      %v4365 = vpop.f32.mrb[0].mxu0
      %v4366 = vpop.f32.mrb[0].mxu0
      %v4367 = vadd.f32 0.0, %v4366
      %v4368 = vpop.f32.mrb[0].mxu0
      %4369 = vmatprep.mubr.bf16.mxu0 0
      %4370 = vmatmul.mubr.bf16.gmra.mrb[0].mxu0 %v4223
      %v4371 = vpop.f32.mrb[0].mxu0
      %v4372 = vadd.f32 0.0, %v4371
      %v4373 = vpop.f32.mrb[0].mxu0
      %v4374 = vpop.f32.mrb[0].mxu0
      %v4375 = vadd.f32 0.0, %v4374
      %v4376 = vpop.f32.mrb[0].mxu0
      %4377 = vmatprep.mubr.bf16.mxu0 0
      %4378 = vmatmul.mubr.bf16.gmra.mrb[0].mxu0 %v4226
      %v4379 = vpop.f32.mrb[0].mxu0
      %v4380 = vadd.f32 0.0, %v4379
      %v4381 = vpop.f32.mrb[0].mxu0
      %v4382 = vpop.f32.mrb[0].mxu0
      %v4383 = vadd.f32 0.0, %v4382
      %v4384 = vpop.f32.mrb[0].mxu0
      %4385 = vmatprep.mubr.bf16.mxu0 0
      %4386 = vmatmul.mubr.bf16.gmra.mrb[0].mxu0 %v4229
      %v4387 = vpop.f32.mrb[0].mxu0
      %v4388 = vadd.f32 0.0, %v4387
      %v4389 = vpop.f32.mrb[0].mxu0
      %v4390 = vpop.f32.mrb[0].mxu0
      %v4391 = vadd.f32 0.0, %v4390
      %v4392 = vpop.f32.mrb[0].mxu0
      %4393 = vmatprep.mubr.bf16.mxu0 0
      %4394 = vmatmul.mubr.bf16.gmra.mrb[0].mxu0 %v4232
      %v4395 = vpop.f32.mrb[0].mxu0
      %v4396 = vadd.f32 0.0, %v4395
      %v4397 = vpop.f32.mrb[0].mxu0
      %v4398 = vpop.f32.mrb[0].mxu0
      %v4399 = vadd.f32 0.0, %v4398
      %v4400 = vpop.f32.mrb[0].mxu0
      %4401 = vmatprep.mubr.bf16.mxu0 0
      %4402 = vmatmul.mubr.bf16.gmra.mrb[0].mxu0 %v4235
      %v4403 = vpop.f32.mrb[0].mxu0
      %v4404 = vadd.f32 0.0, %v4403
      %v4405 = vpop.f32.mrb[0].mxu0
      %v4406 = vpop.f32.mrb[0].mxu0
      %v4407 = vadd.f32 0.0, %v4406
      %v4408 = vpop.f32.mrb[0].mxu0
      %4409 = vmatprep.mubr.bf16.mxu0 0
      %4410 = vmatmul.mubr.bf16.gmra.mrb[0].mxu0 %v4238
      %v4411 = vpop.f32.mrb[0].mxu0
      %v4412 = vadd.f32 0.0, %v4411
      %v4413 = vpop.f32.mrb[0].mxu0
      %v4414 = vpop.f32.mrb[0].mxu0
      %v4415 = vadd.f32 0.0, %v4414
      %v4416 = vpop.f32.mrb[0].mxu0
      %4417 = vmatprep.mubr.bf16.mxu0 0
      %4418 = vmatmul.mubr.bf16.gmra.mrb[0].mxu0 %v4241
      %v4419 = vpop.f32.mrb[0].mxu0
      %v4420 = vadd.f32 0.0, %v4419
      %v4421 = vpop.f32.mrb[0].mxu0
      %v4422 = vpop.f32.mrb[0].mxu0
      %v4423 = vadd.f32 0.0, %v4422
      %v4424 = vpop.f32.mrb[0].mxu0
      %4425 = vmatprep.mubr.bf16.mxu0 0
      %4426 = vmatmul.mubr.bf16.gmra.mrb[0].mxu0 %v4244
      %v4427 = vpop.f32.mrb[0].mxu0
      %v4428 = vadd.f32 0.0, %v4427
      %v4429 = vpop.f32.mrb[0].mxu0
      %v4430 = vpop.f32.mrb[0].mxu0
      %v4431 = vadd.f32 0.0, %v4430
      %v4432 = vpop.f32.mrb[0].mxu0
      %4433 = vmatprep.mubr.bf16.mxu0 0
      %4434 = vmatmul.mubr.bf16.gmra.mrb[0].mxu0 %v4247
      %v4435 = vpop.f32.mrb[0].mxu0
      %v4436 = vadd.f32 0.0, %v4435
      %v4437 = vpop.f32.mrb[0].mxu0
      %v4438 = vpop.f32.mrb[0].mxu0
      %v4439 = vadd.f32 0.0, %v4438
      %v4440 = vpop.f32.mrb[0].mxu0
      %4441 = vmatprep.mubr.bf16.mxu0 0
      %4442 = vmatmul.mubr.bf16.gmra.mrb[0].mxu0 %v4250
      %v4443 = vpop.f32.mrb[0].mxu0
      %v4444 = vadd.f32 0.0, %v4443
      %v4445 = vpop.f32.mrb[0].mxu0
      %v4446 = vpop.f32.mrb[0].mxu0
      %v4447 = vadd.f32 0.0, %v4446
      %v4448 = vpop.f32.mrb[0].mxu0
      %4449 = vmatprep.mubr.bf16.mxu0 0
      %4450 = vmatmul.mubr.bf16.gmra.mrb[0].mxu0 %v4253
      %v4451 = vpop.f32.mrb[0].mxu0
      %v4452 = vadd.f32 0.0, %v4451
      %v4453 = vpop.f32.mrb[0].mxu0
      %v4454 = vpop.f32.mrb[0].mxu0
      %v4455 = vadd.f32 0.0, %v4454
      %v4456 = vpop.f32.mrb[0].mxu0
      %4457 = vmatprep.mubr.bf16.mxu0 0
      %4458 = vmatmul.mubr.bf16.gmra.mrb[0].mxu0 %v4256
      %v4459 = vpop.f32.mrb[0].mxu0
      %v4460 = vadd.f32 0.0, %v4459
      %v4461 = vpop.f32.mrb[0].mxu0
      %v4462 = vpop.f32.mrb[0].mxu0
      %v4463 = vadd.f32 0.0, %v4462
      %v4464 = vpop.f32.mrb[0].mxu0
      %4465 = vmatprep.mubr.bf16.mxu0 0
      %4466 = vmatmul.mubr.bf16.gmra.mrb[0].mxu0 %v4259
      %v4467 = vpop.f32.mrb[0].mxu0
      %v4468 = vadd.f32 0.0, %v4467
      %v4469 = vpop.f32.mrb[0].mxu0
      %v4470 = vpop.f32.mrb[0].mxu0
      %v4471 = vadd.f32 0.0, %v4470
      %v4472 = vpop.f32.mrb[0].mxu0
      %4473 = vmatprep.mubr.bf16.mxu0 0
      %4474 = vmatmul.mubr.bf16.gmra.mrb[0].mxu0 %v4262
      %v4475 = vpop.f32.mrb[0].mxu0
      %v4476 = vadd.f32 0.0, %v4475
      %v4477 = vpop.f32.mrb[0].mxu0
      %v4478 = vpop.f32.mrb[0].mxu0
      %v4479 = vadd.f32 0.0, %v4478
      %v4480 = vpop.f32.mrb[0].mxu0
      %4481 = vmatprep.mubr.bf16.mxu0 0
      %4482 = vmatmul.mubr.bf16.gmra.mrb[0].mxu0 %v4265
      %v4483 = vpop.f32.mrb[0].mxu0
      %v4484 = vadd.f32 0.0, %v4483
      %v4485 = vpop.f32.mrb[0].mxu0
      %v4486 = vpop.f32.mrb[0].mxu0
      %v4487 = vadd.f32 0.0, %v4486
      %v4488 = vpop.f32.mrb[0].mxu0
      %4489 = vmatprep.mubr.bf16.mxu0 0
      %4490 = vmatmul.mubr.bf16.gmra.mrb[0].mxu0 %v4268
      %v4491 = vpop.f32.mrb[0].mxu0
      %v4492 = vadd.f32 0.0, %v4491
      %v4493 = vpop.f32.mrb[0].mxu0
      %v4494 = vpop.f32.mrb[0].mxu0
      %v4495 = vadd.f32 0.0, %v4494
      %v4496 = vpop.f32.mrb[0].mxu0
      %4497 = vdwg.mxu0
      %v4498 = vadd.f32 %v3780, %v4308
      %v4499 = vadd.f32 %v3781, %v4311
      %v4500 = vadd.f32 %v3782, %v4316
      %v4501 = vadd.f32 %v3783, %v4319
      %v4502 = vadd.f32 %v3784, %v4324
      %v4503 = vadd.f32 %v3785, %v4327
      %v4504 = vadd.f32 %v3786, %v4332
      %v4505 = vadd.f32 %v3787, %v4335
      %v4506 = vadd.f32 %v3788, %v4340
      %v4507 = vadd.f32 %v3789, %v4343
      %v4508 = vadd.f32 %v3790, %v4348
      %v4509 = vadd.f32 %v3791, %v4351
      %v4510 = vadd.f32 %v3792, %v4356
      %v4511 = vadd.f32 %v3793, %v4359
      %v4512 = vadd.f32 %v3794, %v4364
      %v4513 = vadd.f32 %v3795, %v4367
      %v4514 = vadd.f32 %v3796, %v4372
      %v4515 = vadd.f32 %v3797, %v4375
      %v4516 = vadd.f32 %v3798, %v4380
      %v4517 = vadd.f32 %v3799, %v4383
      %v4518 = vadd.f32 %v3800, %v4388
      %v4519 = vadd.f32 %v3801, %v4391
      %v4520 = vadd.f32 %v3802, %v4396
      %v4521 = vadd.f32 %v3803, %v4399
      %v4522 = vadd.f32 %v3804, %v4404
      %v4523 = vadd.f32 %v3805, %v4407
      %v4524 = vadd.f32 %v3806, %v4412
      %v4525 = vadd.f32 %v3807, %v4415
      %v4526 = vadd.f32 %v3808, %v4420
      %v4527 = vadd.f32 %v3809, %v4423
      %v4528 = vadd.f32 %v3810, %v4428
      %v4529 = vadd.f32 %v3811, %v4431
      %v4530 = vadd.f32 %v3812, %v4436
      %v4531 = vadd.f32 %v3813, %v4439
      %v4532 = vadd.f32 %v3814, %v4444
      %v4533 = vadd.f32 %v3815, %v4447
      %v4534 = vadd.f32 %v3816, %v4452
      %v4535 = vadd.f32 %v3817, %v4455
      %v4536 = vadd.f32 %v3818, %v4460
      %v4537 = vadd.f32 %v3819, %v4463
      %v4538 = vadd.f32 %v3820, %v4468
      %v4539 = vadd.f32 %v3821, %v4471
      %v4540 = vadd.f32 %v3822, %v4476
      %v4541 = vadd.f32 %v3823, %v4479
      %v4542 = vadd.f32 %v3824, %v4484
      %v4543 = vadd.f32 %v3825, %v4487
      %v4544 = vadd.f32 %v3826, %v4492
      %v4545 = vadd.f32 %v3827, %v4495
      %v4546 = vld [vmem:[%s286 + $0x18] sm:$0xe]
      %s4547 = scalar_lea.vmem %s290, 16
      %v4548 = vld [vmem:[%s4547] sm:$0x3]
      %v4550 = vunpack.c.l.b16 %v4546
      %v4551 = vpack.c.b16 %v3929, %v4550
      %v4552 = vrot.slane %v4551, 1
      %v4553 = vrot.slane %v3978, 1
      %v4554 = vsel %vm1273, %v4552, %v4553
      %v4555 = vrot.slane %v3979, 1
      %v4556 = vsel %vm1273, %v4553, %v4555
      %v4557 = vrot.slane %v3980, 1
      %v4558 = vsel %vm1273, %v4555, %v4557
      %v4559 = vrot.slane %v3981, 1
      %v4560 = vsel %vm1273, %v4557, %v4559
      %v4561 = vrot.slane %v3982, 1
      %v4562 = vsel %vm1273, %v4559, %v4561
      %v4563 = vrot.slane %v3983, 1
      %v4564 = vsel %vm1273, %v4561, %v4563
      %v4565 = vrot.slane %v3984, 1
      %v4566 = vsel %vm1273, %v4563, %v4565
      %v4567 = vrot.slane %v3985, 1
      %v4568 = vsel %vm1273, %v4565, %v4567
      %v4569 = vrot.slane %v3986, 1
      %v4570 = vsel %vm1273, %v4567, %v4569
      %v4571 = vrot.slane %v3987, 1
      %v4572 = vsel %vm1273, %v4569, %v4571
      %v4573 = vrot.slane %v3988, 1
      %v4574 = vsel %vm1273, %v4571, %v4573
      %v4575 = vrot.slane %v3989, 1
      %v4576 = vsel %vm1273, %v4573, %v4575
      %v4577 = vrot.slane %v3990, 1
      %v4578 = vsel %vm1273, %v4575, %v4577
      %v4579 = vrot.slane %v3991, 1
      %v4580 = vsel %vm1273, %v4577, %v4579
      %v4581 = vrot.slane %v3992, 1
      %v4582 = vsel %vm1273, %v4579, %v4581
      %v4583 = vrot.slane %v3993, 1
      %v4584 = vsel %vm1273, %v4581, %v4583
      %v4585 = vrot.slane %v3994, 1
      %v4586 = vsel %vm1273, %v4583, %v4585
      %v4587 = vrot.slane %v3995, 1
      %v4588 = vsel %vm1273, %v4585, %v4587
      %v4589 = vrot.slane %v3996, 1
      %v4590 = vsel %vm1273, %v4587, %v4589
      %v4591 = vrot.slane %v3997, 1
      %v4592 = vsel %vm1273, %v4589, %v4591
      %v4593 = vrot.slane %v3998, 1
      %v4594 = vsel %vm1273, %v4591, %v4593
      %v4595 = vrot.slane %v3999, 1
      %v4596 = vsel %vm1273, %v4593, %v4595
      %v4597 = vrot.slane %v4000, 1
      %v4598 = vsel %vm1273, %v4595, %v4597
      %v4599 = vrot.slane %v4001, 1
      %v4600 = vsel %vm1273, %v4597, %v4599
      %v4602 = vsel %vm689, %v4554, 0
      %v4605 = vsel %vm689, %v4556, 0
      %v4608 = vsel %vm689, %v4558, 0
      %v4611 = vsel %vm689, %v4560, 0
      %v4614 = vsel %vm689, %v4562, 0
      %v4617 = vsel %vm689, %v4564, 0
      %v4620 = vsel %vm689, %v4566, 0
      %v4623 = vsel %vm689, %v4568, 0
      %v4626 = vsel %vm689, %v4570, 0
      %v4629 = vsel %vm689, %v4572, 0
      %v4632 = vsel %vm689, %v4574, 0
      %v4635 = vsel %vm689, %v4576, 0
      %v4638 = vsel %vm689, %v4578, 0
      %v4641 = vsel %vm689, %v4580, 0
      %v4644 = vsel %vm689, %v4582, 0
      %v4647 = vsel %vm689, %v4584, 0
      %v4650 = vsel %vm689, %v4586, 0
      %v4653 = vsel %vm689, %v4588, 0
      %v4656 = vsel %vm689, %v4590, 0
      %v4659 = vsel %vm689, %v4592, 0
      %v4662 = vsel %vm689, %v4594, 0
      %v4665 = vsel %vm689, %v4596, 0
      %v4668 = vsel %vm689, %v4598, 0
      %v4671 = vsel %vm689, %v4600, 0
      %v4674 = vsel %vm762, %v4548, 0
      %4676 = vmatprep.subr.bf16.mxu0 0
      %4677 = vmatpush1.bf16.msra.mxu0 %v4674
      %4678 = vmatprep.subr.bf16.mxu0 0
      %4679 = vmatpush1.bf16.msra.mxu0 0
      %4680 = vmatprep.subr.bf16.mxu0 0
      %4681 = vmatpush1.bf16.msra.mxu0 0
      %4682 = vmatprep.subr.bf16.mxu0 0
      %4683 = vmatpush1.bf16.msra.mxu0 0
      %4684 = vmatprep.subr.bf16.mxu0 0
      %4685 = vmatpush1.bf16.msra.mxu0 0
      %4686 = vmatprep.subr.bf16.mxu0 0
      %4687 = vmatpush1.bf16.msra.mxu0 0
      %4688 = vmatprep.subr.bf16.mxu0 0
      %4689 = vmatpush1.bf16.msra.mxu0 0
      %4690 = vmatprep.subr.bf16.mxu0 0
      %4691 = vmatpush1.bf16.msra.mxu0 0
      %4692 = vmatprep.subr.bf16.mxu0 0
      %4693 = vmatpush1.bf16.msra.mxu0 0
      %4694 = vmatprep.subr.bf16.mxu0 0
      %4695 = vmatpush1.bf16.msra.mxu0 0
      %4696 = vmatprep.subr.bf16.mxu0 0
      %4697 = vmatpush1.bf16.msra.mxu0 0
      %4698 = vmatprep.subr.bf16.mxu0 0
      %4699 = vmatpush1.bf16.msra.mxu0 0
      %4700 = vmatprep.subr.bf16.mxu0 0
      %4701 = vmatpush1.bf16.msra.mxu0 0
      %4702 = vmatprep.subr.bf16.mxu0 0
      %4703 = vmatpush1.bf16.msra.mxu0 0
      %4704 = vmatprep.subr.bf16.mxu0 0
      %4705 = vmatpush1.bf16.msra.mxu0 0
      %4706 = vmatprep.subr.bf16.mxu0 0
      %4707 = vmatpush1.bf16.msra.mxu0 0
      %4708 = vmatprep.mubr.bf16.mxu0 0
      %4709 = vmatmul.mubr.bf16.gmra.mrb[0].mxu0 %v4602
      %v4710 = vpop.f32.mrb[0].mxu0
      %v4711 = vadd.f32 0.0, %v4710
      %v4712 = vpop.f32.mrb[0].mxu0
      %v4713 = vpop.f32.mrb[0].mxu0
      %v4714 = vadd.f32 0.0, %v4713
      %v4715 = vpop.f32.mrb[0].mxu0
      %4716 = vmatprep.mubr.bf16.mxu0 0
      %4717 = vmatmul.mubr.bf16.gmra.mrb[0].mxu0 %v4605
      %v4718 = vpop.f32.mrb[0].mxu0
      %v4719 = vadd.f32 0.0, %v4718
      %v4720 = vpop.f32.mrb[0].mxu0
      %v4721 = vpop.f32.mrb[0].mxu0
      %v4722 = vadd.f32 0.0, %v4721
      %v4723 = vpop.f32.mrb[0].mxu0
      %4724 = vmatprep.mubr.bf16.mxu0 0
      %4725 = vmatmul.mubr.bf16.gmra.mrb[0].mxu0 %v4608
      %v4726 = vpop.f32.mrb[0].mxu0
      %v4727 = vadd.f32 0.0, %v4726
      %v4728 = vpop.f32.mrb[0].mxu0
      %v4729 = vpop.f32.mrb[0].mxu0
      %v4730 = vadd.f32 0.0, %v4729
      %v4731 = vpop.f32.mrb[0].mxu0
      %4732 = vmatprep.mubr.bf16.mxu0 0
      %4733 = vmatmul.mubr.bf16.gmra.mrb[0].mxu0 %v4611
      %v4734 = vpop.f32.mrb[0].mxu0
      %v4735 = vadd.f32 0.0, %v4734
      %v4736 = vpop.f32.mrb[0].mxu0
      %v4737 = vpop.f32.mrb[0].mxu0
      %v4738 = vadd.f32 0.0, %v4737
      %v4739 = vpop.f32.mrb[0].mxu0
      %4740 = vmatprep.mubr.bf16.mxu0 0
      %4741 = vmatmul.mubr.bf16.gmra.mrb[0].mxu0 %v4614
      %v4742 = vpop.f32.mrb[0].mxu0
      %v4743 = vadd.f32 0.0, %v4742
      %v4744 = vpop.f32.mrb[0].mxu0
      %v4745 = vpop.f32.mrb[0].mxu0
      %v4746 = vadd.f32 0.0, %v4745
      %v4747 = vpop.f32.mrb[0].mxu0
      %4748 = vmatprep.mubr.bf16.mxu0 0
      %4749 = vmatmul.mubr.bf16.gmra.mrb[0].mxu0 %v4617
      %v4750 = vpop.f32.mrb[0].mxu0
      %v4751 = vadd.f32 0.0, %v4750
      %v4752 = vpop.f32.mrb[0].mxu0
      %v4753 = vpop.f32.mrb[0].mxu0
      %v4754 = vadd.f32 0.0, %v4753
      %v4755 = vpop.f32.mrb[0].mxu0
      %4756 = vmatprep.mubr.bf16.mxu0 0
      %4757 = vmatmul.mubr.bf16.gmra.mrb[0].mxu0 %v4620
      %v4758 = vpop.f32.mrb[0].mxu0
      %v4759 = vadd.f32 0.0, %v4758
      %v4760 = vpop.f32.mrb[0].mxu0
      %v4761 = vpop.f32.mrb[0].mxu0
      %v4762 = vadd.f32 0.0, %v4761
      %v4763 = vpop.f32.mrb[0].mxu0
      %4764 = vmatprep.mubr.bf16.mxu0 0
      %4765 = vmatmul.mubr.bf16.gmra.mrb[0].mxu0 %v4623
      %v4766 = vpop.f32.mrb[0].mxu0
      %v4767 = vadd.f32 0.0, %v4766
      %v4768 = vpop.f32.mrb[0].mxu0
      %v4769 = vpop.f32.mrb[0].mxu0
      %v4770 = vadd.f32 0.0, %v4769
      %v4771 = vpop.f32.mrb[0].mxu0
      %4772 = vmatprep.mubr.bf16.mxu0 0
      %4773 = vmatmul.mubr.bf16.gmra.mrb[0].mxu0 %v4626
      %v4774 = vpop.f32.mrb[0].mxu0
      %v4775 = vadd.f32 0.0, %v4774
      %v4776 = vpop.f32.mrb[0].mxu0
      %v4777 = vpop.f32.mrb[0].mxu0
      %v4778 = vadd.f32 0.0, %v4777
      %v4779 = vpop.f32.mrb[0].mxu0
      %4780 = vmatprep.mubr.bf16.mxu0 0
      %4781 = vmatmul.mubr.bf16.gmra.mrb[0].mxu0 %v4629
      %v4782 = vpop.f32.mrb[0].mxu0
      %v4783 = vadd.f32 0.0, %v4782
      %v4784 = vpop.f32.mrb[0].mxu0
      %v4785 = vpop.f32.mrb[0].mxu0
      %v4786 = vadd.f32 0.0, %v4785
      %v4787 = vpop.f32.mrb[0].mxu0
      %4788 = vmatprep.mubr.bf16.mxu0 0
      %4789 = vmatmul.mubr.bf16.gmra.mrb[0].mxu0 %v4632
      %v4790 = vpop.f32.mrb[0].mxu0
      %v4791 = vadd.f32 0.0, %v4790
      %v4792 = vpop.f32.mrb[0].mxu0
      %v4793 = vpop.f32.mrb[0].mxu0
      %v4794 = vadd.f32 0.0, %v4793
      %v4795 = vpop.f32.mrb[0].mxu0
      %4796 = vmatprep.mubr.bf16.mxu0 0
      %4797 = vmatmul.mubr.bf16.gmra.mrb[0].mxu0 %v4635
      %v4798 = vpop.f32.mrb[0].mxu0
      %v4799 = vadd.f32 0.0, %v4798
      %v4800 = vpop.f32.mrb[0].mxu0
      %v4801 = vpop.f32.mrb[0].mxu0
      %v4802 = vadd.f32 0.0, %v4801
      %v4803 = vpop.f32.mrb[0].mxu0
      %4804 = vmatprep.mubr.bf16.mxu0 0
      %4805 = vmatmul.mubr.bf16.gmra.mrb[0].mxu0 %v4638
      %v4806 = vpop.f32.mrb[0].mxu0
      %v4807 = vadd.f32 0.0, %v4806
      %v4808 = vpop.f32.mrb[0].mxu0
      %v4809 = vpop.f32.mrb[0].mxu0
      %v4810 = vadd.f32 0.0, %v4809
      %v4811 = vpop.f32.mrb[0].mxu0
      %4812 = vmatprep.mubr.bf16.mxu0 0
      %4813 = vmatmul.mubr.bf16.gmra.mrb[0].mxu0 %v4641
      %v4814 = vpop.f32.mrb[0].mxu0
      %v4815 = vadd.f32 0.0, %v4814
      %v4816 = vpop.f32.mrb[0].mxu0
      %v4817 = vpop.f32.mrb[0].mxu0
      %v4818 = vadd.f32 0.0, %v4817
      %v4819 = vpop.f32.mrb[0].mxu0
      %4820 = vmatprep.mubr.bf16.mxu0 0
      %4821 = vmatmul.mubr.bf16.gmra.mrb[0].mxu0 %v4644
      %v4822 = vpop.f32.mrb[0].mxu0
      %v4823 = vadd.f32 0.0, %v4822
      %v4824 = vpop.f32.mrb[0].mxu0
      %v4825 = vpop.f32.mrb[0].mxu0
      %v4826 = vadd.f32 0.0, %v4825
      %v4827 = vpop.f32.mrb[0].mxu0
      %4828 = vmatprep.mubr.bf16.mxu0 0
      %4829 = vmatmul.mubr.bf16.gmra.mrb[0].mxu0 %v4647
      %v4830 = vpop.f32.mrb[0].mxu0
      %v4831 = vadd.f32 0.0, %v4830
      %v4832 = vpop.f32.mrb[0].mxu0
      %v4833 = vpop.f32.mrb[0].mxu0
      %v4834 = vadd.f32 0.0, %v4833
      %v4835 = vpop.f32.mrb[0].mxu0
      %4836 = vmatprep.mubr.bf16.mxu0 0
      %4837 = vmatmul.mubr.bf16.gmra.mrb[0].mxu0 %v4650
      %v4838 = vpop.f32.mrb[0].mxu0
      %v4839 = vadd.f32 0.0, %v4838
      %v4840 = vpop.f32.mrb[0].mxu0
      %v4841 = vpop.f32.mrb[0].mxu0
      %v4842 = vadd.f32 0.0, %v4841
      %v4843 = vpop.f32.mrb[0].mxu0
      %4844 = vmatprep.mubr.bf16.mxu0 0
      %4845 = vmatmul.mubr.bf16.gmra.mrb[0].mxu0 %v4653
      %v4846 = vpop.f32.mrb[0].mxu0
      %v4847 = vadd.f32 0.0, %v4846
      %v4848 = vpop.f32.mrb[0].mxu0
      %v4849 = vpop.f32.mrb[0].mxu0
      %v4850 = vadd.f32 0.0, %v4849
      %v4851 = vpop.f32.mrb[0].mxu0
      %4852 = vmatprep.mubr.bf16.mxu0 0
      %4853 = vmatmul.mubr.bf16.gmra.mrb[0].mxu0 %v4656
      %v4854 = vpop.f32.mrb[0].mxu0
      %v4855 = vadd.f32 0.0, %v4854
      %v4856 = vpop.f32.mrb[0].mxu0
      %v4857 = vpop.f32.mrb[0].mxu0
      %v4858 = vadd.f32 0.0, %v4857
      %v4859 = vpop.f32.mrb[0].mxu0
      %4860 = vmatprep.mubr.bf16.mxu0 0
      %4861 = vmatmul.mubr.bf16.gmra.mrb[0].mxu0 %v4659
      %v4862 = vpop.f32.mrb[0].mxu0
      %v4863 = vadd.f32 0.0, %v4862
      %v4864 = vpop.f32.mrb[0].mxu0
      %v4865 = vpop.f32.mrb[0].mxu0
      %v4866 = vadd.f32 0.0, %v4865
      %v4867 = vpop.f32.mrb[0].mxu0
      %4868 = vmatprep.mubr.bf16.mxu0 0
      %4869 = vmatmul.mubr.bf16.gmra.mrb[0].mxu0 %v4662
      %v4870 = vpop.f32.mrb[0].mxu0
      %v4871 = vadd.f32 0.0, %v4870
      %v4872 = vpop.f32.mrb[0].mxu0
      %v4873 = vpop.f32.mrb[0].mxu0
      %v4874 = vadd.f32 0.0, %v4873
      %v4875 = vpop.f32.mrb[0].mxu0
      %4876 = vmatprep.mubr.bf16.mxu0 0
      %4877 = vmatmul.mubr.bf16.gmra.mrb[0].mxu0 %v4665
      %v4878 = vpop.f32.mrb[0].mxu0
      %v4879 = vadd.f32 0.0, %v4878
      %v4880 = vpop.f32.mrb[0].mxu0
      %v4881 = vpop.f32.mrb[0].mxu0
      %v4882 = vadd.f32 0.0, %v4881
      %v4883 = vpop.f32.mrb[0].mxu0
      %4884 = vmatprep.mubr.bf16.mxu0 0
      %4885 = vmatmul.mubr.bf16.gmra.mrb[0].mxu0 %v4668
      %v4886 = vpop.f32.mrb[0].mxu0
      %v4887 = vadd.f32 0.0, %v4886
      %v4888 = vpop.f32.mrb[0].mxu0
      %v4889 = vpop.f32.mrb[0].mxu0
      %v4890 = vadd.f32 0.0, %v4889
      %v4891 = vpop.f32.mrb[0].mxu0
      %4892 = vmatprep.mubr.bf16.mxu0 0
      %4893 = vmatmul.mubr.bf16.gmra.mrb[0].mxu0 %v4671
      %v4894 = vpop.f32.mrb[0].mxu0
      %v4895 = vadd.f32 0.0, %v4894
      %v4896 = vpop.f32.mrb[0].mxu0
      %v4897 = vpop.f32.mrb[0].mxu0
      %v4898 = vadd.f32 0.0, %v4897
      %v4899 = vpop.f32.mrb[0].mxu0
      %4900 = vdwg.mxu0
      %v4901 = vadd.f32 %v4498, %v4711
      %v4902 = vadd.f32 %v4499, %v4714
      %v4903 = vadd.f32 %v4500, %v4719
      %v4904 = vadd.f32 %v4501, %v4722
      %v4905 = vadd.f32 %v4502, %v4727
      %v4906 = vadd.f32 %v4503, %v4730
      %v4907 = vadd.f32 %v4504, %v4735
      %v4908 = vadd.f32 %v4505, %v4738
      %v4909 = vadd.f32 %v4506, %v4743
      %v4910 = vadd.f32 %v4507, %v4746
      %v4911 = vadd.f32 %v4508, %v4751
      %v4912 = vadd.f32 %v4509, %v4754
      %v4913 = vadd.f32 %v4510, %v4759
      %v4914 = vadd.f32 %v4511, %v4762
      %v4915 = vadd.f32 %v4512, %v4767
      %v4916 = vadd.f32 %v4513, %v4770
      %v4917 = vadd.f32 %v4514, %v4775
      %v4918 = vadd.f32 %v4515, %v4778
      %v4919 = vadd.f32 %v4516, %v4783
      %v4920 = vadd.f32 %v4517, %v4786
      %v4921 = vadd.f32 %v4518, %v4791
      %v4922 = vadd.f32 %v4519, %v4794
      %v4923 = vadd.f32 %v4520, %v4799
      %v4924 = vadd.f32 %v4521, %v4802
      %v4925 = vadd.f32 %v4522, %v4807
      %v4926 = vadd.f32 %v4523, %v4810
      %v4927 = vadd.f32 %v4524, %v4815
      %v4928 = vadd.f32 %v4525, %v4818
      %v4929 = vadd.f32 %v4526, %v4823
      %v4930 = vadd.f32 %v4527, %v4826
      %v4931 = vadd.f32 %v4528, %v4831
      %v4932 = vadd.f32 %v4529, %v4834
      %v4933 = vadd.f32 %v4530, %v4839
      %v4934 = vadd.f32 %v4531, %v4842
      %v4935 = vadd.f32 %v4532, %v4847
      %v4936 = vadd.f32 %v4533, %v4850
      %v4937 = vadd.f32 %v4534, %v4855
      %v4938 = vadd.f32 %v4535, %v4858
      %v4939 = vadd.f32 %v4536, %v4863
      %v4940 = vadd.f32 %v4537, %v4866
      %v4941 = vadd.f32 %v4538, %v4871
      %v4942 = vadd.f32 %v4539, %v4874
      %v4943 = vadd.f32 %v4540, %v4879
      %v4944 = vadd.f32 %v4541, %v4882
      %v4945 = vadd.f32 %v4542, %v4887
      %v4946 = vadd.f32 %v4543, %v4890
      %v4947 = vadd.f32 %v4544, %v4895
      %v4948 = vadd.f32 %v4545, %v4898
      %v4949 = vld [vmem:[%s293] sm:$0x1]
      %v4951 = vlaneseq
      %v4952 = vshrl.u32 %v4951, 7
      %v4953 = vsub.s32 0, %v4952
      %v4954 = vrot.slane %v4949, %v4953
      %v4956 = vadd.f32 %v4901, %v4954
      %v4957 = vadd.f32 %v4902, %v4954
      %v4958 = vadd.f32 %v4903, %v4954
      %v4959 = vadd.f32 %v4904, %v4954
      %v4960 = vadd.f32 %v4905, %v4954
      %v4961 = vadd.f32 %v4906, %v4954
      %v4962 = vadd.f32 %v4907, %v4954
      %v4963 = vadd.f32 %v4908, %v4954
      %v4964 = vadd.f32 %v4909, %v4954
      %v4965 = vadd.f32 %v4910, %v4954
      %v4966 = vadd.f32 %v4911, %v4954
      %v4967 = vadd.f32 %v4912, %v4954
      %v4968 = vadd.f32 %v4913, %v4954
      %v4969 = vadd.f32 %v4914, %v4954
      %v4970 = vadd.f32 %v4915, %v4954
      %v4971 = vadd.f32 %v4916, %v4954
      %v4972 = vadd.f32 %v4917, %v4954
      %v4973 = vadd.f32 %v4918, %v4954
      %v4974 = vadd.f32 %v4919, %v4954
      %v4975 = vadd.f32 %v4920, %v4954
      %v4976 = vadd.f32 %v4921, %v4954
      %v4977 = vadd.f32 %v4922, %v4954
      %v4978 = vadd.f32 %v4923, %v4954
      %v4979 = vadd.f32 %v4924, %v4954
      %v4980 = vadd.f32 %v4925, %v4954
      %v4981 = vadd.f32 %v4926, %v4954
      %v4982 = vadd.f32 %v4927, %v4954
      %v4983 = vadd.f32 %v4928, %v4954
      %v4984 = vadd.f32 %v4929, %v4954
      %v4985 = vadd.f32 %v4930, %v4954
      %v4986 = vadd.f32 %v4931, %v4954
      %v4987 = vadd.f32 %v4932, %v4954
      %v4988 = vadd.f32 %v4933, %v4954
      %v4989 = vadd.f32 %v4934, %v4954
      %v4990 = vadd.f32 %v4935, %v4954
      %v4991 = vadd.f32 %v4936, %v4954
      %v4992 = vadd.f32 %v4937, %v4954
      %v4993 = vadd.f32 %v4938, %v4954
      %v4994 = vadd.f32 %v4939, %v4954
      %v4995 = vadd.f32 %v4940, %v4954
      %v4996 = vadd.f32 %v4941, %v4954
      %v4997 = vadd.f32 %v4942, %v4954
      %v4998 = vadd.f32 %v4943, %v4954
      %v4999 = vadd.f32 %v4944, %v4954
      %v5000 = vadd.f32 %v4945, %v4954
      %v5001 = vadd.f32 %v4946, %v4954
      %v5002 = vadd.f32 %v4947, %v4954
      %v5003 = vadd.f32 %v4948, %v4954
      %v5004 = vmax.f32 %v4956, 0.0
      %v5005 = vmax.f32 %v4957, 0.0
      %v5006 = vmax.f32 %v4958, 0.0
      %v5007 = vmax.f32 %v4959, 0.0
      %v5008 = vmax.f32 %v4960, 0.0
      %v5009 = vmax.f32 %v4961, 0.0
      %v5010 = vmax.f32 %v4962, 0.0
      %v5011 = vmax.f32 %v4963, 0.0
      %v5012 = vmax.f32 %v4964, 0.0
      %v5013 = vmax.f32 %v4965, 0.0
      %v5014 = vmax.f32 %v4966, 0.0
      %v5015 = vmax.f32 %v4967, 0.0
      %v5016 = vmax.f32 %v4968, 0.0
      %v5017 = vmax.f32 %v4969, 0.0
      %v5018 = vmax.f32 %v4970, 0.0
      %v5019 = vmax.f32 %v4971, 0.0
      %v5020 = vmax.f32 %v4972, 0.0
      %v5021 = vmax.f32 %v4973, 0.0
      %v5022 = vmax.f32 %v4974, 0.0
      %v5023 = vmax.f32 %v4975, 0.0
      %v5024 = vmax.f32 %v4976, 0.0
      %v5025 = vmax.f32 %v4977, 0.0
      %v5026 = vmax.f32 %v4978, 0.0
      %v5027 = vmax.f32 %v4979, 0.0
      %v5028 = vmax.f32 %v4980, 0.0
      %v5029 = vmax.f32 %v4981, 0.0
      %v5030 = vmax.f32 %v4982, 0.0
      %v5031 = vmax.f32 %v4983, 0.0
      %v5032 = vmax.f32 %v4984, 0.0
      %v5033 = vmax.f32 %v4985, 0.0
      %v5034 = vmax.f32 %v4986, 0.0
      %v5035 = vmax.f32 %v4987, 0.0
      %v5036 = vmax.f32 %v4988, 0.0
      %v5037 = vmax.f32 %v4989, 0.0
      %v5038 = vmax.f32 %v4990, 0.0
      %v5039 = vmax.f32 %v4991, 0.0
      %v5040 = vmax.f32 %v4992, 0.0
      %v5041 = vmax.f32 %v4993, 0.0
      %v5042 = vmax.f32 %v4994, 0.0
      %v5043 = vmax.f32 %v4995, 0.0
      %v5044 = vmax.f32 %v4996, 0.0
      %v5045 = vmax.f32 %v4997, 0.0
      %v5046 = vmax.f32 %v4998, 0.0
      %v5047 = vmax.f32 %v4999, 0.0
      %v5048 = vmax.f32 %v5000, 0.0
      %v5049 = vmax.f32 %v5001, 0.0
      %v5050 = vmax.f32 %v5002, 0.0
      %v5051 = vmax.f32 %v5003, 0.0
      %v5052 = vld [vmem:[%s302] sm:$0xff]
      %v5053 = vld [vmem:[%s302 + $0x8] sm:$0xff]
      %v5054 = vld [vmem:[%s302 + $0x10] sm:$0xff]
      %v5055 = vld [vmem:[%s302 + $0x18] sm:$0xff]
      %v5056 = vld [vmem:[%s302 + $0x20] sm:$0xff]
      %v5057 = vld [vmem:[%s302 + $0x28] sm:$0xff]
      %v5058 = vld [vmem:[%s302 + $0x30] sm:$0xff]
      %v5059 = vld [vmem:[%s302 + $0x38] sm:$0xff]
      %v5060 = vld [vmem:[%s302 + $0x40] sm:$0xff]
      %v5061 = vld [vmem:[%s302 + $0x48] sm:$0xff]
      %v5062 = vld [vmem:[%s302 + $0x50] sm:$0xff]
      %v5063 = vld [vmem:[%s302 + $0x58] sm:$0xff]
      %v5064 = vld [vmem:[%s302 + $0x60] sm:$0xff]
      %v5065 = vld [vmem:[%s302 + $0x68] sm:$0xff]
      %v5066 = vld [vmem:[%s302 + $0x70] sm:$0xff]
      %v5067 = vld [vmem:[%s302 + $0x78] sm:$0xff]
      %v5068 = vld [vmem:[%s302 + $0x80] sm:$0xff]
      %v5069 = vld [vmem:[%s302 + $0x88] sm:$0xff]
      %v5070 = vld [vmem:[%s302 + $0x90] sm:$0xff]
      %v5071 = vld [vmem:[%s302 + $0x98] sm:$0xff]
      %v5072 = vld [vmem:[%s302 + $0xa0] sm:$0xff]
      %v5073 = vld [vmem:[%s302 + $0xa8] sm:$0xff]
      %v5074 = vld [vmem:[%s302 + $0xb0] sm:$0xff]
      %v5075 = vld [vmem:[%s302 + $0xb8] sm:$0xff]
      %v5076 = vld [vmem:[%s302 + $0xc0] sm:$0xff]
      %v5077 = vld [vmem:[%s302 + $0xc8] sm:$0xff]
      %v5078 = vld [vmem:[%s302 + $0xd0] sm:$0xff]
      %v5079 = vld [vmem:[%s302 + $0xd8] sm:$0xff]
      %v5080 = vld [vmem:[%s302 + $0xe0] sm:$0xff]
      %v5081 = vld [vmem:[%s302 + $0xe8] sm:$0xff]
      %v5082 = vld [vmem:[%s302 + $0xf0] sm:$0xff]
      %v5083 = vld [vmem:[%s302 + $0xf8] sm:$0xff]
      %v5084 = vld [vmem:[%s302 + $0x100] sm:$0xff]
      %v5085 = vld [vmem:[%s302 + $0x108] sm:$0xff]
      %v5086 = vld [vmem:[%s302 + $0x110] sm:$0xff]
      %v5087 = vld [vmem:[%s302 + $0x118] sm:$0xff]
      %v5088 = vld [vmem:[%s302 + $0x120] sm:$0xff]
      %v5089 = vld [vmem:[%s302 + $0x128] sm:$0xff]
      %v5090 = vld [vmem:[%s302 + $0x130] sm:$0xff]
      %v5091 = vld [vmem:[%s302 + $0x138] sm:$0xff]
      %v5092 = vld [vmem:[%s302 + $0x140] sm:$0xff]
      %v5093 = vld [vmem:[%s302 + $0x148] sm:$0xff]
      %v5094 = vld [vmem:[%s302 + $0x150] sm:$0xff]
      %v5095 = vld [vmem:[%s302 + $0x158] sm:$0xff]
      %v5096 = vld [vmem:[%s302 + $0x160] sm:$0xff]
      %v5097 = vld [vmem:[%s302 + $0x168] sm:$0xff]
      %v5098 = vld [vmem:[%s302 + $0x170] sm:$0xff]
      %v5099 = vld [vmem:[%s302 + $0x178] sm:$0xff]
      %v5100 = vadd.f32 %v5004, %v5052
      %v5101 = vadd.f32 %v5005, %v5053
      %v5102 = vadd.f32 %v5006, %v5054
      %v5103 = vadd.f32 %v5007, %v5055
      %v5104 = vadd.f32 %v5008, %v5056
      %v5105 = vadd.f32 %v5009, %v5057
      %v5106 = vadd.f32 %v5010, %v5058
      %v5107 = vadd.f32 %v5011, %v5059
      %v5108 = vadd.f32 %v5012, %v5060
      %v5109 = vadd.f32 %v5013, %v5061
      %v5110 = vadd.f32 %v5014, %v5062
      %v5111 = vadd.f32 %v5015, %v5063
      %v5112 = vadd.f32 %v5016, %v5064
      %v5113 = vadd.f32 %v5017, %v5065
      %v5114 = vadd.f32 %v5018, %v5066
      %v5115 = vadd.f32 %v5019, %v5067
      %v5116 = vadd.f32 %v5020, %v5068
      %v5117 = vadd.f32 %v5021, %v5069
      %v5118 = vadd.f32 %v5022, %v5070
      %v5119 = vadd.f32 %v5023, %v5071
      %v5120 = vadd.f32 %v5024, %v5072
      %v5121 = vadd.f32 %v5025, %v5073
      %v5122 = vadd.f32 %v5026, %v5074
      %v5123 = vadd.f32 %v5027, %v5075
      %v5124 = vadd.f32 %v5028, %v5076
      %v5125 = vadd.f32 %v5029, %v5077
      %v5126 = vadd.f32 %v5030, %v5078
      %v5127 = vadd.f32 %v5031, %v5079
      %v5128 = vadd.f32 %v5032, %v5080
      %v5129 = vadd.f32 %v5033, %v5081
      %v5130 = vadd.f32 %v5034, %v5082
      %v5131 = vadd.f32 %v5035, %v5083
      %v5132 = vadd.f32 %v5036, %v5084
      %v5133 = vadd.f32 %v5037, %v5085
      %v5134 = vadd.f32 %v5038, %v5086
      %v5135 = vadd.f32 %v5039, %v5087
      %v5136 = vadd.f32 %v5040, %v5088
      %v5137 = vadd.f32 %v5041, %v5089
      %v5138 = vadd.f32 %v5042, %v5090
      %v5139 = vadd.f32 %v5043, %v5091
      %v5140 = vadd.f32 %v5044, %v5092
      %v5141 = vadd.f32 %v5045, %v5093
      %v5142 = vadd.f32 %v5046, %v5094
      %v5143 = vadd.f32 %v5047, %v5095
      %v5144 = vadd.f32 %v5048, %v5096
      %v5145 = vadd.f32 %v5049, %v5097
      %v5146 = vadd.f32 %v5050, %v5098
      %v5147 = vadd.f32 %v5051, %v5099
      %5148 = vst [vmem:[%s313] sm:$0xff] %v5100
      %5149 = vst [vmem:[%s313 + $0x8] sm:$0xff] %v5101
      %5150 = vst [vmem:[%s313 + $0x10] sm:$0xff] %v5102
      %5151 = vst [vmem:[%s313 + $0x18] sm:$0xff] %v5103
      %5152 = vst [vmem:[%s313 + $0x20] sm:$0xff] %v5104
      %5153 = vst [vmem:[%s313 + $0x28] sm:$0xff] %v5105
      %5154 = vst [vmem:[%s313 + $0x30] sm:$0xff] %v5106
      %5155 = vst [vmem:[%s313 + $0x38] sm:$0xff] %v5107
      %5156 = vst [vmem:[%s313 + $0x40] sm:$0xff] %v5108
      %5157 = vst [vmem:[%s313 + $0x48] sm:$0xff] %v5109
      %5158 = vst [vmem:[%s313 + $0x50] sm:$0xff] %v5110
      %5159 = vst [vmem:[%s313 + $0x58] sm:$0xff] %v5111
      %5160 = vst [vmem:[%s313 + $0x60] sm:$0xff] %v5112
      %5161 = vst [vmem:[%s313 + $0x68] sm:$0xff] %v5113
      %5162 = vst [vmem:[%s313 + $0x70] sm:$0xff] %v5114
      %5163 = vst [vmem:[%s313 + $0x78] sm:$0xff] %v5115
      %5164 = vst [vmem:[%s313 + $0x80] sm:$0xff] %v5116
      %5165 = vst [vmem:[%s313 + $0x88] sm:$0xff] %v5117
      %5166 = vst [vmem:[%s313 + $0x90] sm:$0xff] %v5118
      %5167 = vst [vmem:[%s313 + $0x98] sm:$0xff] %v5119
      %5168 = vst [vmem:[%s313 + $0xa0] sm:$0xff] %v5120
      %5169 = vst [vmem:[%s313 + $0xa8] sm:$0xff] %v5121
      %5170 = vst [vmem:[%s313 + $0xb0] sm:$0xff] %v5122
      %5171 = vst [vmem:[%s313 + $0xb8] sm:$0xff] %v5123
      %5172 = vst [vmem:[%s313 + $0xc0] sm:$0xff] %v5124
      %5173 = vst [vmem:[%s313 + $0xc8] sm:$0xff] %v5125
      %5174 = vst [vmem:[%s313 + $0xd0] sm:$0xff] %v5126
      %5175 = vst [vmem:[%s313 + $0xd8] sm:$0xff] %v5127
      %5176 = vst [vmem:[%s313 + $0xe0] sm:$0xff] %v5128
      %5177 = vst [vmem:[%s313 + $0xe8] sm:$0xff] %v5129
      %5178 = vst [vmem:[%s313 + $0xf0] sm:$0xff] %v5130
      %5179 = vst [vmem:[%s313 + $0xf8] sm:$0xff] %v5131
      %5180 = vst [vmem:[%s313 + $0x100] sm:$0xff] %v5132
      %5181 = vst [vmem:[%s313 + $0x108] sm:$0xff] %v5133
      %5182 = vst [vmem:[%s313 + $0x110] sm:$0xff] %v5134
      %5183 = vst [vmem:[%s313 + $0x118] sm:$0xff] %v5135
      %5184 = vst [vmem:[%s313 + $0x120] sm:$0xff] %v5136
      %5185 = vst [vmem:[%s313 + $0x128] sm:$0xff] %v5137
      %5186 = vst [vmem:[%s313 + $0x130] sm:$0xff] %v5138
      %5187 = vst [vmem:[%s313 + $0x138] sm:$0xff] %v5139
      %5188 = vst [vmem:[%s313 + $0x140] sm:$0xff] %v5140
      %5189 = vst [vmem:[%s313 + $0x148] sm:$0xff] %v5141
      %5190 = vst [vmem:[%s313 + $0x150] sm:$0xff] %v5142
      %5191 = vst [vmem:[%s313 + $0x158] sm:$0xff] %v5143
      %5192 = vst [vmem:[%s313 + $0x160] sm:$0xff] %v5144
      %5193 = vst [vmem:[%s313 + $0x168] sm:$0xff] %v5145
      %5194 = vst [vmem:[%s313 + $0x170] sm:$0xff] %v5146
      %5195 = vst [vmem:[%s313 + $0x178] sm:$0xff] %v5147
      %s5196 = sadd.s32 %s20, %s21
      %s5197 = smul.u32 48, %s5196
      %p5198 = scmp.lt.s32.totalorder %s5197, 95
      %s5199 = scalar_select %p5198, %s5197, 95
      %p5200 = scmp.lt.s32.totalorder %s22, 0
      %s5201 = scalar_select %p5200, %s22, 0
      %s5202 = sadd.s32 %s5201, %s5199
      %s5203 = smul.addr %s5202, 8
      %s5204 = scalar_lea.vmem %s4, %s5203
      // Predicated region
      $region37: #{conv_bn_act.1} parent=35 // pred_check
        %p5205 = pneg %p166
      $region38: #{conv_bn_act.1} parent=35 // pred_check_branch
        %5207 = sbr.rel (%p5205) target = $region40
      $region39: #{conv_bn_act.1} parent=35 // pred_region
        %s5208 = sadd.s32 %s20, %s21
        %s5209 = smul.u32 48, %s5208
      $region40: #{conv_bn_act.1} parent=35 // pred_fallthru
        _
    $region36: #{conv_bn_act.1} parent=5 // pred_fallthru
      _
    %p5210 = scmp.le.s32.totalorder 2, %s10
    // Predicated region
    $region41: #{conv_bn_act.1} parent=5 // pred_check
      %p5211 = pneg %p5210
    $region42: #{conv_bn_act.1} parent=5 // pred_check_branch
      %5213 = sbr.rel (%p5211) target = $region44
    $region43: #{conv_bn_act.1} parent=5 // pred_region
      %s5214 = ssub.s32 %s10, 2
      // Predicated region
      $region45: #{conv_bn_act.1} parent=43 // pred_check
        %p5215 = pneg %p172
      $region46: #{conv_bn_act.1} parent=43 // pred_check_branch
        %5217 = sbr.rel (%p5215) target = $region48
      $region47: #{conv_bn_act.1} parent=43 // pred_region
        %s5218 = sadd.s32 %s23, %s24
        %s5219 = smul.u32 48, %s5218
        %p5220 = scmp.lt.s32.totalorder %s5219, 95
        %s5221 = scalar_select %p5220, %s5219, 95
        %p5222 = scmp.lt.s32.totalorder %s25, 0
        %s5223 = scalar_select %p5222, %s25, 0
        %s5224 = sadd.s32 %s5223, %s5221
        %s5225 = smul.addr %s5224, 8
        %s5226 = scalar_lea.vmem %s4, %s5225
      $region48: #{conv_bn_act.1} parent=43 // pred_fallthru
        _
    $region44: #{conv_bn_act.1} parent=5 // pred_fallthru
      _
  $region6: #{conv_bn_act.1} parent=0 // loop_footer
    %s14 = sadd.s32 1, %s10
  $region7: #{conv_bn_act.1} parent=0 // loop_footer_branch
    %9 = sbr.rel target = $region3
  $region8: #{conv_bn_act.1} parent=0 // loop_exit
    _

</llo_original>
